<compile_context>
chip_gen: v7x
topology: tpu7x:2x2x1
jax: 0.10.0
libtpu: 0.0.40
codegen_flags: <defaults>
</compile_context>

<pallas_src>
import functools

import jax
import jax.numpy as jnp
from jax.experimental import pallas as pl
from jax.experimental.pallas import tpu as pltpu

NODE_TYPES = ["paper", "author", "term", "conference"]
EDGE_TYPES = [
    ("author", "to", "paper"),
    ("paper", "to", "author"),
    ("paper", "to", "term"),
    ("term", "to", "paper"),
    ("conference", "to", "paper"),
    ("paper", "to", "conference"),
]
LANE = 128          # lane-dense feature padding (full-width unmasked stores)
NEG = -1e30         # additive mask bias for non-edges / padded nodes


# ----------------------------- Pallas kernels ------------------------------

def _proj_kernel(x_ref, w_ref, b_ref, o_ref):
    """Per-node-type projection: y = x @ W + b (bf16 MXU operands, f32 accum)."""
    y = jnp.dot(x_ref[...].astype(jnp.bfloat16), w_ref[...],
                preferred_element_type=jnp.float32) + b_ref[...]
    o_ref[...] = y.astype(jnp.bfloat16)


def _edge_attn_kernel(meta_ref, xsrc_ref, xsrcT_ref, xdst_ref,
                      asrc_wt_ref, adst_w_ref, bias_ref, valid_ref,
                      wk_ref, bk_ref, out_ref, k_ref, *, heads, head_dim):
    """One edge type: fused GAT attention + ReLU + semantic-attention key."""
    del meta_ref                                      # only used by the index_maps
    xsrc = xsrc_ref[...]                              # (Ns, LANE) bf16

    # per-head attention coefficients, fused as small MXU dots (no HBM round trip)
    a_src_t = jnp.dot(asrc_wt_ref[...], xsrcT_ref[...],
                      preferred_element_type=jnp.float32)          # (H, Ns)
    a_dst = jnp.dot(xdst_ref[...], adst_w_ref[...],
                    preferred_element_type=jnp.float32)            # (Nd, H)
    bias = bias_ref[...].astype(jnp.float32)          # 0 on edges, -1e30 elsewhere

    out_ref[...] = jnp.zeros_like(out_ref)            # zero the padded lane columns

    for h in range(heads):                            # heads is tiny & static
        logits = a_dst[:, h:h + 1] + a_src_t[h:h + 1, :]           # (Nd, Ns)
        logits = jnp.where(logits >= 0, logits, 0.2 * logits)      # leaky_relu(0.2)
        s = logits + bias                                          # additive masking
        m = jnp.max(s, axis=-1, keepdims=True)
        e = jnp.exp(s - m)                                         # non-edges -> 0
        denom = jnp.sum(e, axis=-1, keepdims=True)
        # rows with no incoming edge (m ~ -1e30) must produce exactly 0
        inv = jnp.where(m > -1e20, pl.reciprocal(denom, approx=True), 0.0)
        attn = (e * inv).astype(jnp.bfloat16)
        out_h = jnp.dot(attn, xsrc[:, h * head_dim:(h + 1) * head_dim],
                        preferred_element_type=jnp.float32)
        out_ref[:, h * head_dim:(h + 1) * head_dim] = jnp.maximum(out_h, 0.0)

    # fused semantic-attention key: k = mean over real dst nodes of tanh(out @ Wk + bk)
    z = out_ref[...].astype(jnp.bfloat16)                          # (Nd, LANE)
    kk = jnp.tanh(jnp.dot(z, wk_ref[...], preferred_element_type=jnp.float32)
                  + bk_ref[...])                                   # (Nd, LANE)
    # valid_ref holds 1/n_real for real dst rows, 0 for padded rows
    k_ref[...] = jnp.sum(valid_ref[...] * kk, axis=0, keepdims=True)


# ----------------------------- HANConv layer -------------------------------

def han_conv_layer(xs, pack, bias, valid, meta, *, n_pad, heads, head_dim):
    T = len(NODE_TYPES)
    E = len(EDGE_TYPES)

    # 1) all node-type projections in ONE gridded call (grid over node types).
    xp = pl.pallas_call(
        _proj_kernel,
        out_shape=jax.ShapeDtypeStruct((T, n_pad, LANE), jnp.bfloat16),
        grid=(T,),
        in_specs=[pl.BlockSpec((None, n_pad, LANE), lambda t: (t, 0, 0)),
                  pl.BlockSpec((None, LANE, LANE), lambda t: (t, 0, 0)),
                  pl.BlockSpec((None, 1, LANE), lambda t: (t, 0, 0))],
        out_specs=pl.BlockSpec((None, n_pad, LANE), lambda t: (t, 0, 0)),
        compiler_params=pltpu.CompilerParams(dimension_semantics=("parallel",)),
    )(xs, pack["w"], pack["b"])

    # transposed copy feeds the fused a_src matmul inside the edge kernel
    # (avoids an in-kernel cross-lane transpose).
    xpT = jnp.swapaxes(xp, 1, 2)                       # (T, LANE, n_pad) bf16

    # 2) all edge types in ONE gridded call; scalar-prefetched meta picks the
    #    projected src / dst node-type slabs for every edge type.
    kern = functools.partial(_edge_attn_kernel, heads=heads, head_dim=head_dim)
    out, k = pl.pallas_call(
        kern,
        out_shape=(jax.ShapeDtypeStruct((E, n_pad, LANE), jnp.float32),
                   jax.ShapeDtypeStruct((E, 1, LANE), jnp.float32)),
        grid_spec=pltpu.PrefetchScalarGridSpec(
            num_scalar_prefetch=1,
            grid=(E,),
            in_specs=[
                pl.BlockSpec((None, n_pad, LANE), lambda e, m: (m[e, 0], 0, 0)),  # x_src
                pl.BlockSpec((None, LANE, n_pad), lambda e, m: (m[e, 0], 0, 0)),  # x_src^T
                pl.BlockSpec((None, n_pad, LANE), lambda e, m: (m[e, 1], 0, 0)),  # x_dst
                pl.BlockSpec((None, heads, LANE), lambda e, m: (e, 0, 0)),        # att_src^T
                pl.BlockSpec((None, LANE, heads), lambda e, m: (e, 0, 0)),        # att_dst
                pl.BlockSpec((None, n_pad, n_pad), lambda e, m: (e, 0, 0)),       # mask bias
                pl.BlockSpec((None, n_pad, 1), lambda e, m: (e, 0, 0)),           # valid/mean
                pl.BlockSpec((LANE, LANE), lambda e, m: (0, 0)),                  # Wk
                pl.BlockSpec((1, LANE), lambda e, m: (0, 0)),                     # bk
            ],
            out_specs=[
                pl.BlockSpec((None, n_pad, LANE), lambda e, m: (e, 0, 0)),        # out
                pl.BlockSpec((None, 1, LANE), lambda e, m: (e, 0, 0)),            # sem. key
            ],
        ),
        compiler_params=pltpu.CompilerParams(dimension_semantics=("parallel",)),
    )(meta, xp, xpT, xp, pack["att_src_t"], pack["att_dst"], bias, valid,
      pack["wk"], pack["bk"])

    # 3) semantic attention over the K<=3 edge types per destination node type
    #    (tiny, ragged grouping -> plain JAX).
    scores = jnp.sum(pack["q"][None, :] * k[:, 0, :], axis=-1)     # (E,)
    zs = []
    for nt in NODE_TYPES:
        idxs = [i for i, et in enumerate(EDGE_TYPES) if et[2] == nt]
        beta = jax.nn.softmax(jnp.stack([scores[i] for i in idxs]), axis=0)
        z = sum(beta[j] * out[i] for j, i in enumerate(idxs))
        zs.append(z)
    return jnp.stack(zs)                               # (T, n_pad, LANE) f32


# -------------------------- params & graph packing --------------------------

def init_hanconv(key, in_dim, out_dim, heads):
    d = out_dim // heads
    ki = iter(jax.random.split(key, 32))
    p = {"proj": {}, "lin_src": {}, "lin_dst": {}}
    for nt in NODE_TYPES:
        p["proj"][nt] = {
            "w": 0.1 * jax.random.normal(next(ki), (in_dim, out_dim), jnp.float32),
            "b": jnp.zeros((out_dim,), jnp.float32),
        }
    for et in EDGE_TYPES:
        name = "__".join(et)
        p["lin_src"][name] = 0.1 * jax.random.normal(next(ki), (heads, d), jnp.float32)
        p["lin_dst"][name] = 0.1 * jax.random.normal(next(ki), (heads, d), jnp.float32)
    p["k_lin"] = {
        "w": 0.1 * jax.random.normal(next(ki), (out_dim, out_dim), jnp.float32),
        "b": jnp.zeros((out_dim,), jnp.float32),
    }
    p["q"] = 0.1 * jax.random.normal(next(ki), (out_dim,), jnp.float32)
    return p


def pack_hanconv(p, in_dim, out_dim, heads):
    """Pad + stack per-type params into lane-dense (128-wide) device arrays."""
    d = out_dim // heads
    T, E = len(NODE_TYPES), len(EDGE_TYPES)
    w = jnp.zeros((T, LANE, LANE), jnp.float32)
    b = jnp.zeros((T, 1, LANE), jnp.float32)
    for t, nt in enumerate(NODE_TYPES):
        w = w.at[t, :in_dim, :out_dim].set(p["proj"][nt]["w"])
        b = b.at[t, 0, :out_dim].set(p["proj"][nt]["b"])
    att_src_t = jnp.zeros((E, heads, LANE), jnp.float32)   # a_src^T = att_src_t @ x^T
    att_dst = jnp.zeros((E, LANE, heads), jnp.float32)     # a_dst   = x @ att_dst
    for e, et in enumerate(EDGE_TYPES):
        name = "__".join(et)
        for h in range(heads):
            att_src_t = att_src_t.at[e, h, h * d:(h + 1) * d].set(p["lin_src"][name][h])
            att_dst = att_dst.at[e, h * d:(h + 1) * d, h].set(p["lin_dst"][name][h])
    wk = jnp.zeros((LANE, LANE), jnp.float32).at[:out_dim, :out_dim].set(p["k_lin"]["w"])
    bk = jnp.zeros((1, LANE), jnp.float32).at[0, :out_dim].set(p["k_lin"]["b"])
    q = jnp.zeros((LANE,), jnp.float32).at[:out_dim].set(p["q"])
    return {"w": w.astype(jnp.bfloat16), "b": b,
            "att_src_t": att_src_t.astype(jnp.bfloat16),
            "att_dst": att_dst.astype(jnp.bfloat16),
            "wk": wk.astype(jnp.bfloat16), "bk": bk, "q": q}


def pack_graph(edge_index_dict, n_nodes, n_pad):
    """Densify edge lists into additive bias masks + dst-mean weights + type meta."""
    E = len(EDGE_TYPES)
    bias = jnp.full((E, n_pad, n_pad), NEG, jnp.float32)     # rows=dst, cols=src
    valid = jnp.zeros((E, n_pad, 1), jnp.float32)
    meta = []
    for e, et in enumerate(EDGE_TYPES):
        src_t, _, dst_t = et
        ei = edge_index_dict[et]
        bias = bias.at[e, ei[1], ei[0]].set(0.0)
        n_dst = n_nodes[dst_t]
        valid = valid.at[e, :n_dst, 0].set(1.0 / n_dst)
        meta.append([NODE_TYPES.index(src_t), NODE_TYPES.index(dst_t)])
    return bias.astype(jnp.bfloat16), valid, jnp.array(meta, dtype=jnp.int32)


def stack_features(x_dict, n_pad):
    xs = jnp.zeros((len(NODE_TYPES), n_pad, LANE), jnp.float32)
    for t, nt in enumerate(NODE_TYPES):
        x = x_dict[nt]
        xs = xs.at[t, :x.shape[0], :x.shape[1]].set(x)
    return xs


# --------------------------------- forward ---------------------------------

@functools.partial(jax.jit, static_argnames=("dims", "n_pad", "out_dim"))
def han_forward(packs, xs, bias, valid, meta, idx, *, dims, n_pad, out_dim):
    for pack, (heads, head_dim) in zip(packs, dims):
        xs = han_conv_layer(xs, pack, bias, valid, meta,
                            n_pad=n_pad, heads=heads, head_dim=head_dim)
    author = xs[NODE_TYPES.index("author")]
    return author[idx][:, :out_dim]


# ----------------------------------- main -----------------------------------

if __name__ == "__main__":
    key = jax.random.PRNGKey(0)
    heads = 2
    input_dim, hidden_dim, output_dim = 32, 32, 16
    n_nodes = {"paper": 16, "author": 16, "term": 8, "conference": 8}
    n_pad = ((max(n_nodes.values()) + 7) // 8) * 8

    k_x, k_e, k_p0, k_p1 = jax.random.split(key, 4)

    x_dict = {
        nt: jax.random.normal(xk, (n_nodes[nt], input_dim), jnp.float32)
        for nt, xk in zip(NODE_TYPES, jax.random.split(k_x, len(NODE_TYPES)))
    }

    edge_index_dict = {}
    for et, ek in zip(EDGE_TYPES, jax.random.split(k_e, len(EDGE_TYPES))):
        src_t, _, dst_t = et
        ks, kd = jax.random.split(ek)
        n_e = 24
        src = jax.random.randint(ks, (n_e,), 0, n_nodes[src_t], dtype=jnp.int32)
        dst = jax.random.randint(kd, (n_e,), 0, n_nodes[dst_t], dtype=jnp.int32)
        edge_index_dict[et] = jnp.stack([src, dst])

    bias, valid, meta = pack_graph(edge_index_dict, n_nodes, n_pad)
    xs = stack_features(x_dict, n_pad)

    packs = (
        pack_hanconv(init_hanconv(k_p0, input_dim, hidden_dim, heads),
                     input_dim, hidden_dim, heads),
        pack_hanconv(init_hanconv(k_p1, hidden_dim, output_dim, heads),
                     hidden_dim, output_dim, heads),
    )
    dims = ((heads, hidden_dim // heads), (heads, output_dim // heads))

    idx = jnp.array([0, 3, 5], dtype=jnp.int32)

    out = han_forward(packs, xs, bias, valid, meta, idx,
                      dims=dims, n_pad=n_pad, out_dim=output_dim)
    out = jax.block_until_ready(out)
    assert out.shape == (idx.shape[0], output_dim)
    assert bool(jnp.all(jnp.isfinite(out)))
    print("KERNEL_OK")
</pallas_src>

<mosaic_0001>
module attributes {stable_mosaic.version = 11 : i64} {
  func.func @_proj_kernel(%arg0: i32, %arg1: memref<1x16x128xf32, #tpu.memory_space<vmem>>, %arg2: memref<1x128x128xbf16, #tpu.memory_space<vmem>>, %arg3: memref<1x1x128xf32, #tpu.memory_space<vmem>>, %arg4: memref<1x16x128xbf16, #tpu.memory_space<vmem>>) attributes {dimension_semantics = [#tpu.dimension_semantics<parallel>], iteration_bounds = array<i64: 4>, scalar_prefetch = 0 : i64, scratch_operands = 0 : i64, tpu.core_type = #tpu.core_type<tc>, window_params = [{transform_indices = @transform_0, window_bounds = array<i64: 1, 16, 128>}, {transform_indices = @transform_1, window_bounds = array<i64: 1, 128, 128>}, {transform_indices = @transform_2, window_bounds = array<i64: 1, 1, 128>}, {transform_indices = @transform_3, window_bounds = array<i64: 1, 16, 128>}]} {
    %c0 = arith.constant 0 : index
    %c0_0 = arith.constant 0 : index
    %c0_1 = arith.constant 0 : index
    %0 = vector.load %arg1[%c0, %c0_0, %c0_1] : memref<1x16x128xf32, #tpu.memory_space<vmem>>, vector<1x16x128xf32>
    %1 = vector.shape_cast %0 : vector<1x16x128xf32> to vector<16x128xf32>
    %2 = arith.truncf %1 : vector<16x128xf32> to vector<16x128xbf16>
    %c0_2 = arith.constant 0 : index
    %c0_3 = arith.constant 0 : index
    %c0_4 = arith.constant 0 : index
    %3 = vector.load %arg2[%c0_2, %c0_3, %c0_4] : memref<1x128x128xbf16, #tpu.memory_space<vmem>>, vector<1x128x128xbf16>
    %4 = vector.shape_cast %3 : vector<1x128x128xbf16> to vector<128x128xbf16>
    %cst = arith.constant dense<0.000000e+00> : vector<16x128xf32>
    %5 = tpu.matmul %2, %4, %cst {dimension_numbers = #tpu.dot_dimension_numbers<[1], [0], [0], [1], [0, 0, 1, 1], [], []>} : vector<16x128xbf16>, vector<128x128xbf16>, vector<16x128xf32> -> vector<16x128xf32>
    %c0_5 = arith.constant 0 : index
    %c0_6 = arith.constant 0 : index
    %c0_7 = arith.constant 0 : index
    %6 = vector.load %arg3[%c0_5, %c0_6, %c0_7] : memref<1x1x128xf32, #tpu.memory_space<vmem>>, vector<1x1x128xf32>
    %7 = vector.shape_cast %6 : vector<1x1x128xf32> to vector<1x128xf32>
    %8 = vector.broadcast %7 : vector<1x128xf32> to vector<16x128xf32>
    %9 = arith.addf %5, %8 : vector<16x128xf32>
    %10 = arith.truncf %9 : vector<16x128xf32> to vector<16x128xbf16>
    %c0_8 = arith.constant 0 : index
    %c0_9 = arith.constant 0 : index
    %c0_10 = arith.constant 0 : index
    %11 = vector.load %arg4[%c0_8, %c0_9, %c0_10] : memref<1x16x128xbf16, #tpu.memory_space<vmem>>, vector<1x16x128xbf16>
    %12 = vector.shape_cast %11 : vector<1x16x128xbf16> to vector<16x128xbf16>
    %13 = vector.shape_cast %10 : vector<16x128xbf16> to vector<1x16x128xbf16>
    tpu.vector_store %arg4[%c0_8, %c0_9, %c0_10], %13 {strides = array<i32>} : memref<1x16x128xbf16, #tpu.memory_space<vmem>>, vector<1x16x128xbf16>,
    return
  }
  func.func @transform_0(%arg0: i32) -> (i32, i32, i32) {
    %c0_i32 = arith.constant 0 : i32
    %c0_i32_0 = arith.constant 0 : i32
    %c0_i32_1 = arith.constant 0 : i32
    return %arg0, %c0_i32, %c0_i32_0 : i32, i32, i32
  }
  func.func @transform_1(%arg0: i32) -> (i32, i32, i32) {
    %c0_i32 = arith.constant 0 : i32
    %c0_i32_0 = arith.constant 0 : i32
    %c0_i32_1 = arith.constant 0 : i32
    return %arg0, %c0_i32, %c0_i32_0 : i32, i32, i32
  }
  func.func @transform_2(%arg0: i32) -> (i32, i32, i32) {
    %c0_i32 = arith.constant 0 : i32
    %c0_i32_0 = arith.constant 0 : i32
    %c0_i32_1 = arith.constant 0 : i32
    return %arg0, %c0_i32, %c0_i32_0 : i32, i32, i32
  }
  func.func @transform_3(%arg0: i32) -> (i32, i32, i32) {
    %c0_i32 = arith.constant 0 : i32
    %c0_i32_0 = arith.constant 0 : i32
    %c0_i32_1 = arith.constant 0 : i32
    return %arg0, %c0_i32, %c0_i32_0 : i32, i32, i32
  }
}

module attributes {stable_mosaic.version = 11 : i64} {
  func.func @_edge_attn_kernel(%arg0: i32, %arg1: memref<6x2xi32, #tpu.memory_space<smem>>, %arg2: memref<1x16x128xbf16, #tpu.memory_space<vmem>>, %arg3: memref<1x128x16xbf16, #tpu.memory_space<vmem>>, %arg4: memref<1x16x128xbf16, #tpu.memory_space<vmem>>, %arg5: memref<1x2x128xbf16, #tpu.memory_space<vmem>>, %arg6: memref<1x128x2xbf16, #tpu.memory_space<vmem>>, %arg7: memref<1x16x16xbf16, #tpu.memory_space<vmem>>, %arg8: memref<1x16x1xf32, #tpu.memory_space<vmem>>, %arg9: memref<128x128xbf16, #tpu.memory_space<vmem>>, %arg10: memref<1x128xf32, #tpu.memory_space<vmem>>, %arg11: memref<1x16x128xf32, #tpu.memory_space<vmem>>, %arg12: memref<1x1x128xf32, #tpu.memory_space<vmem>>) attributes {dimension_semantics = [#tpu.dimension_semantics<parallel>], iteration_bounds = array<i64: 6>, scalar_prefetch = 1 : i64, scratch_operands = 0 : i64, tpu.core_type = #tpu.core_type<tc>, window_params = [{transform_indices = @transform_0, window_bounds = array<i64: 1, 16, 128>}, {transform_indices = @transform_1, window_bounds = array<i64: 1, 128, 16>}, {transform_indices = @transform_2, window_bounds = array<i64: 1, 16, 128>}, {transform_indices = @transform_3, window_bounds = array<i64: 1, 2, 128>}, {transform_indices = @transform_4, window_bounds = array<i64: 1, 128, 2>}, {transform_indices = @transform_5, window_bounds = array<i64: 1, 16, 16>}, {transform_indices = @transform_6, window_bounds = array<i64: 1, 16, 1>}, {pipeline_mode = #tpu.pipeline_mode<synchronous>, transform_indices = @transform_7, window_bounds = array<i64: 128, 128>}, {pipeline_mode = #tpu.pipeline_mode<synchronous>, transform_indices = @transform_8, window_bounds = array<i64: 1, 128>}, {transform_indices = @transform_9, window_bounds = array<i64: 1, 16, 128>}, {transform_indices = @transform_10, window_bounds = array<i64: 1, 1, 128>}]} {
    %c0 = arith.constant 0 : index
    %c0_0 = arith.constant 0 : index
    %c0_1 = arith.constant 0 : index
    %0 = vector.load %arg2[%c0, %c0_0, %c0_1] : memref<1x16x128xbf16, #tpu.memory_space<vmem>>, vector<1x16x128xbf16>
    %1 = vector.shape_cast %0 : vector<1x16x128xbf16> to vector<16x128xbf16>
    %c0_2 = arith.constant 0 : index
    %c0_3 = arith.constant 0 : index
    %c0_4 = arith.constant 0 : index
    %2 = vector.load %arg5[%c0_2, %c0_3, %c0_4] : memref<1x2x128xbf16, #tpu.memory_space<vmem>>, vector<1x2x128xbf16>
    %3 = vector.shape_cast %2 : vector<1x2x128xbf16> to vector<2x128xbf16>
    %c0_5 = arith.constant 0 : index
    %c0_6 = arith.constant 0 : index
    %c0_7 = arith.constant 0 : index
    %4 = vector.load %arg3[%c0_5, %c0_6, %c0_7] : memref<1x128x16xbf16, #tpu.memory_space<vmem>>, vector<1x128x16xbf16>
    %5 = vector.shape_cast %4 : vector<1x128x16xbf16> to vector<128x16xbf16>
    %cst = arith.constant dense<0.000000e+00> : vector<2x16xf32>
    %6 = tpu.matmul %3, %5, %cst {dimension_numbers = #tpu.dot_dimension_numbers<[1], [0], [0], [1], [0, 0, 1, 1], [], []>} : vector<2x128xbf16>, vector<128x16xbf16>, vector<2x16xf32> -> vector<2x16xf32>
    %c0_8 = arith.constant 0 : index
    %c0_9 = arith.constant 0 : index
    %c0_10 = arith.constant 0 : index
    %7 = vector.load %arg4[%c0_8, %c0_9, %c0_10] : memref<1x16x128xbf16, #tpu.memory_space<vmem>>, vector<1x16x128xbf16>
    %8 = vector.shape_cast %7 : vector<1x16x128xbf16> to vector<16x128xbf16>
    %c0_11 = arith.constant 0 : index
    %c0_12 = arith.constant 0 : index
    %c0_13 = arith.constant 0 : index
    %9 = vector.load %arg6[%c0_11, %c0_12, %c0_13] : memref<1x128x2xbf16, #tpu.memory_space<vmem>>, vector<1x128x2xbf16>
    %10 = vector.shape_cast %9 : vector<1x128x2xbf16> to vector<128x2xbf16>
    %cst_14 = arith.constant dense<0.000000e+00> : vector<16x2xf32>
    %11 = tpu.matmul %8, %10, %cst_14 {dimension_numbers = #tpu.dot_dimension_numbers<[1], [0], [0], [1], [0, 0, 1, 1], [], []>} : vector<16x128xbf16>, vector<128x2xbf16>, vector<16x2xf32> -> vector<16x2xf32>
    %c0_15 = arith.constant 0 : index
    %c0_16 = arith.constant 0 : index
    %c0_17 = arith.constant 0 : index
    %12 = vector.load %arg7[%c0_15, %c0_16, %c0_17] : memref<1x16x16xbf16, #tpu.memory_space<vmem>>, vector<1x16x16xbf16>
    %13 = vector.shape_cast %12 : vector<1x16x16xbf16> to vector<16x16xbf16>
    %14 = arith.extf %13 : vector<16x16xbf16> to vector<16x16xf32>
    %cst_18 = arith.constant 0.000000e+00 : f32
    %15 = vector.broadcast %cst_18 : f32 to vector<16x128xf32>
    %c0_19 = arith.constant 0 : index
    %c0_20 = arith.constant 0 : index
    %c0_21 = arith.constant 0 : index
    %16 = vector.load %arg11[%c0_19, %c0_20, %c0_21] : memref<1x16x128xf32, #tpu.memory_space<vmem>>, vector<1x16x128xf32>
    %17 = vector.shape_cast %16 : vector<1x16x128xf32> to vector<16x128xf32>
    %18 = vector.shape_cast %15 : vector<16x128xf32> to vector<1x16x128xf32>
    tpu.vector_store %arg11[%c0_19, %c0_20, %c0_21], %18 {strides = array<i32>} : memref<1x16x128xf32, #tpu.memory_space<vmem>>, vector<1x16x128xf32>,
    %19 = vector.extract_strided_slice %11 {offsets = [0, 0], sizes = [16, 1], strides = [1, 1]} : vector<16x2xf32> to vector<16x1xf32>
    %20 = vector.extract_strided_slice %6 {offsets = [0, 0], sizes = [1, 16], strides = [1, 1]} : vector<2x16xf32> to vector<1x16xf32>
    %21 = vector.broadcast %19 : vector<16x1xf32> to vector<16x16xf32>
    %22 = vector.broadcast %20 : vector<1x16xf32> to vector<16x16xf32>
    %23 = arith.addf %21, %22 : vector<16x16xf32>
    %cst_22 = arith.constant 0.000000e+00 : f32
    %24 = vector.broadcast %cst_22 : f32 to vector<16x16xf32>
    %25 = arith.cmpf oge, %23, %24 : vector<16x16xf32>
    %cst_23 = arith.constant 2.000000e-01 : f32
    %26 = vector.broadcast %cst_23 : f32 to vector<16x16xf32>
    %27 = arith.mulf %26, %23 : vector<16x16xf32>
    %28 = arith.select %25, %23, %27 : vector<16x16xi1>, vector<16x16xf32>
    %29 = arith.addf %28, %14 : vector<16x16xf32>
    %cst_24 = arith.constant dense<0xFF800000> : vector<16xf32>
    %30 = vector.multi_reduction <maximumf>, %29, %cst_24 [1] : vector<16x16xf32> to vector<16xf32>
    %31 = vector.shape_cast %30 : vector<16xf32> to vector<16x1xf32>
    %32 = vector.broadcast %31 : vector<16x1xf32> to vector<16x16xf32>
    %33 = arith.subf %29, %32 : vector<16x16xf32>
    %34 = math.exp %33 : vector<16x16xf32>
    %cst_25 = arith.constant dense<0.000000e+00> : vector<16xf32>
    %35 = vector.multi_reduction <add>, %34, %cst_25 [1] : vector<16x16xf32> to vector<16xf32>
    %36 = vector.shape_cast %35 : vector<16xf32> to vector<16x1xf32>
    %cst_26 = arith.constant -1.000000e+20 : f32
    %37 = vector.broadcast %cst_26 : f32 to vector<16x1xf32>
    %38 = arith.cmpf ogt, %31, %37 : vector<16x1xf32>
    %39 = tpu.reciprocal %36 {approx = true} : vector<16x1xf32> -> vector<16x1xf32>
    %cst_27 = arith.constant 0.000000e+00 : f32
    %40 = vector.broadcast %cst_27 : f32 to vector<16x1xf32>
    %41 = arith.select %38, %39, %40 : vector<16x1xi1>, vector<16x1xf32>
    %42 = vector.broadcast %41 : vector<16x1xf32> to vector<16x16xf32>
    %43 = arith.mulf %34, %42 : vector<16x16xf32>
    %44 = arith.truncf %43 : vector<16x16xf32> to vector<16x16xbf16>
    %45 = vector.extract_strided_slice %1 {offsets = [0, 0], sizes = [16, 16], strides = [1, 1]} : vector<16x128xbf16> to vector<16x16xbf16>
    %cst_28 = arith.constant dense<0.000000e+00> : vector<16x16xf32>
    %46 = tpu.matmul %44, %45, %cst_28 {dimension_numbers = #tpu.dot_dimension_numbers<[1], [0], [0], [1], [0, 0, 1, 1], [], []>} : vector<16x16xbf16>, vector<16x16xbf16>, vector<16x16xf32> -> vector<16x16xf32>
    %cst_29 = arith.constant 0.000000e+00 : f32
    %47 = vector.broadcast %cst_29 : f32 to vector<16x16xf32>
    %48 = arith.maximumf %46, %47 : vector<16x16xf32>
    %c0_30 = arith.constant 0 : index
    %c0_31 = arith.constant 0 : index
    %c0_32 = arith.constant 0 : index
    %49 = vector.load %arg11[%c0_30, %c0_31, %c0_32] : memref<1x16x128xf32, #tpu.memory_space<vmem>>, vector<1x16x16xf32>
    %50 = vector.shape_cast %49 : vector<1x16x16xf32> to vector<16x16xf32>
    %51 = vector.shape_cast %48 : vector<16x16xf32> to vector<1x16x16xf32>
    tpu.vector_store %arg11[%c0_30, %c0_31, %c0_32], %51 {strides = array<i32>} : memref<1x16x128xf32, #tpu.memory_space<vmem>>, vector<1x16x16xf32>,
    %52 = vector.extract_strided_slice %11 {offsets = [0, 1], sizes = [16, 1], strides = [1, 1]} : vector<16x2xf32> to vector<16x1xf32>
    %53 = vector.extract_strided_slice %6 {offsets = [1, 0], sizes = [1, 16], strides = [1, 1]} : vector<2x16xf32> to vector<1x16xf32>
    %54 = vector.broadcast %52 : vector<16x1xf32> to vector<16x16xf32>
    %55 = vector.broadcast %53 : vector<1x16xf32> to vector<16x16xf32>
    %56 = arith.addf %54, %55 : vector<16x16xf32>
    %cst_33 = arith.constant 0.000000e+00 : f32
    %57 = vector.broadcast %cst_33 : f32 to vector<16x16xf32>
    %58 = arith.cmpf oge, %56, %57 : vector<16x16xf32>
    %cst_34 = arith.constant 2.000000e-01 : f32
    %59 = vector.broadcast %cst_34 : f32 to vector<16x16xf32>
    %60 = arith.mulf %59, %56 : vector<16x16xf32>
    %61 = arith.select %58, %56, %60 : vector<16x16xi1>, vector<16x16xf32>
    %62 = arith.addf %61, %14 : vector<16x16xf32>
    %cst_35 = arith.constant dense<0xFF800000> : vector<16xf32>
    %63 = vector.multi_reduction <maximumf>, %62, %cst_35 [1] : vector<16x16xf32> to vector<16xf32>
    %64 = vector.shape_cast %63 : vector<16xf32> to vector<16x1xf32>
    %65 = vector.broadcast %64 : vector<16x1xf32> to vector<16x16xf32>
    %66 = arith.subf %62, %65 : vector<16x16xf32>
    %67 = math.exp %66 : vector<16x16xf32>
    %cst_36 = arith.constant dense<0.000000e+00> : vector<16xf32>
    %68 = vector.multi_reduction <add>, %67, %cst_36 [1] : vector<16x16xf32> to vector<16xf32>
    %69 = vector.shape_cast %68 : vector<16xf32> to vector<16x1xf32>
    %cst_37 = arith.constant -1.000000e+20 : f32
    %70 = vector.broadcast %cst_37 : f32 to vector<16x1xf32>
    %71 = arith.cmpf ogt, %64, %70 : vector<16x1xf32>
    %72 = tpu.reciprocal %69 {approx = true} : vector<16x1xf32> -> vector<16x1xf32>
    %cst_38 = arith.constant 0.000000e+00 : f32
    %73 = vector.broadcast %cst_38 : f32 to vector<16x1xf32>
    %74 = arith.select %71, %72, %73 : vector<16x1xi1>, vector<16x1xf32>
    %75 = vector.broadcast %74 : vector<16x1xf32> to vector<16x16xf32>
    %76 = arith.mulf %67, %75 : vector<16x16xf32>
    %77 = arith.truncf %76 : vector<16x16xf32> to vector<16x16xbf16>
    %78 = vector.extract_strided_slice %1 {offsets = [0, 16], sizes = [16, 16], strides = [1, 1]} : vector<16x128xbf16> to vector<16x16xbf16>
    %cst_39 = arith.constant dense<0.000000e+00> : vector<16x16xf32>
    %79 = tpu.matmul %77, %78, %cst_39 {dimension_numbers = #tpu.dot_dimension_numbers<[1], [0], [0], [1], [0, 0, 1, 1], [], []>} : vector<16x16xbf16>, vector<16x16xbf16>, vector<16x16xf32> -> vector<16x16xf32>
    %cst_40 = arith.constant 0.000000e+00 : f32
    %80 = vector.broadcast %cst_40 : f32 to vector<16x16xf32>
    %81 = arith.maximumf %79, %80 : vector<16x16xf32>
    %c0_41 = arith.constant 0 : index
    %c0_42 = arith.constant 0 : index
    %c16 = arith.constant 16 : index
    %82 = vector.load %arg11[%c0_41, %c0_42, %c16] : memref<1x16x128xf32, #tpu.memory_space<vmem>>, vector<1x16x16xf32>
    %83 = vector.shape_cast %82 : vector<1x16x16xf32> to vector<16x16xf32>
    %84 = vector.shape_cast %81 : vector<16x16xf32> to vector<1x16x16xf32>
    tpu.vector_store %arg11[%c0_41, %c0_42, %c16], %84 {strides = array<i32>} : memref<1x16x128xf32, #tpu.memory_space<vmem>>, vector<1x16x16xf32>,
    %c0_43 = arith.constant 0 : index
    %c0_44 = arith.constant 0 : index
    %c0_45 = arith.constant 0 : index
    %85 = vector.load %arg11[%c0_43, %c0_44, %c0_45] : memref<1x16x128xf32, #tpu.memory_space<vmem>>, vector<1x16x128xf32>
    %86 = vector.shape_cast %85 : vector<1x16x128xf32> to vector<16x128xf32>
    %87 = arith.truncf %86 : vector<16x128xf32> to vector<16x128xbf16>
    %c0_46 = arith.constant 0 : index
    %c0_47 = arith.constant 0 : index
    %88 = vector.load %arg9[%c0_46, %c0_47] : memref<128x128xbf16, #tpu.memory_space<vmem>>, vector<128x128xbf16>
    %cst_48 = arith.constant dense<0.000000e+00> : vector<16x128xf32>
    %89 = tpu.matmul %87, %88, %cst_48 {dimension_numbers = #tpu.dot_dimension_numbers<[1], [0], [0], [1], [0, 0, 1, 1], [], []>} : vector<16x128xbf16>, vector<128x128xbf16>, vector<16x128xf32> -> vector<16x128xf32>
    %c0_49 = arith.constant 0 : index
    %c0_50 = arith.constant 0 : index
    %90 = vector.load %arg10[%c0_49, %c0_50] : memref<1x128xf32, #tpu.memory_space<vmem>>, vector<1x128xf32>
    %91 = vector.broadcast %90 : vector<1x128xf32> to vector<16x128xf32>
    %92 = arith.addf %89, %91 : vector<16x128xf32>
    %93 = math.tanh %92 : vector<16x128xf32>
    %c0_51 = arith.constant 0 : index
    %c0_52 = arith.constant 0 : index
    %c0_53 = arith.constant 0 : index
    %94 = vector.load %arg8[%c0_51, %c0_52, %c0_53] : memref<1x16x1xf32, #tpu.memory_space<vmem>>, vector<1x16x1xf32>
    %95 = vector.shape_cast %94 : vector<1x16x1xf32> to vector<16x1xf32>
    %96 = vector.broadcast %95 : vector<16x1xf32> to vector<16x128xf32>
    %97 = arith.mulf %96, %93 : vector<16x128xf32>
    %cst_54 = arith.constant dense<0.000000e+00> : vector<128xf32>
    %98 = vector.multi_reduction <add>, %97, %cst_54 [0] : vector<16x128xf32> to vector<128xf32>
    %99 = vector.shape_cast %98 : vector<128xf32> to vector<1x128xf32>
    %c0_55 = arith.constant 0 : index
    %c0_56 = arith.constant 0 : index
    %c0_57 = arith.constant 0 : index
    %100 = vector.load %arg12[%c0_55, %c0_56, %c0_57] : memref<1x1x128xf32, #tpu.memory_space<vmem>>, vector<1x1x128xf32>
    %101 = vector.shape_cast %100 : vector<1x1x128xf32> to vector<1x128xf32>
    %102 = vector.shape_cast %99 : vector<1x128xf32> to vector<1x1x128xf32>
    tpu.vector_store %arg12[%c0_55, %c0_56, %c0_57], %102 {strides = array<i32>} : memref<1x1x128xf32, #tpu.memory_space<vmem>>, vector<1x1x128xf32>,
    return
  }
  func.func @transform_0(%arg0: i32, %arg1: memref<6x2xi32, #tpu.memory_space<smem>>) -> (i32, i32, i32) {
    %0 = arith.index_cast %arg0 : i32 to index
    %c0 = arith.constant 0 : index
    %1 = memref.load %arg1[%0, %c0] : memref<6x2xi32, #tpu.memory_space<smem>>
    %c0_i32 = arith.constant 0 : i32
    %c0_i32_0 = arith.constant 0 : i32
    %c0_i32_1 = arith.constant 0 : i32
    return %1, %c0_i32, %c0_i32_0 : i32, i32, i32
  }
  func.func @transform_1(%arg0: i32, %arg1: memref<6x2xi32, #tpu.memory_space<smem>>) -> (i32, i32, i32) {
    %0 = arith.index_cast %arg0 : i32 to index
    %c0 = arith.constant 0 : index
    %1 = memref.load %arg1[%0, %c0] : memref<6x2xi32, #tpu.memory_space<smem>>
    %c0_i32 = arith.constant 0 : i32
    %c0_i32_0 = arith.constant 0 : i32
    %c0_i32_1 = arith.constant 0 : i32
    return %1, %c0_i32, %c0_i32_0 : i32, i32, i32
  }
  func.func @transform_2(%arg0: i32, %arg1: memref<6x2xi32, #tpu.memory_space<smem>>) -> (i32, i32, i32) {
    %0 = arith.index_cast %arg0 : i32 to index
    %c1 = arith.constant 1 : index
    %1 = memref.load %arg1[%0, %c1] : memref<6x2xi32, #tpu.memory_space<smem>>
    %c0_i32 = arith.constant 0 : i32
    %c0_i32_0 = arith.constant 0 : i32
    %c0_i32_1 = arith.constant 0 : i32
    return %1, %c0_i32, %c0_i32_0 : i32, i32, i32
  }
  func.func @transform_3(%arg0: i32, %arg1: memref<6x2xi32, #tpu.memory_space<smem>>) -> (i32, i32, i32) {
    %c0_i32 = arith.constant 0 : i32
    %c0_i32_0 = arith.constant 0 : i32
    %c0_i32_1 = arith.constant 0 : i32
    return %arg0, %c0_i32, %c0_i32_0 : i32, i32, i32
  }
  func.func @transform_4(%arg0: i32, %arg1: memref<6x2xi32, #tpu.memory_space<smem>>) -> (i32, i32, i32) {
    %c0_i32 = arith.constant 0 : i32
    %c0_i32_0 = arith.constant 0 : i32
    %c0_i32_1 = arith.constant 0 : i32
    return %arg0, %c0_i32, %c0_i32_0 : i32, i32, i32
  }
  func.func @transform_5(%arg0: i32, %arg1: memref<6x2xi32, #tpu.memory_space<smem>>) -> (i32, i32, i32) {
    %c0_i32 = arith.constant 0 : i32
    %c0_i32_0 = arith.constant 0 : i32
    %c0_i32_1 = arith.constant 0 : i32
    return %arg0, %c0_i32, %c0_i32_0 : i32, i32, i32
  }
  func.func @transform_6(%arg0: i32, %arg1: memref<6x2xi32, #tpu.memory_space<smem>>) -> (i32, i32, i32) {
    %c0_i32 = arith.constant 0 : i32
    %c0_i32_0 = arith.constant 0 : i32
    %c0_i32_1 = arith.constant 0 : i32
    return %arg0, %c0_i32, %c0_i32_0 : i32, i32, i32
  }
  func.func @transform_7(%arg0: i32, %arg1: memref<6x2xi32, #tpu.memory_space<smem>>) -> (i32, i32) {
    %c0_i32 = arith.constant 0 : i32
    %c0_i32_0 = arith.constant 0 : i32
    %c0_i32_1 = arith.constant 0 : i32
    return %c0_i32, %c0_i32_0 : i32, i32
  }
  func.func @transform_8(%arg0: i32, %arg1: memref<6x2xi32, #tpu.memory_space<smem>>) -> (i32, i32) {
    %c0_i32 = arith.constant 0 : i32
    %c0_i32_0 = arith.constant 0 : i32
    %c0_i32_1 = arith.constant 0 : i32
    return %c0_i32, %c0_i32_0 : i32, i32
  }
  func.func @transform_9(%arg0: i32, %arg1: memref<6x2xi32, #tpu.memory_space<smem>>) -> (i32, i32, i32) {
    %c0_i32 = arith.constant 0 : i32
    %c0_i32_0 = arith.constant 0 : i32
    %c0_i32_1 = arith.constant 0 : i32
    return %arg0, %c0_i32, %c0_i32_0 : i32, i32, i32
  }
  func.func @transform_10(%arg0: i32, %arg1: memref<6x2xi32, #tpu.memory_space<smem>>) -> (i32, i32, i32) {
    %c0_i32 = arith.constant 0 : i32
    %c0_i32_0 = arith.constant 0 : i32
    %c0_i32_1 = arith.constant 0 : i32
    return %arg0, %c0_i32, %c0_i32_0 : i32, i32, i32
  }
}

module attributes {stable_mosaic.version = 11 : i64} {
  func.func @_proj_kernel(%arg0: i32, %arg1: memref<1x16x128xf32, #tpu.memory_space<vmem>>, %arg2: memref<1x128x128xbf16, #tpu.memory_space<vmem>>, %arg3: memref<1x1x128xf32, #tpu.memory_space<vmem>>, %arg4: memref<1x16x128xbf16, #tpu.memory_space<vmem>>) attributes {dimension_semantics = [#tpu.dimension_semantics<parallel>], iteration_bounds = array<i64: 4>, scalar_prefetch = 0 : i64, scratch_operands = 0 : i64, tpu.core_type = #tpu.core_type<tc>, window_params = [{transform_indices = @transform_0, window_bounds = array<i64: 1, 16, 128>}, {transform_indices = @transform_1, window_bounds = array<i64: 1, 128, 128>}, {transform_indices = @transform_2, window_bounds = array<i64: 1, 1, 128>}, {transform_indices = @transform_3, window_bounds = array<i64: 1, 16, 128>}]} {
    %c0 = arith.constant 0 : index
    %c0_0 = arith.constant 0 : index
    %c0_1 = arith.constant 0 : index
    %0 = vector.load %arg1[%c0, %c0_0, %c0_1] : memref<1x16x128xf32, #tpu.memory_space<vmem>>, vector<1x16x128xf32>
    %1 = vector.shape_cast %0 : vector<1x16x128xf32> to vector<16x128xf32>
    %2 = arith.truncf %1 : vector<16x128xf32> to vector<16x128xbf16>
    %c0_2 = arith.constant 0 : index
    %c0_3 = arith.constant 0 : index
    %c0_4 = arith.constant 0 : index
    %3 = vector.load %arg2[%c0_2, %c0_3, %c0_4] : memref<1x128x128xbf16, #tpu.memory_space<vmem>>, vector<1x128x128xbf16>
    %4 = vector.shape_cast %3 : vector<1x128x128xbf16> to vector<128x128xbf16>
    %cst = arith.constant dense<0.000000e+00> : vector<16x128xf32>
    %5 = tpu.matmul %2, %4, %cst {dimension_numbers = #tpu.dot_dimension_numbers<[1], [0], [0], [1], [0, 0, 1, 1], [], []>} : vector<16x128xbf16>, vector<128x128xbf16>, vector<16x128xf32> -> vector<16x128xf32>
    %c0_5 = arith.constant 0 : index
    %c0_6 = arith.constant 0 : index
    %c0_7 = arith.constant 0 : index
    %6 = vector.load %arg3[%c0_5, %c0_6, %c0_7] : memref<1x1x128xf32, #tpu.memory_space<vmem>>, vector<1x1x128xf32>
    %7 = vector.shape_cast %6 : vector<1x1x128xf32> to vector<1x128xf32>
    %8 = vector.broadcast %7 : vector<1x128xf32> to vector<16x128xf32>
    %9 = arith.addf %5, %8 : vector<16x128xf32>
    %10 = arith.truncf %9 : vector<16x128xf32> to vector<16x128xbf16>
    %c0_8 = arith.constant 0 : index
    %c0_9 = arith.constant 0 : index
    %c0_10 = arith.constant 0 : index
    %11 = vector.load %arg4[%c0_8, %c0_9, %c0_10] : memref<1x16x128xbf16, #tpu.memory_space<vmem>>, vector<1x16x128xbf16>
    %12 = vector.shape_cast %11 : vector<1x16x128xbf16> to vector<16x128xbf16>
    %13 = vector.shape_cast %10 : vector<16x128xbf16> to vector<1x16x128xbf16>
    tpu.vector_store %arg4[%c0_8, %c0_9, %c0_10], %13 {strides = array<i32>} : memref<1x16x128xbf16, #tpu.memory_space<vmem>>, vector<1x16x128xbf16>,
    return
  }
  func.func @transform_0(%arg0: i32) -> (i32, i32, i32) {
    %c0_i32 = arith.constant 0 : i32
    %c0_i32_0 = arith.constant 0 : i32
    %c0_i32_1 = arith.constant 0 : i32
    return %arg0, %c0_i32, %c0_i32_0 : i32, i32, i32
  }
  func.func @transform_1(%arg0: i32) -> (i32, i32, i32) {
    %c0_i32 = arith.constant 0 : i32
    %c0_i32_0 = arith.constant 0 : i32
    %c0_i32_1 = arith.constant 0 : i32
    return %arg0, %c0_i32, %c0_i32_0 : i32, i32, i32
  }
  func.func @transform_2(%arg0: i32) -> (i32, i32, i32) {
    %c0_i32 = arith.constant 0 : i32
    %c0_i32_0 = arith.constant 0 : i32
    %c0_i32_1 = arith.constant 0 : i32
    return %arg0, %c0_i32, %c0_i32_0 : i32, i32, i32
  }
  func.func @transform_3(%arg0: i32) -> (i32, i32, i32) {
    %c0_i32 = arith.constant 0 : i32
    %c0_i32_0 = arith.constant 0 : i32
    %c0_i32_1 = arith.constant 0 : i32
    return %arg0, %c0_i32, %c0_i32_0 : i32, i32, i32
  }
}

module attributes {stable_mosaic.version = 11 : i64} {
  func.func @_edge_attn_kernel(%arg0: i32, %arg1: memref<6x2xi32, #tpu.memory_space<smem>>, %arg2: memref<1x16x128xbf16, #tpu.memory_space<vmem>>, %arg3: memref<1x128x16xbf16, #tpu.memory_space<vmem>>, %arg4: memref<1x16x128xbf16, #tpu.memory_space<vmem>>, %arg5: memref<1x2x128xbf16, #tpu.memory_space<vmem>>, %arg6: memref<1x128x2xbf16, #tpu.memory_space<vmem>>, %arg7: memref<1x16x16xbf16, #tpu.memory_space<vmem>>, %arg8: memref<1x16x1xf32, #tpu.memory_space<vmem>>, %arg9: memref<128x128xbf16, #tpu.memory_space<vmem>>, %arg10: memref<1x128xf32, #tpu.memory_space<vmem>>, %arg11: memref<1x16x128xf32, #tpu.memory_space<vmem>>, %arg12: memref<1x1x128xf32, #tpu.memory_space<vmem>>) attributes {dimension_semantics = [#tpu.dimension_semantics<parallel>], iteration_bounds = array<i64: 6>, scalar_prefetch = 1 : i64, scratch_operands = 0 : i64, tpu.core_type = #tpu.core_type<tc>, window_params = [{transform_indices = @transform_0, window_bounds = array<i64: 1, 16, 128>}, {transform_indices = @transform_1, window_bounds = array<i64: 1, 128, 16>}, {transform_indices = @transform_2, window_bounds = array<i64: 1, 16, 128>}, {transform_indices = @transform_3, window_bounds = array<i64: 1, 2, 128>}, {transform_indices = @transform_4, window_bounds = array<i64: 1, 128, 2>}, {transform_indices = @transform_5, window_bounds = array<i64: 1, 16, 16>}, {transform_indices = @transform_6, window_bounds = array<i64: 1, 16, 1>}, {pipeline_mode = #tpu.pipeline_mode<synchronous>, transform_indices = @transform_7, window_bounds = array<i64: 128, 128>}, {pipeline_mode = #tpu.pipeline_mode<synchronous>, transform_indices = @transform_8, window_bounds = array<i64: 1, 128>}, {transform_indices = @transform_9, window_bounds = array<i64: 1, 16, 128>}, {transform_indices = @transform_10, window_bounds = array<i64: 1, 1, 128>}]} {
    %c0 = arith.constant 0 : index
    %c0_0 = arith.constant 0 : index
    %c0_1 = arith.constant 0 : index
    %0 = vector.load %arg2[%c0, %c0_0, %c0_1] : memref<1x16x128xbf16, #tpu.memory_space<vmem>>, vector<1x16x128xbf16>
    %1 = vector.shape_cast %0 : vector<1x16x128xbf16> to vector<16x128xbf16>
    %c0_2 = arith.constant 0 : index
    %c0_3 = arith.constant 0 : index
    %c0_4 = arith.constant 0 : index
    %2 = vector.load %arg5[%c0_2, %c0_3, %c0_4] : memref<1x2x128xbf16, #tpu.memory_space<vmem>>, vector<1x2x128xbf16>
    %3 = vector.shape_cast %2 : vector<1x2x128xbf16> to vector<2x128xbf16>
    %c0_5 = arith.constant 0 : index
    %c0_6 = arith.constant 0 : index
    %c0_7 = arith.constant 0 : index
    %4 = vector.load %arg3[%c0_5, %c0_6, %c0_7] : memref<1x128x16xbf16, #tpu.memory_space<vmem>>, vector<1x128x16xbf16>
    %5 = vector.shape_cast %4 : vector<1x128x16xbf16> to vector<128x16xbf16>
    %cst = arith.constant dense<0.000000e+00> : vector<2x16xf32>
    %6 = tpu.matmul %3, %5, %cst {dimension_numbers = #tpu.dot_dimension_numbers<[1], [0], [0], [1], [0, 0, 1, 1], [], []>} : vector<2x128xbf16>, vector<128x16xbf16>, vector<2x16xf32> -> vector<2x16xf32>
    %c0_8 = arith.constant 0 : index
    %c0_9 = arith.constant 0 : index
    %c0_10 = arith.constant 0 : index
    %7 = vector.load %arg4[%c0_8, %c0_9, %c0_10] : memref<1x16x128xbf16, #tpu.memory_space<vmem>>, vector<1x16x128xbf16>
    %8 = vector.shape_cast %7 : vector<1x16x128xbf16> to vector<16x128xbf16>
    %c0_11 = arith.constant 0 : index
    %c0_12 = arith.constant 0 : index
    %c0_13 = arith.constant 0 : index
    %9 = vector.load %arg6[%c0_11, %c0_12, %c0_13] : memref<1x128x2xbf16, #tpu.memory_space<vmem>>, vector<1x128x2xbf16>
    %10 = vector.shape_cast %9 : vector<1x128x2xbf16> to vector<128x2xbf16>
    %cst_14 = arith.constant dense<0.000000e+00> : vector<16x2xf32>
    %11 = tpu.matmul %8, %10, %cst_14 {dimension_numbers = #tpu.dot_dimension_numbers<[1], [0], [0], [1], [0, 0, 1, 1], [], []>} : vector<16x128xbf16>, vector<128x2xbf16>, vector<16x2xf32> -> vector<16x2xf32>
    %c0_15 = arith.constant 0 : index
    %c0_16 = arith.constant 0 : index
    %c0_17 = arith.constant 0 : index
    %12 = vector.load %arg7[%c0_15, %c0_16, %c0_17] : memref<1x16x16xbf16, #tpu.memory_space<vmem>>, vector<1x16x16xbf16>
    %13 = vector.shape_cast %12 : vector<1x16x16xbf16> to vector<16x16xbf16>
    %14 = arith.extf %13 : vector<16x16xbf16> to vector<16x16xf32>
    %cst_18 = arith.constant 0.000000e+00 : f32
    %15 = vector.broadcast %cst_18 : f32 to vector<16x128xf32>
    %c0_19 = arith.constant 0 : index
    %c0_20 = arith.constant 0 : index
    %c0_21 = arith.constant 0 : index
    %16 = vector.load %arg11[%c0_19, %c0_20, %c0_21] : memref<1x16x128xf32, #tpu.memory_space<vmem>>, vector<1x16x128xf32>
    %17 = vector.shape_cast %16 : vector<1x16x128xf32> to vector<16x128xf32>
    %18 = vector.shape_cast %15 : vector<16x128xf32> to vector<1x16x128xf32>
    tpu.vector_store %arg11[%c0_19, %c0_20, %c0_21], %18 {strides = array<i32>} : memref<1x16x128xf32, #tpu.memory_space<vmem>>, vector<1x16x128xf32>,
    %19 = vector.extract_strided_slice %11 {offsets = [0, 0], sizes = [16, 1], strides = [1, 1]} : vector<16x2xf32> to vector<16x1xf32>
    %20 = vector.extract_strided_slice %6 {offsets = [0, 0], sizes = [1, 16], strides = [1, 1]} : vector<2x16xf32> to vector<1x16xf32>
    %21 = vector.broadcast %19 : vector<16x1xf32> to vector<16x16xf32>
    %22 = vector.broadcast %20 : vector<1x16xf32> to vector<16x16xf32>
    %23 = arith.addf %21, %22 : vector<16x16xf32>
    %cst_22 = arith.constant 0.000000e+00 : f32
    %24 = vector.broadcast %cst_22 : f32 to vector<16x16xf32>
    %25 = arith.cmpf oge, %23, %24 : vector<16x16xf32>
    %cst_23 = arith.constant 2.000000e-01 : f32
    %26 = vector.broadcast %cst_23 : f32 to vector<16x16xf32>
    %27 = arith.mulf %26, %23 : vector<16x16xf32>
    %28 = arith.select %25, %23, %27 : vector<16x16xi1>, vector<16x16xf32>
    %29 = arith.addf %28, %14 : vector<16x16xf32>
    %cst_24 = arith.constant dense<0xFF800000> : vector<16xf32>
    %30 = vector.multi_reduction <maximumf>, %29, %cst_24 [1] : vector<16x16xf32> to vector<16xf32>
    %31 = vector.shape_cast %30 : vector<16xf32> to vector<16x1xf32>
    %32 = vector.broadcast %31 : vector<16x1xf32> to vector<16x16xf32>
    %33 = arith.subf %29, %32 : vector<16x16xf32>
    %34 = math.exp %33 : vector<16x16xf32>
    %cst_25 = arith.constant dense<0.000000e+00> : vector<16xf32>
    %35 = vector.multi_reduction <add>, %34, %cst_25 [1] : vector<16x16xf32> to vector<16xf32>
    %36 = vector.shape_cast %35 : vector<16xf32> to vector<16x1xf32>
    %cst_26 = arith.constant -1.000000e+20 : f32
    %37 = vector.broadcast %cst_26 : f32 to vector<16x1xf32>
    %38 = arith.cmpf ogt, %31, %37 : vector<16x1xf32>
    %39 = tpu.reciprocal %36 {approx = true} : vector<16x1xf32> -> vector<16x1xf32>
    %cst_27 = arith.constant 0.000000e+00 : f32
    %40 = vector.broadcast %cst_27 : f32 to vector<16x1xf32>
    %41 = arith.select %38, %39, %40 : vector<16x1xi1>, vector<16x1xf32>
    %42 = vector.broadcast %41 : vector<16x1xf32> to vector<16x16xf32>
    %43 = arith.mulf %34, %42 : vector<16x16xf32>
    %44 = arith.truncf %43 : vector<16x16xf32> to vector<16x16xbf16>
    %45 = vector.extract_strided_slice %1 {offsets = [0, 0], sizes = [16, 8], strides = [1, 1]} : vector<16x128xbf16> to vector<16x8xbf16>
    %cst_28 = arith.constant dense<0.000000e+00> : vector<16x8xf32>
    %46 = tpu.matmul %44, %45, %cst_28 {dimension_numbers = #tpu.dot_dimension_numbers<[1], [0], [0], [1], [0, 0, 1, 1], [], []>} : vector<16x16xbf16>, vector<16x8xbf16>, vector<16x8xf32> -> vector<16x8xf32>
    %cst_29 = arith.constant 0.000000e+00 : f32
    %47 = vector.broadcast %cst_29 : f32 to vector<16x8xf32>
    %48 = arith.maximumf %46, %47 : vector<16x8xf32>
    %c0_30 = arith.constant 0 : index
    %c0_31 = arith.constant 0 : index
    %c0_32 = arith.constant 0 : index
    %49 = vector.load %arg11[%c0_30, %c0_31, %c0_32] : memref<1x16x128xf32, #tpu.memory_space<vmem>>, vector<1x16x8xf32>
    %50 = vector.shape_cast %49 : vector<1x16x8xf32> to vector<16x8xf32>
    %51 = vector.shape_cast %48 : vector<16x8xf32> to vector<1x16x8xf32>
    tpu.vector_store %arg11[%c0_30, %c0_31, %c0_32], %51 {strides = array<i32>} : memref<1x16x128xf32, #tpu.memory_space<vmem>>, vector<1x16x8xf32>,
    %52 = vector.extract_strided_slice %11 {offsets = [0, 1], sizes = [16, 1], strides = [1, 1]} : vector<16x2xf32> to vector<16x1xf32>
    %53 = vector.extract_strided_slice %6 {offsets = [1, 0], sizes = [1, 16], strides = [1, 1]} : vector<2x16xf32> to vector<1x16xf32>
    %54 = vector.broadcast %52 : vector<16x1xf32> to vector<16x16xf32>
    %55 = vector.broadcast %53 : vector<1x16xf32> to vector<16x16xf32>
    %56 = arith.addf %54, %55 : vector<16x16xf32>
    %cst_33 = arith.constant 0.000000e+00 : f32
    %57 = vector.broadcast %cst_33 : f32 to vector<16x16xf32>
    %58 = arith.cmpf oge, %56, %57 : vector<16x16xf32>
    %cst_34 = arith.constant 2.000000e-01 : f32
    %59 = vector.broadcast %cst_34 : f32 to vector<16x16xf32>
    %60 = arith.mulf %59, %56 : vector<16x16xf32>
    %61 = arith.select %58, %56, %60 : vector<16x16xi1>, vector<16x16xf32>
    %62 = arith.addf %61, %14 : vector<16x16xf32>
    %cst_35 = arith.constant dense<0xFF800000> : vector<16xf32>
    %63 = vector.multi_reduction <maximumf>, %62, %cst_35 [1] : vector<16x16xf32> to vector<16xf32>
    %64 = vector.shape_cast %63 : vector<16xf32> to vector<16x1xf32>
    %65 = vector.broadcast %64 : vector<16x1xf32> to vector<16x16xf32>
    %66 = arith.subf %62, %65 : vector<16x16xf32>
    %67 = math.exp %66 : vector<16x16xf32>
    %cst_36 = arith.constant dense<0.000000e+00> : vector<16xf32>
    %68 = vector.multi_reduction <add>, %67, %cst_36 [1] : vector<16x16xf32> to vector<16xf32>
    %69 = vector.shape_cast %68 : vector<16xf32> to vector<16x1xf32>
    %cst_37 = arith.constant -1.000000e+20 : f32
    %70 = vector.broadcast %cst_37 : f32 to vector<16x1xf32>
    %71 = arith.cmpf ogt, %64, %70 : vector<16x1xf32>
    %72 = tpu.reciprocal %69 {approx = true} : vector<16x1xf32> -> vector<16x1xf32>
    %cst_38 = arith.constant 0.000000e+00 : f32
    %73 = vector.broadcast %cst_38 : f32 to vector<16x1xf32>
    %74 = arith.select %71, %72, %73 : vector<16x1xi1>, vector<16x1xf32>
    %75 = vector.broadcast %74 : vector<16x1xf32> to vector<16x16xf32>
    %76 = arith.mulf %67, %75 : vector<16x16xf32>
    %77 = arith.truncf %76 : vector<16x16xf32> to vector<16x16xbf16>
    %78 = vector.extract_strided_slice %1 {offsets = [0, 8], sizes = [16, 8], strides = [1, 1]} : vector<16x128xbf16> to vector<16x8xbf16>
    %cst_39 = arith.constant dense<0.000000e+00> : vector<16x8xf32>
    %79 = tpu.matmul %77, %78, %cst_39 {dimension_numbers = #tpu.dot_dimension_numbers<[1], [0], [0], [1], [0, 0, 1, 1], [], []>} : vector<16x16xbf16>, vector<16x8xbf16>, vector<16x8xf32> -> vector<16x8xf32>
    %cst_40 = arith.constant 0.000000e+00 : f32
    %80 = vector.broadcast %cst_40 : f32 to vector<16x8xf32>
    %81 = arith.maximumf %79, %80 : vector<16x8xf32>
    %c0_41 = arith.constant 0 : index
    %c0_42 = arith.constant 0 : index
    %c8 = arith.constant 8 : index
    %82 = vector.load %arg11[%c0_41, %c0_42, %c8] : memref<1x16x128xf32, #tpu.memory_space<vmem>>, vector<1x16x8xf32>
    %83 = vector.shape_cast %82 : vector<1x16x8xf32> to vector<16x8xf32>
    %84 = vector.shape_cast %81 : vector<16x8xf32> to vector<1x16x8xf32>
    tpu.vector_store %arg11[%c0_41, %c0_42, %c8], %84 {strides = array<i32>} : memref<1x16x128xf32, #tpu.memory_space<vmem>>, vector<1x16x8xf32>,
    %c0_43 = arith.constant 0 : index
    %c0_44 = arith.constant 0 : index
    %c0_45 = arith.constant 0 : index
    %85 = vector.load %arg11[%c0_43, %c0_44, %c0_45] : memref<1x16x128xf32, #tpu.memory_space<vmem>>, vector<1x16x128xf32>
    %86 = vector.shape_cast %85 : vector<1x16x128xf32> to vector<16x128xf32>
    %87 = arith.truncf %86 : vector<16x128xf32> to vector<16x128xbf16>
    %c0_46 = arith.constant 0 : index
    %c0_47 = arith.constant 0 : index
    %88 = vector.load %arg9[%c0_46, %c0_47] : memref<128x128xbf16, #tpu.memory_space<vmem>>, vector<128x128xbf16>
    %cst_48 = arith.constant dense<0.000000e+00> : vector<16x128xf32>
    %89 = tpu.matmul %87, %88, %cst_48 {dimension_numbers = #tpu.dot_dimension_numbers<[1], [0], [0], [1], [0, 0, 1, 1], [], []>} : vector<16x128xbf16>, vector<128x128xbf16>, vector<16x128xf32> -> vector<16x128xf32>
    %c0_49 = arith.constant 0 : index
    %c0_50 = arith.constant 0 : index
    %90 = vector.load %arg10[%c0_49, %c0_50] : memref<1x128xf32, #tpu.memory_space<vmem>>, vector<1x128xf32>
    %91 = vector.broadcast %90 : vector<1x128xf32> to vector<16x128xf32>
    %92 = arith.addf %89, %91 : vector<16x128xf32>
    %93 = math.tanh %92 : vector<16x128xf32>
    %c0_51 = arith.constant 0 : index
    %c0_52 = arith.constant 0 : index
    %c0_53 = arith.constant 0 : index
    %94 = vector.load %arg8[%c0_51, %c0_52, %c0_53] : memref<1x16x1xf32, #tpu.memory_space<vmem>>, vector<1x16x1xf32>
    %95 = vector.shape_cast %94 : vector<1x16x1xf32> to vector<16x1xf32>
    %96 = vector.broadcast %95 : vector<16x1xf32> to vector<16x128xf32>
    %97 = arith.mulf %96, %93 : vector<16x128xf32>
    %cst_54 = arith.constant dense<0.000000e+00> : vector<128xf32>
    %98 = vector.multi_reduction <add>, %97, %cst_54 [0] : vector<16x128xf32> to vector<128xf32>
    %99 = vector.shape_cast %98 : vector<128xf32> to vector<1x128xf32>
    %c0_55 = arith.constant 0 : index
    %c0_56 = arith.constant 0 : index
    %c0_57 = arith.constant 0 : index
    %100 = vector.load %arg12[%c0_55, %c0_56, %c0_57] : memref<1x1x128xf32, #tpu.memory_space<vmem>>, vector<1x1x128xf32>
    %101 = vector.shape_cast %100 : vector<1x1x128xf32> to vector<1x128xf32>
    %102 = vector.shape_cast %99 : vector<1x128xf32> to vector<1x1x128xf32>
    tpu.vector_store %arg12[%c0_55, %c0_56, %c0_57], %102 {strides = array<i32>} : memref<1x1x128xf32, #tpu.memory_space<vmem>>, vector<1x1x128xf32>,
    return
  }
  func.func @transform_0(%arg0: i32, %arg1: memref<6x2xi32, #tpu.memory_space<smem>>) -> (i32, i32, i32) {
    %0 = arith.index_cast %arg0 : i32 to index
    %c0 = arith.constant 0 : index
    %1 = memref.load %arg1[%0, %c0] : memref<6x2xi32, #tpu.memory_space<smem>>
    %c0_i32 = arith.constant 0 : i32
    %c0_i32_0 = arith.constant 0 : i32
    %c0_i32_1 = arith.constant 0 : i32
    return %1, %c0_i32, %c0_i32_0 : i32, i32, i32
  }
  func.func @transform_1(%arg0: i32, %arg1: memref<6x2xi32, #tpu.memory_space<smem>>) -> (i32, i32, i32) {
    %0 = arith.index_cast %arg0 : i32 to index
    %c0 = arith.constant 0 : index
    %1 = memref.load %arg1[%0, %c0] : memref<6x2xi32, #tpu.memory_space<smem>>
    %c0_i32 = arith.constant 0 : i32
    %c0_i32_0 = arith.constant 0 : i32
    %c0_i32_1 = arith.constant 0 : i32
    return %1, %c0_i32, %c0_i32_0 : i32, i32, i32
  }
  func.func @transform_2(%arg0: i32, %arg1: memref<6x2xi32, #tpu.memory_space<smem>>) -> (i32, i32, i32) {
    %0 = arith.index_cast %arg0 : i32 to index
    %c1 = arith.constant 1 : index
    %1 = memref.load %arg1[%0, %c1] : memref<6x2xi32, #tpu.memory_space<smem>>
    %c0_i32 = arith.constant 0 : i32
    %c0_i32_0 = arith.constant 0 : i32
    %c0_i32_1 = arith.constant 0 : i32
    return %1, %c0_i32, %c0_i32_0 : i32, i32, i32
  }
  func.func @transform_3(%arg0: i32, %arg1: memref<6x2xi32, #tpu.memory_space<smem>>) -> (i32, i32, i32) {
    %c0_i32 = arith.constant 0 : i32
    %c0_i32_0 = arith.constant 0 : i32
    %c0_i32_1 = arith.constant 0 : i32
    return %arg0, %c0_i32, %c0_i32_0 : i32, i32, i32
  }
  func.func @transform_4(%arg0: i32, %arg1: memref<6x2xi32, #tpu.memory_space<smem>>) -> (i32, i32, i32) {
    %c0_i32 = arith.constant 0 : i32
    %c0_i32_0 = arith.constant 0 : i32
    %c0_i32_1 = arith.constant 0 : i32
    return %arg0, %c0_i32, %c0_i32_0 : i32, i32, i32
  }
  func.func @transform_5(%arg0: i32, %arg1: memref<6x2xi32, #tpu.memory_space<smem>>) -> (i32, i32, i32) {
    %c0_i32 = arith.constant 0 : i32
    %c0_i32_0 = arith.constant 0 : i32
    %c0_i32_1 = arith.constant 0 : i32
    return %arg0, %c0_i32, %c0_i32_0 : i32, i32, i32
  }
  func.func @transform_6(%arg0: i32, %arg1: memref<6x2xi32, #tpu.memory_space<smem>>) -> (i32, i32, i32) {
    %c0_i32 = arith.constant 0 : i32
    %c0_i32_0 = arith.constant 0 : i32
    %c0_i32_1 = arith.constant 0 : i32
    return %arg0, %c0_i32, %c0_i32_0 : i32, i32, i32
  }
  func.func @transform_7(%arg0: i32, %arg1: memref<6x2xi32, #tpu.memory_space<smem>>) -> (i32, i32) {
    %c0_i32 = arith.constant 0 : i32
    %c0_i32_0 = arith.constant 0 : i32
    %c0_i32_1 = arith.constant 0 : i32
    return %c0_i32, %c0_i32_0 : i32, i32
  }
  func.func @transform_8(%arg0: i32, %arg1: memref<6x2xi32, #tpu.memory_space<smem>>) -> (i32, i32) {
    %c0_i32 = arith.constant 0 : i32
    %c0_i32_0 = arith.constant 0 : i32
    %c0_i32_1 = arith.constant 0 : i32
    return %c0_i32, %c0_i32_0 : i32, i32
  }
  func.func @transform_9(%arg0: i32, %arg1: memref<6x2xi32, #tpu.memory_space<smem>>) -> (i32, i32, i32) {
    %c0_i32 = arith.constant 0 : i32
    %c0_i32_0 = arith.constant 0 : i32
    %c0_i32_1 = arith.constant 0 : i32
    return %arg0, %c0_i32, %c0_i32_0 : i32, i32, i32
  }
  func.func @transform_10(%arg0: i32, %arg1: memref<6x2xi32, #tpu.memory_space<smem>>) -> (i32, i32, i32) {
    %c0_i32 = arith.constant 0 : i32
    %c0_i32_0 = arith.constant 0 : i32
    %c0_i32_1 = arith.constant 0 : i32
    return %arg0, %c0_i32, %c0_i32_0 : i32, i32, i32
  }
}

</mosaic_0001>

<llo_original>
// kernel: han_forward.4
$region0: #{han_forward.4}
  #allocation0 [shape = 'u32[]', space=smem, size = 0x4, offset = 0x4, fixed_abs, tag = 'smem constant byte address 0x4 - core index']
  #allocation1 [shape = 'u32[144,128]{1,0:T(1,128)}', space=vmem, size = 0x12000, scoped, tag = 'internal scratch']
  %s0 = inlined_call_operand.hbm [shape: f32[4,16,128], index: 0, kind: input, shape index: {}]
  %s1 = inlined_call_operand.hbm [shape: bf16[4,128,128], index: 1, kind: input, shape index: {}]
  %s2 = inlined_call_operand.vmem [shape: f32[4,1,128], index: 2, kind: input, shape index: {}]
  %s3 = inlined_call_operand.vmem [shape: bf16[4,16,128], index: 3, kind: output, shape index: {}]
  %s4 = sld [smem:[#allocation0]]
  $region53: #{han_forward.4} parent=0
    _
  %s6 = ssub.s32 1, %s4
  %s7 = scalar_select 0, %s6, %s4
  $region1: #{han_forward.4} parent=0
    #allocation2 [shape = 'u8[16384]{0}', space=vmem, size = 0x4000, scoped, tag = 'input window, operand 0']
    #allocation3 [shape = 's32[2]{0}', space=sflag, size = 0x8, scoped, tag = 'scoped memory for han_forward.4']
    #allocation4 [shape = 'u8[65536]{0}', space=vmem, size = 0x10000, scoped, tag = 'input window, operand 1']
    #allocation5 [shape = 's32[2]{0}', space=sflag, size = 0x8, scoped, tag = 'scoped memory for han_forward.4']
    %8 = vsyncpa [#allocation3], 0
    %s9 = scalar_lea.sflag [#allocation3], 1
    %10 = vsyncpa %s9, 0
    %11 = vsyncpa [#allocation5], 0
    %s12 = scalar_lea.sflag [#allocation5], 1
    %13 = vsyncpa %s12, 0
    loop: start=0, step=1, limit=6
    $region2: #{han_forward.4} parent=1 // loop_pre_header
      _
    $region3: #{han_forward.4} parent=1 // loop_header
      %s15 = sphi 0, %s19
      %p16 = scmp.ge.s32.totalorder %s15, 6
      %s25 = sphi 0, %s27
      %s28 = sphi 0, %s25
      %s29 = sphi 0, %s28
      %s45 = sphi 0, %s29
      %s51 = sphi 0, %s53
      %s54 = sphi 0, %s51
      %s55 = sphi 0, %s54
      %s71 = sphi 0, %s55
      %s77 = sphi 0, %s79
      %s80 = sphi 0, %s77
      %s81 = sphi 0, %s80
      %s97 = sphi 0, %s81
      %s103 = sphi 0, %s105
      %s106 = sphi 0, %s103
      %s107 = sphi 0, %s106
      %s123 = sphi 0, %s107
    $region4: #{han_forward.4} parent=1 // loop_header_branch
      %18 = sbr.rel (%p16) target = $region8
    $region5: #{han_forward.4} parent=1 // loop_body
      %s20 = ssub.s32 %s15, 1
      %s21 = ssub.s32 %s15, 2
      %s22 = sadd.s32 %s15, 1
      %s23 = ssub.s32 %s15, %s22
      %p24 = scmp.eq.s32.totalorder %s23, 0
      %s26 = sadd.s32 %s25, 1
      %s27 = scalar_select %p24, %s25, %s26
      %p30 = pneg %p24
      %p31 = scmp.eq.s32.totalorder %s15, 3
      %p32 = por %p30, %p31
      %p33 = scmp.ne.s32.totalorder %s25, %s28
      %p34 = scmp.eq.s32.totalorder %s15, 0
      %p35 = por %p33, %p34
      %p36 = scmp.ne.s32.totalorder %s25, %s28
      %p37 = scmp.eq.s32.totalorder %s20, 3
      %p38 = por %p36, %p37
      %p39 = scmp.ne.s32.totalorder %s28, %s29
      %p40 = scmp.eq.s32.totalorder %s20, 0
      %p41 = por %p39, %p40
      %p42 = scmp.ne.s32.totalorder %s28, %s29
      %p43 = scmp.eq.s32.totalorder %s21, 3
      %p44 = por %p42, %p43
      %p46 = scmp.ne.s32.totalorder %s29, %s45
      %p47 = scmp.eq.s32.totalorder %s21, 0
      %p48 = por %p46, %p47
      %s49 = ssub.s32 %s15, %s22
      %p50 = scmp.eq.s32.totalorder %s49, 0
      %s52 = sadd.s32 %s51, 1
      %s53 = scalar_select %p50, %s51, %s52
      %p56 = pneg %p50
      %p57 = scmp.eq.s32.totalorder %s15, 3
      %p58 = por %p56, %p57
      %p59 = scmp.ne.s32.totalorder %s51, %s54
      %p60 = scmp.eq.s32.totalorder %s15, 0
      %p61 = por %p59, %p60
      %p62 = scmp.ne.s32.totalorder %s51, %s54
      %p63 = scmp.eq.s32.totalorder %s20, 3
      %p64 = por %p62, %p63
      %p65 = scmp.ne.s32.totalorder %s54, %s55
      %p66 = scmp.eq.s32.totalorder %s20, 0
      %p67 = por %p65, %p66
      %p68 = scmp.ne.s32.totalorder %s54, %s55
      %p69 = scmp.eq.s32.totalorder %s21, 3
      %p70 = por %p68, %p69
      %p72 = scmp.ne.s32.totalorder %s55, %s71
      %p73 = scmp.eq.s32.totalorder %s21, 0
      %p74 = por %p72, %p73
      %s75 = ssub.s32 %s15, %s22
      %p76 = scmp.eq.s32.totalorder %s75, 0
      %s78 = sadd.s32 %s77, 1
      %s79 = scalar_select %p76, %s77, %s78
      %p82 = pneg %p76
      %p83 = scmp.eq.s32.totalorder %s15, 3
      %p84 = por %p82, %p83
      %p85 = scmp.ne.s32.totalorder %s77, %s80
      %p86 = scmp.eq.s32.totalorder %s15, 0
      %p87 = por %p85, %p86
      %p88 = scmp.ne.s32.totalorder %s77, %s80
      %p89 = scmp.eq.s32.totalorder %s20, 3
      %p90 = por %p88, %p89
      %p91 = scmp.ne.s32.totalorder %s80, %s81
      %p92 = scmp.eq.s32.totalorder %s20, 0
      %p93 = por %p91, %p92
      %p94 = scmp.ne.s32.totalorder %s80, %s81
      %p95 = scmp.eq.s32.totalorder %s21, 3
      %p96 = por %p94, %p95
      %p98 = scmp.ne.s32.totalorder %s81, %s97
      %p99 = scmp.eq.s32.totalorder %s21, 0
      %p100 = por %p98, %p99
      %s101 = ssub.s32 %s15, %s22
      %p102 = scmp.eq.s32.totalorder %s101, 0
      %s104 = sadd.s32 %s103, 1
      %s105 = scalar_select %p102, %s103, %s104
      %p108 = pneg %p102
      %p109 = scmp.eq.s32.totalorder %s15, 3
      %p110 = por %p108, %p109
      %p111 = scmp.ne.s32.totalorder %s103, %s106
      %p112 = scmp.eq.s32.totalorder %s15, 0
      %p113 = por %p111, %p112
      %p114 = scmp.ne.s32.totalorder %s103, %s106
      %p115 = scmp.eq.s32.totalorder %s20, 3
      %p116 = por %p114, %p115
      %p117 = scmp.ne.s32.totalorder %s106, %s107
      %p118 = scmp.eq.s32.totalorder %s20, 0
      %p119 = por %p117, %p118
      %p120 = scmp.ne.s32.totalorder %s106, %s107
      %p121 = scmp.eq.s32.totalorder %s21, 3
      %p122 = por %p120, %p121
      %p124 = scmp.ne.s32.totalorder %s107, %s123
      %p125 = scmp.eq.s32.totalorder %s21, 0
      %p126 = por %p124, %p125
      %p127 = scmp.le.s32.totalorder 1, %s15
      %p128 = scmp.lt.s32.totalorder %s15, 5
      %p129 = pnand %p127, %p128
      %p130 = pneg %p129
      // Predicated region
      $region9: #{han_forward.4} parent=5 // pred_check
        _
      $region10: #{han_forward.4} parent=5 // pred_check_branch
        %132 = sbr.rel (%p129) target = $region12
      $region11: #{han_forward.4} parent=5 // pred_region
        %s133 = ssub.s32 %s15, 1
      $region12: #{han_forward.4} parent=5 // pred_fallthru
        _
      %p134 = scmp.lt.s32.totalorder %s15, 4
      // Predicated region
      $region13: #{han_forward.4} parent=5 // pred_check
        %p135 = pneg %p134
      $region14: #{han_forward.4} parent=5 // pred_check_branch
        %137 = sbr.rel (%p135) target = $region16
      $region15: #{han_forward.4} parent=5 // pred_region
        // Predicated region
        $region17: #{han_forward.4} parent=15 // pred_check
          %p138 = pneg %p35
        $region18: #{han_forward.4} parent=15 // pred_check_branch
          %140 = sbr.rel (%p138) target = $region20
        $region19: #{han_forward.4} parent=15 // pred_region
          %s141 = sand.u32 %s25, 1
          %s142 = scalar_lea.sflag [#allocation3], %s141
          %s143 = sand.u32 %s25, 1
          %s144 = smul.addr %s143, 16
          %s145 = scalar_lea.vmem [#allocation2], %s144
          %s147 = ssub.s32 256, 256
          %148 = vsyncadd %s142, %s147
          %s149 = smul.addr %s15, 2
          %s150 = smul.addr %s149, 128
          %s151 = scalar_lea.hbm %s0, %s150
          %s152 = sshll.u32 %s145, 4
          %s153 = int_to_ptr.vmem [resolvable:$true] %s152
          %158 = dma.hbm_to_vmem [thread:$0]  %s151, 256, %s153, %s142, 128, 128, 8
        $region20: #{han_forward.4} parent=15 // pred_fallthru
          _
        // Predicated region
        $region21: #{han_forward.4} parent=15 // pred_check
          %p159 = pneg %p61
        $region22: #{han_forward.4} parent=15 // pred_check_branch
          %161 = sbr.rel (%p159) target = $region24
        $region23: #{han_forward.4} parent=15 // pred_region
          %s162 = sand.u32 %s51, 1
          %s163 = scalar_lea.sflag [#allocation5], %s162
          %s164 = sand.u32 %s51, 1
          %s165 = smul.addr %s164, 64
          %s166 = scalar_lea.vmem [#allocation4], %s165
          %s168 = ssub.s32 1024, 1024
          %169 = vsyncadd %s163, %s168
          %s170 = smul.addr %s15, 16
          %s171 = smul.addr %s170, 64
          %s172 = scalar_lea.hbm %s1, %s171
          %s173 = sshll.u32 %s166, 4
          %s174 = int_to_ptr.vmem [resolvable:$true] %s173
          %179 = dma.hbm_to_vmem [thread:$0]  %s172, 1024, %s174, %s163, 64, 64, 4
        $region24: #{han_forward.4} parent=15 // pred_fallthru
          _
        // Predicated region
        $region25: #{han_forward.4} parent=15 // pred_check
          %p180 = pneg %p87
        $region26: #{han_forward.4} parent=15 // pred_check_branch
          %182 = sbr.rel (%p180) target = $region28
        $region27: #{han_forward.4} parent=15 // pred_region
          %p183 = scmp.lt.s32.totalorder %s15, 3
          %s184 = scalar_select %p183, %s15, 3
          %s185 = scalar_lea.vmem %s2, %s184
        $region28: #{han_forward.4} parent=15 // pred_fallthru
          _
      $region16: #{han_forward.4} parent=5 // pred_fallthru
        _
      %p186 = scmp.le.s32.totalorder 1, %s15
      %p187 = scmp.lt.s32.totalorder %s15, 5
      %p188 = pnand %p186, %p187
      %p189 = pneg %p188
      // Predicated region
      $region29: #{han_forward.4} parent=5 // pred_check
        _
      $region30: #{han_forward.4} parent=5 // pred_check_branch
        %191 = sbr.rel (%p188) target = $region32
      $region31: #{han_forward.4} parent=5 // pred_region
        %s192 = ssub.s32 %s15, 1
        %s193 = sand.u32 %s28, 1
        %s194 = scalar_lea.sflag [#allocation3], %s193
        %s195 = sand.u32 %s28, 1
        %s196 = smul.addr %s195, 16
        %s197 = scalar_lea.vmem [#allocation2], %s196
        // Predicated region
        $region33: #{han_forward.4} parent=31 // pred_check
          %p198 = pneg %p41
        $region34: #{han_forward.4} parent=31 // pred_check_branch
          %200 = sbr.rel (%p198) target = $region36
        $region35: #{han_forward.4} parent=31 // pred_region
          %201 = dma.done %s194, 256
        $region36: #{han_forward.4} parent=31 // pred_fallthru
          _
        %s202 = sand.u32 %s54, 1
        %s203 = scalar_lea.sflag [#allocation5], %s202
        %s204 = sand.u32 %s54, 1
        %s205 = smul.addr %s204, 64
        %s206 = scalar_lea.vmem [#allocation4], %s205
        // Predicated region
        $region37: #{han_forward.4} parent=31 // pred_check
          %p207 = pneg %p67
        $region38: #{han_forward.4} parent=31 // pred_check_branch
          %209 = sbr.rel (%p207) target = $region40
        $region39: #{han_forward.4} parent=31 // pred_region
          %210 = dma.done %s203, 1024
        $region40: #{han_forward.4} parent=31 // pred_fallthru
          _
        %s211 = sand.u32 %s28, 1
        %s212 = scalar_lea.sflag [#allocation3], %s211
        %s213 = sand.u32 %s28, 1
        %s214 = smul.addr %s213, 16
        %s215 = scalar_lea.vmem [#allocation2], %s214
        %p216 = pneg %p41
        %p217 = pneg %p38
        %s218 = sand.u32 %s54, 1
        %s219 = scalar_lea.sflag [#allocation5], %s218
        %s220 = sand.u32 %s54, 1
        %s221 = smul.addr %s220, 64
        %s222 = scalar_lea.vmem [#allocation4], %s221
        %p223 = pneg %p67
        %p224 = pneg %p64
        %p225 = scmp.lt.s32.totalorder %s20, 3
        %s226 = scalar_select %p225, %s20, 3
        %s227 = scalar_lea.vmem %s2, %s226
        %p228 = pneg %p93
        %p229 = pneg %p90
        %p230 = pneg %p119
        %p231 = pneg %p116
        %p232 = scmp.lt.s32.totalorder %s20, 3
        %s233 = scalar_select %p232, %s20, 3
        %s234 = smul.addr %s233, 2
        %s235 = smul.addr %s234, 4
        %s236 = scalar_lea.vmem %s3, %s235
        %p237 = scmp.lt.s32.totalorder %s20, 3
        %s238 = scalar_select %p237, %s20, 3
        %s239 = scalar_lea.vmem %s2, %s238
        %p240 = scmp.lt.s32.totalorder %s20, 3
        %s241 = scalar_select %p240, %s20, 3
        %s242 = smul.addr %s241, 2
        %s243 = smul.addr %s242, 4
        %s244 = scalar_lea.vmem %s3, %s243
        %v246 = vld [vmem:[%s197] sm:$0xff]
        %v247 = vld [vmem:[%s197 + $0x8] sm:$0xff]
        %v248 = vpack.c.bf16 %v247, %v246
        %v249 = vld [vmem:[%s206] sm:$0xf]
        %v250 = vld [vmem:[%s206 + $0x4] sm:$0xf]
        %v251 = vld [vmem:[%s206 + $0x8] sm:$0xf]
        %v252 = vld [vmem:[%s206 + $0xc] sm:$0xf]
        %v253 = vld [vmem:[%s206 + $0x10] sm:$0xf]
        %v254 = vld [vmem:[%s206 + $0x14] sm:$0xf]
        %v255 = vld [vmem:[%s206 + $0x18] sm:$0xf]
        %v256 = vld [vmem:[%s206 + $0x1c] sm:$0xf]
        %v257 = vld [vmem:[%s206 + $0x20] sm:$0xf]
        %v258 = vld [vmem:[%s206 + $0x24] sm:$0xf]
        %v259 = vld [vmem:[%s206 + $0x28] sm:$0xf]
        %v260 = vld [vmem:[%s206 + $0x2c] sm:$0xf]
        %v261 = vld [vmem:[%s206 + $0x30] sm:$0xf]
        %v262 = vld [vmem:[%s206 + $0x34] sm:$0xf]
        %v263 = vld [vmem:[%s206 + $0x38] sm:$0xf]
        %v264 = vld [vmem:[%s206 + $0x3c] sm:$0xf]
        %v265 = vld [vmem:[%s239] sm:$0x1]
        %v267 = vlaneseq
        %v268 = vshrl.u32 %v267, 7
        %v269 = vsub.s32 0, %v268
        %v270 = vrot.slane %v265, %v269
        %v288 = vunpack.c.l.b16 %v249
        %v289 = vunpack.c.l.b16 %v250
        %v290 = vunpack.c.l.b16 %v251
        %v291 = vunpack.c.l.b16 %v252
        %v292 = vunpack.c.l.b16 %v253
        %v293 = vunpack.c.l.b16 %v254
        %v294 = vunpack.c.l.b16 %v255
        %v295 = vunpack.c.l.b16 %v256
        %v296 = vunpack.c.l.b16 %v257
        %v297 = vunpack.c.l.b16 %v258
        %v298 = vunpack.c.l.b16 %v259
        %v299 = vunpack.c.l.b16 %v260
        %v300 = vunpack.c.l.b16 %v261
        %v301 = vunpack.c.l.b16 %v262
        %v302 = vunpack.c.l.b16 %v263
        %v303 = vunpack.c.l.b16 %v264
        %v304 = vpack.c.b16 %v289, %v288
        %v305 = vpack.c.b16 %v291, %v290
        %v306 = vpack.c.b16 %v293, %v292
        %v307 = vpack.c.b16 %v295, %v294
        %v308 = vpack.c.b16 %v297, %v296
        %v309 = vpack.c.b16 %v299, %v298
        %v310 = vpack.c.b16 %v301, %v300
        %v311 = vpack.c.b16 %v303, %v302
        %320 = vmatprep.subr.bf16.mxu0 0
        %321 = vmatpush1.bf16.msra.mxu0 %v304
        %322 = vmatprep.subr.bf16.mxu0 0
        %323 = vmatpush1.bf16.msra.mxu0 %v305
        %324 = vmatprep.subr.bf16.mxu0 0
        %325 = vmatpush1.bf16.msra.mxu0 %v306
        %326 = vmatprep.subr.bf16.mxu0 0
        %327 = vmatpush1.bf16.msra.mxu0 %v307
        %328 = vmatprep.subr.bf16.mxu0 0
        %329 = vmatpush1.bf16.msra.mxu0 %v308
        %330 = vmatprep.subr.bf16.mxu0 0
        %331 = vmatpush1.bf16.msra.mxu0 %v309
        %332 = vmatprep.subr.bf16.mxu0 0
        %333 = vmatpush1.bf16.msra.mxu0 %v310
        %334 = vmatprep.subr.bf16.mxu0 0
        %335 = vmatpush1.bf16.msra.mxu0 %v311
        %336 = vmatprep.subr.bf16.mxu0 0
        %337 = vmatpush1.bf16.msra.mxu0 0
        %338 = vmatprep.subr.bf16.mxu0 0
        %339 = vmatpush1.bf16.msra.mxu0 0
        %340 = vmatprep.subr.bf16.mxu0 0
        %341 = vmatpush1.bf16.msra.mxu0 0
        %342 = vmatprep.subr.bf16.mxu0 0
        %343 = vmatpush1.bf16.msra.mxu0 0
        %344 = vmatprep.subr.bf16.mxu0 0
        %345 = vmatpush1.bf16.msra.mxu0 0
        %346 = vmatprep.subr.bf16.mxu0 0
        %347 = vmatpush1.bf16.msra.mxu0 0
        %348 = vmatprep.subr.bf16.mxu0 0
        %349 = vmatpush1.bf16.msra.mxu0 0
        %350 = vmatprep.subr.bf16.mxu0 0
        %351 = vmatpush1.bf16.msra.mxu0 0
        %352 = vmatprep.mubr.bf16.mxu0 0
        %353 = vmatmul.mubr.bf16.gmra.mrb[0].mxu0 %v248
        %v354 = vpop.f32.mrb[0].mxu0
        %v355 = vadd.f32 %v270, %v354
        %v356 = vpop.f32.mrb[0].mxu0
        %v357 = vpop.f32.mrb[0].mxu0
        %v358 = vadd.f32 %v270, %v357
        %v359 = vpop.f32.mrb[0].mxu0
        %360 = vdwg.mxu0
        %v361 = vpack.c.bf16 %v358, %v355
        %v363 = vunpack.c.l.b16 %v361
        %v364 = vunpack.c.h.b16 %v361
        %v365 = vpack.c.b16 %v363, %v363
        %v366 = vpack.c.b16 %v364, %v364
        %369 = vst [vmem:[%s244] sm:$0xf] %v365
        %370 = vst [vmem:[%s244 + $0x4] sm:$0xf] %v366
        %p371 = scmp.lt.s32.totalorder %s20, 3
        %s372 = scalar_select %p371, %s20, 3
        %s373 = smul.addr %s372, 2
        %s374 = smul.addr %s373, 4
        %s375 = scalar_lea.vmem %s3, %s374
        // Predicated region
        $region41: #{han_forward.4} parent=31 // pred_check
          %p376 = pneg %p116
        $region42: #{han_forward.4} parent=31 // pred_check_branch
          %378 = sbr.rel (%p376) target = $region44
        $region43: #{han_forward.4} parent=31 // pred_region
          _
        $region44: #{han_forward.4} parent=31 // pred_fallthru
          _
      $region32: #{han_forward.4} parent=5 // pred_fallthru
        _
      %p379 = scmp.le.s32.totalorder 2, %s15
      // Predicated region
      $region45: #{han_forward.4} parent=5 // pred_check
        %p380 = pneg %p379
      $region46: #{han_forward.4} parent=5 // pred_check_branch
        %382 = sbr.rel (%p380) target = $region48
      $region47: #{han_forward.4} parent=5 // pred_region
        %s383 = ssub.s32 %s15, 2
        // Predicated region
        $region49: #{han_forward.4} parent=47 // pred_check
          %p384 = pneg %p122
        $region50: #{han_forward.4} parent=47 // pred_check_branch
          %386 = sbr.rel (%p384) target = $region52
        $region51: #{han_forward.4} parent=47 // pred_region
          %p387 = scmp.lt.s32.totalorder %s21, 3
          %s388 = scalar_select %p387, %s21, 3
          %s389 = smul.addr %s388, 2
          %s390 = smul.addr %s389, 4
          %s391 = scalar_lea.vmem %s3, %s390
        $region52: #{han_forward.4} parent=47 // pred_fallthru
          _
      $region48: #{han_forward.4} parent=5 // pred_fallthru
        _
    $region6: #{han_forward.4} parent=1 // loop_footer
      %s19 = sadd.s32 1, %s15
    $region7: #{han_forward.4} parent=1 // loop_footer_branch
      %14 = sbr.rel target = $region3
    $region8: #{han_forward.4} parent=1 // loop_exit
      _
    %392 = vsyncpa [#allocation3], 1
    %s393 = scalar_lea.sflag [#allocation3], 1
    %394 = vsyncpa %s393, 1
    %395 = vsyncpa [#allocation5], 1
    %s396 = scalar_lea.sflag [#allocation5], 1
    %397 = vsyncpa %s396, 1

// kernel: han_forward.6
$region0: #{han_forward.6}
  #allocation0 [shape = 'u32[]', space=smem, size = 0x4, offset = 0x4, fixed_abs, tag = 'smem constant byte address 0x4 - core index']
  #allocation1 [shape = 'u32[144,128]{1,0:T(1,128)}', space=vmem, size = 0x12000, scoped, tag = 'internal scratch']
  %s0 = inlined_call_operand.vmem [shape: f32[4,16,128], index: 0, kind: input, shape index: {}]
  %s1 = inlined_call_operand.vmem [shape: bf16[4,128,128], index: 1, kind: input, shape index: {}]
  %s2 = inlined_call_operand.vmem [shape: f32[4,1,128], index: 2, kind: input, shape index: {}]
  %s3 = inlined_call_operand.vmem [shape: bf16[4,16,128], index: 3, kind: output, shape index: {}]
  %s4 = sld [smem:[#allocation0]]
  $region45: #{han_forward.6} parent=0
    _
  %s6 = ssub.s32 1, %s4
  %s7 = scalar_select 0, %s6, %s4
  loop: start=0, step=1, limit=6
  $region2: #{han_forward.6} parent=0 // loop_pre_header
    _
  $region3: #{han_forward.6} parent=0 // loop_header
    %s9 = sphi 0, %s13
    %p10 = scmp.ge.s32.totalorder %s9, 6
    %s19 = sphi 0, %s21
    %s22 = sphi 0, %s19
    %s23 = sphi 0, %s22
    %s39 = sphi 0, %s23
    %s45 = sphi 0, %s47
    %s48 = sphi 0, %s45
    %s49 = sphi 0, %s48
    %s65 = sphi 0, %s49
    %s71 = sphi 0, %s73
    %s74 = sphi 0, %s71
    %s75 = sphi 0, %s74
    %s91 = sphi 0, %s75
    %s97 = sphi 0, %s99
    %s100 = sphi 0, %s97
    %s101 = sphi 0, %s100
    %s117 = sphi 0, %s101
  $region4: #{han_forward.6} parent=0 // loop_header_branch
    %12 = sbr.rel (%p10) target = $region8
  $region5: #{han_forward.6} parent=0 // loop_body
    %s14 = ssub.s32 %s9, 1
    %s15 = ssub.s32 %s9, 2
    %s16 = sadd.s32 %s9, 1
    %s17 = ssub.s32 %s9, %s16
    %p18 = scmp.eq.s32.totalorder %s17, 0
    %s20 = sadd.s32 %s19, 1
    %s21 = scalar_select %p18, %s19, %s20
    %p24 = pneg %p18
    %p25 = scmp.eq.s32.totalorder %s9, 3
    %p26 = por %p24, %p25
    %p27 = scmp.ne.s32.totalorder %s19, %s22
    %p28 = scmp.eq.s32.totalorder %s9, 0
    %p29 = por %p27, %p28
    %p30 = scmp.ne.s32.totalorder %s19, %s22
    %p31 = scmp.eq.s32.totalorder %s14, 3
    %p32 = por %p30, %p31
    %p33 = scmp.ne.s32.totalorder %s22, %s23
    %p34 = scmp.eq.s32.totalorder %s14, 0
    %p35 = por %p33, %p34
    %p36 = scmp.ne.s32.totalorder %s22, %s23
    %p37 = scmp.eq.s32.totalorder %s15, 3
    %p38 = por %p36, %p37
    %p40 = scmp.ne.s32.totalorder %s23, %s39
    %p41 = scmp.eq.s32.totalorder %s15, 0
    %p42 = por %p40, %p41
    %s43 = ssub.s32 %s9, %s16
    %p44 = scmp.eq.s32.totalorder %s43, 0
    %s46 = sadd.s32 %s45, 1
    %s47 = scalar_select %p44, %s45, %s46
    %p50 = pneg %p44
    %p51 = scmp.eq.s32.totalorder %s9, 3
    %p52 = por %p50, %p51
    %p53 = scmp.ne.s32.totalorder %s45, %s48
    %p54 = scmp.eq.s32.totalorder %s9, 0
    %p55 = por %p53, %p54
    %p56 = scmp.ne.s32.totalorder %s45, %s48
    %p57 = scmp.eq.s32.totalorder %s14, 3
    %p58 = por %p56, %p57
    %p59 = scmp.ne.s32.totalorder %s48, %s49
    %p60 = scmp.eq.s32.totalorder %s14, 0
    %p61 = por %p59, %p60
    %p62 = scmp.ne.s32.totalorder %s48, %s49
    %p63 = scmp.eq.s32.totalorder %s15, 3
    %p64 = por %p62, %p63
    %p66 = scmp.ne.s32.totalorder %s49, %s65
    %p67 = scmp.eq.s32.totalorder %s15, 0
    %p68 = por %p66, %p67
    %s69 = ssub.s32 %s9, %s16
    %p70 = scmp.eq.s32.totalorder %s69, 0
    %s72 = sadd.s32 %s71, 1
    %s73 = scalar_select %p70, %s71, %s72
    %p76 = pneg %p70
    %p77 = scmp.eq.s32.totalorder %s9, 3
    %p78 = por %p76, %p77
    %p79 = scmp.ne.s32.totalorder %s71, %s74
    %p80 = scmp.eq.s32.totalorder %s9, 0
    %p81 = por %p79, %p80
    %p82 = scmp.ne.s32.totalorder %s71, %s74
    %p83 = scmp.eq.s32.totalorder %s14, 3
    %p84 = por %p82, %p83
    %p85 = scmp.ne.s32.totalorder %s74, %s75
    %p86 = scmp.eq.s32.totalorder %s14, 0
    %p87 = por %p85, %p86
    %p88 = scmp.ne.s32.totalorder %s74, %s75
    %p89 = scmp.eq.s32.totalorder %s15, 3
    %p90 = por %p88, %p89
    %p92 = scmp.ne.s32.totalorder %s75, %s91
    %p93 = scmp.eq.s32.totalorder %s15, 0
    %p94 = por %p92, %p93
    %s95 = ssub.s32 %s9, %s16
    %p96 = scmp.eq.s32.totalorder %s95, 0
    %s98 = sadd.s32 %s97, 1
    %s99 = scalar_select %p96, %s97, %s98
    %p102 = pneg %p96
    %p103 = scmp.eq.s32.totalorder %s9, 3
    %p104 = por %p102, %p103
    %p105 = scmp.ne.s32.totalorder %s97, %s100
    %p106 = scmp.eq.s32.totalorder %s9, 0
    %p107 = por %p105, %p106
    %p108 = scmp.ne.s32.totalorder %s97, %s100
    %p109 = scmp.eq.s32.totalorder %s14, 3
    %p110 = por %p108, %p109
    %p111 = scmp.ne.s32.totalorder %s100, %s101
    %p112 = scmp.eq.s32.totalorder %s14, 0
    %p113 = por %p111, %p112
    %p114 = scmp.ne.s32.totalorder %s100, %s101
    %p115 = scmp.eq.s32.totalorder %s15, 3
    %p116 = por %p114, %p115
    %p118 = scmp.ne.s32.totalorder %s101, %s117
    %p119 = scmp.eq.s32.totalorder %s15, 0
    %p120 = por %p118, %p119
    %p121 = scmp.le.s32.totalorder 1, %s9
    %p122 = scmp.lt.s32.totalorder %s9, 5
    %p123 = pnand %p121, %p122
    %p124 = pneg %p123
    // Predicated region
    $region9: #{han_forward.6} parent=5 // pred_check
      _
    $region10: #{han_forward.6} parent=5 // pred_check_branch
      %126 = sbr.rel (%p123) target = $region12
    $region11: #{han_forward.6} parent=5 // pred_region
      %s127 = ssub.s32 %s9, 1
    $region12: #{han_forward.6} parent=5 // pred_fallthru
      _
    %p128 = scmp.lt.s32.totalorder %s9, 4
    // Predicated region
    $region13: #{han_forward.6} parent=5 // pred_check
      %p129 = pneg %p128
    $region14: #{han_forward.6} parent=5 // pred_check_branch
      %131 = sbr.rel (%p129) target = $region16
    $region15: #{han_forward.6} parent=5 // pred_region
      // Predicated region
      $region17: #{han_forward.6} parent=15 // pred_check
        %p132 = pneg %p29
      $region18: #{han_forward.6} parent=15 // pred_check_branch
        %134 = sbr.rel (%p132) target = $region20
      $region19: #{han_forward.6} parent=15 // pred_region
        %p135 = scmp.lt.s32.totalorder %s9, 3
        %s136 = scalar_select %p135, %s9, 3
        %s137 = smul.addr %s136, 2
        %s138 = smul.addr %s137, 8
        %s139 = scalar_lea.vmem %s0, %s138
      $region20: #{han_forward.6} parent=15 // pred_fallthru
        _
      // Predicated region
      $region21: #{han_forward.6} parent=15 // pred_check
        %p140 = pneg %p55
      $region22: #{han_forward.6} parent=15 // pred_check_branch
        %142 = sbr.rel (%p140) target = $region24
      $region23: #{han_forward.6} parent=15 // pred_region
        %p143 = scmp.lt.s32.totalorder %s9, 3
        %s144 = scalar_select %p143, %s9, 3
        %s145 = smul.addr %s144, 16
        %s146 = smul.addr %s145, 4
        %s147 = scalar_lea.vmem %s1, %s146
      $region24: #{han_forward.6} parent=15 // pred_fallthru
        _
      // Predicated region
      $region25: #{han_forward.6} parent=15 // pred_check
        %p148 = pneg %p81
      $region26: #{han_forward.6} parent=15 // pred_check_branch
        %150 = sbr.rel (%p148) target = $region28
      $region27: #{han_forward.6} parent=15 // pred_region
        %p151 = scmp.lt.s32.totalorder %s9, 3
        %s152 = scalar_select %p151, %s9, 3
        %s153 = scalar_lea.vmem %s2, %s152
      $region28: #{han_forward.6} parent=15 // pred_fallthru
        _
    $region16: #{han_forward.6} parent=5 // pred_fallthru
      _
    %p154 = scmp.le.s32.totalorder 1, %s9
    %p155 = scmp.lt.s32.totalorder %s9, 5
    %p156 = pnand %p154, %p155
    %p157 = pneg %p156
    // Predicated region
    $region29: #{han_forward.6} parent=5 // pred_check
      _
    $region30: #{han_forward.6} parent=5 // pred_check_branch
      %159 = sbr.rel (%p156) target = $region32
    $region31: #{han_forward.6} parent=5 // pred_region
      %s160 = ssub.s32 %s9, 1
      %p161 = scmp.lt.s32.totalorder %s14, 3
      %s162 = scalar_select %p161, %s14, 3
      %s163 = smul.addr %s162, 2
      %s164 = smul.addr %s163, 8
      %s165 = scalar_lea.vmem %s0, %s164
      %p166 = pneg %p35
      %p167 = pneg %p32
      %p168 = scmp.lt.s32.totalorder %s14, 3
      %s169 = scalar_select %p168, %s14, 3
      %s170 = smul.addr %s169, 16
      %s171 = smul.addr %s170, 4
      %s172 = scalar_lea.vmem %s1, %s171
      %p173 = pneg %p61
      %p174 = pneg %p58
      %p175 = scmp.lt.s32.totalorder %s14, 3
      %s176 = scalar_select %p175, %s14, 3
      %s177 = scalar_lea.vmem %s2, %s176
      %p178 = pneg %p87
      %p179 = pneg %p84
      %p180 = pneg %p113
      %p181 = pneg %p110
      %p182 = scmp.lt.s32.totalorder %s14, 3
      %s183 = scalar_select %p182, %s14, 3
      %s184 = smul.addr %s183, 2
      %s185 = smul.addr %s184, 4
      %s186 = scalar_lea.vmem %s3, %s185
      %p187 = scmp.lt.s32.totalorder %s14, 3
      %s188 = scalar_select %p187, %s14, 3
      %s189 = smul.addr %s188, 2
      %s190 = smul.addr %s189, 8
      %s191 = scalar_lea.vmem %s0, %s190
      %p192 = scmp.lt.s32.totalorder %s14, 3
      %s193 = scalar_select %p192, %s14, 3
      %s194 = smul.addr %s193, 16
      %s195 = smul.addr %s194, 4
      %s196 = scalar_lea.vmem %s1, %s195
      %p197 = scmp.lt.s32.totalorder %s14, 3
      %s198 = scalar_select %p197, %s14, 3
      %s199 = scalar_lea.vmem %s2, %s198
      %p200 = scmp.lt.s32.totalorder %s14, 3
      %s201 = scalar_select %p200, %s14, 3
      %s202 = smul.addr %s201, 2
      %s203 = smul.addr %s202, 4
      %s204 = scalar_lea.vmem %s3, %s203
      %v206 = vld [vmem:[%s191] sm:$0xff]
      %v207 = vld [vmem:[%s191 + $0x8] sm:$0xff]
      %v208 = vpack.c.bf16 %v207, %v206
      %v209 = vld [vmem:[%s196] sm:$0xf]
      %v210 = vld [vmem:[%s196 + $0x4] sm:$0xf]
      %v211 = vld [vmem:[%s196 + $0x8] sm:$0xf]
      %v212 = vld [vmem:[%s196 + $0xc] sm:$0xf]
      %v213 = vld [vmem:[%s196 + $0x10] sm:$0xf]
      %v214 = vld [vmem:[%s196 + $0x14] sm:$0xf]
      %v215 = vld [vmem:[%s196 + $0x18] sm:$0xf]
      %v216 = vld [vmem:[%s196 + $0x1c] sm:$0xf]
      %v217 = vld [vmem:[%s196 + $0x20] sm:$0xf]
      %v218 = vld [vmem:[%s196 + $0x24] sm:$0xf]
      %v219 = vld [vmem:[%s196 + $0x28] sm:$0xf]
      %v220 = vld [vmem:[%s196 + $0x2c] sm:$0xf]
      %v221 = vld [vmem:[%s196 + $0x30] sm:$0xf]
      %v222 = vld [vmem:[%s196 + $0x34] sm:$0xf]
      %v223 = vld [vmem:[%s196 + $0x38] sm:$0xf]
      %v224 = vld [vmem:[%s196 + $0x3c] sm:$0xf]
      %v225 = vld [vmem:[%s199] sm:$0x1]
      %v227 = vlaneseq
      %v228 = vshrl.u32 %v227, 7
      %v229 = vsub.s32 0, %v228
      %v230 = vrot.slane %v225, %v229
      %v248 = vunpack.c.l.b16 %v209
      %v249 = vunpack.c.l.b16 %v210
      %v250 = vunpack.c.l.b16 %v211
      %v251 = vunpack.c.l.b16 %v212
      %v252 = vunpack.c.l.b16 %v213
      %v253 = vunpack.c.l.b16 %v214
      %v254 = vunpack.c.l.b16 %v215
      %v255 = vunpack.c.l.b16 %v216
      %v256 = vunpack.c.l.b16 %v217
      %v257 = vunpack.c.l.b16 %v218
      %v258 = vunpack.c.l.b16 %v219
      %v259 = vunpack.c.l.b16 %v220
      %v260 = vunpack.c.l.b16 %v221
      %v261 = vunpack.c.l.b16 %v222
      %v262 = vunpack.c.l.b16 %v223
      %v263 = vunpack.c.l.b16 %v224
      %v264 = vpack.c.b16 %v249, %v248
      %v265 = vpack.c.b16 %v251, %v250
      %v266 = vpack.c.b16 %v253, %v252
      %v267 = vpack.c.b16 %v255, %v254
      %v268 = vpack.c.b16 %v257, %v256
      %v269 = vpack.c.b16 %v259, %v258
      %v270 = vpack.c.b16 %v261, %v260
      %v271 = vpack.c.b16 %v263, %v262
      %280 = vmatprep.subr.bf16.mxu0 0
      %281 = vmatpush1.bf16.msra.mxu0 %v264
      %282 = vmatprep.subr.bf16.mxu0 0
      %283 = vmatpush1.bf16.msra.mxu0 %v265
      %284 = vmatprep.subr.bf16.mxu0 0
      %285 = vmatpush1.bf16.msra.mxu0 %v266
      %286 = vmatprep.subr.bf16.mxu0 0
      %287 = vmatpush1.bf16.msra.mxu0 %v267
      %288 = vmatprep.subr.bf16.mxu0 0
      %289 = vmatpush1.bf16.msra.mxu0 %v268
      %290 = vmatprep.subr.bf16.mxu0 0
      %291 = vmatpush1.bf16.msra.mxu0 %v269
      %292 = vmatprep.subr.bf16.mxu0 0
      %293 = vmatpush1.bf16.msra.mxu0 %v270
      %294 = vmatprep.subr.bf16.mxu0 0
      %295 = vmatpush1.bf16.msra.mxu0 %v271
      %296 = vmatprep.subr.bf16.mxu0 0
      %297 = vmatpush1.bf16.msra.mxu0 0
      %298 = vmatprep.subr.bf16.mxu0 0
      %299 = vmatpush1.bf16.msra.mxu0 0
      %300 = vmatprep.subr.bf16.mxu0 0
      %301 = vmatpush1.bf16.msra.mxu0 0
      %302 = vmatprep.subr.bf16.mxu0 0
      %303 = vmatpush1.bf16.msra.mxu0 0
      %304 = vmatprep.subr.bf16.mxu0 0
      %305 = vmatpush1.bf16.msra.mxu0 0
      %306 = vmatprep.subr.bf16.mxu0 0
      %307 = vmatpush1.bf16.msra.mxu0 0
      %308 = vmatprep.subr.bf16.mxu0 0
      %309 = vmatpush1.bf16.msra.mxu0 0
      %310 = vmatprep.subr.bf16.mxu0 0
      %311 = vmatpush1.bf16.msra.mxu0 0
      %312 = vmatprep.mubr.bf16.mxu0 0
      %313 = vmatmul.mubr.bf16.gmra.mrb[0].mxu0 %v208
      %v314 = vpop.f32.mrb[0].mxu0
      %v315 = vadd.f32 %v230, %v314
      %v316 = vpop.f32.mrb[0].mxu0
      %v317 = vpop.f32.mrb[0].mxu0
      %v318 = vadd.f32 %v230, %v317
      %v319 = vpop.f32.mrb[0].mxu0
      %320 = vdwg.mxu0
      %v321 = vpack.c.bf16 %v318, %v315
      %v323 = vunpack.c.l.b16 %v321
      %v324 = vunpack.c.h.b16 %v321
      %v325 = vpack.c.b16 %v323, %v323
      %v326 = vpack.c.b16 %v324, %v324
      %329 = vst [vmem:[%s204] sm:$0xf] %v325
      %330 = vst [vmem:[%s204 + $0x4] sm:$0xf] %v326
      %p331 = scmp.lt.s32.totalorder %s14, 3
      %s332 = scalar_select %p331, %s14, 3
      %s333 = smul.addr %s332, 2
      %s334 = smul.addr %s333, 4
      %s335 = scalar_lea.vmem %s3, %s334
      // Predicated region
      $region33: #{han_forward.6} parent=31 // pred_check
        %p336 = pneg %p110
      $region34: #{han_forward.6} parent=31 // pred_check_branch
        %338 = sbr.rel (%p336) target = $region36
      $region35: #{han_forward.6} parent=31 // pred_region
        _
      $region36: #{han_forward.6} parent=31 // pred_fallthru
        _
    $region32: #{han_forward.6} parent=5 // pred_fallthru
      _
    %p339 = scmp.le.s32.totalorder 2, %s9
    // Predicated region
    $region37: #{han_forward.6} parent=5 // pred_check
      %p340 = pneg %p339
    $region38: #{han_forward.6} parent=5 // pred_check_branch
      %342 = sbr.rel (%p340) target = $region40
    $region39: #{han_forward.6} parent=5 // pred_region
      %s343 = ssub.s32 %s9, 2
      // Predicated region
      $region41: #{han_forward.6} parent=39 // pred_check
        %p344 = pneg %p116
      $region42: #{han_forward.6} parent=39 // pred_check_branch
        %346 = sbr.rel (%p344) target = $region44
      $region43: #{han_forward.6} parent=39 // pred_region
        %p347 = scmp.lt.s32.totalorder %s15, 3
        %s348 = scalar_select %p347, %s15, 3
        %s349 = smul.addr %s348, 2
        %s350 = smul.addr %s349, 4
        %s351 = scalar_lea.vmem %s3, %s350
      $region44: #{han_forward.6} parent=39 // pred_fallthru
        _
    $region40: #{han_forward.6} parent=5 // pred_fallthru
      _
  $region6: #{han_forward.6} parent=0 // loop_footer
    %s13 = sadd.s32 1, %s9
  $region7: #{han_forward.6} parent=0 // loop_footer_branch
    %8 = sbr.rel target = $region3
  $region8: #{han_forward.6} parent=0 // loop_exit
    _

// kernel: han_forward.5
$region0: #{han_forward.5}
  #allocation0 [shape = 'u32[]', space=smem, size = 0x4, offset = 0x4, fixed_abs, tag = 'smem constant byte address 0x4 - core index']
  #allocation1 [shape = 'u32[144,128]{1,0:T(1,128)}', space=vmem, size = 0x12000, scoped, tag = 'internal scratch']
  #allocation2 [shape = 's32[1]{0}', space=sflag, size = 0x4, scoped, tag = 'scoped memory for han_forward.5']
  #allocation3 [shape = 'u8[4096]{0}', space=smem, size = 0x1000, scoped, tag = 'prefetched SMEM operand 0']
  %s0 = inlined_call_operand.vmem [shape: s32[6,2], index: 0, kind: input, shape index: {}]
  %s1 = inlined_call_operand.vmem [shape: bf16[4,16,128], index: 1, kind: input, shape index: {}, may-alias: {1,3}]
  %s2 = inlined_call_operand.vmem [shape: bf16[4,128,16], index: 2, kind: input, shape index: {}]
  %s3 = inlined_call_operand.vmem [shape: bf16[4,16,128], index: 3, kind: input, shape index: {}, may-alias: {1,3}]
  %s4 = inlined_call_operand.vmem [shape: bf16[6,2,128], index: 4, kind: input, shape index: {}]
  %s5 = inlined_call_operand.vmem [shape: bf16[6,128,2], index: 5, kind: input, shape index: {}]
  %s6 = inlined_call_operand.vmem [shape: bf16[6,16,16], index: 6, kind: input, shape index: {}]
  %s7 = inlined_call_operand.vmem [shape: f32[6,16,1], index: 7, kind: input, shape index: {}]
  %s8 = inlined_call_operand.vmem [shape: bf16[128,128], index: 8, kind: input, shape index: {}]
  %s9 = inlined_call_operand.vmem [shape: f32[1,128], index: 9, kind: input, shape index: {}]
  %s10 = inlined_call_operand.vmem [shape: f32[6,16,128], index: 10, kind: output, shape index: {0}]
  %s11 = inlined_call_operand.vmem [shape: f32[6,1,128], index: 11, kind: output, shape index: {1}]
  %12 = xla_tuple %s10, %s11
  %s13 = sld [smem:[#allocation0]]
  $region77: #{han_forward.5} parent=0
    _
  %s15 = ssub.s32 1, %s13
  %s16 = scalar_select 0, %s15, %s13
  %s17 = sshll.u32 %s0, 4
  %s18 = int_to_ptr.vmem [resolvable:$true] %s17
  %20 = dma.vmem_to_smem %s18, 128, [#allocation3], [#allocation2]
  %21 = dma.done [#allocation2], 128
  %22 = sfence
  loop: start=0, step=1, limit=8
  $region2: #{han_forward.5} parent=0 // loop_pre_header
    _
  $region3: #{han_forward.5} parent=0 // loop_header
    %s24 = sphi 0, %s28
    %p25 = scmp.ge.s32.totalorder %s24, 8
    %s38 = sphi 0, %s40
    %s41 = sphi 0, %s38
    %s42 = sphi 0, %s41
    %s58 = sphi 0, %s42
    %s68 = sphi 0, %s70
    %s71 = sphi 0, %s68
    %s72 = sphi 0, %s71
    %s88 = sphi 0, %s72
    %s100 = sphi 0, %s102
    %s103 = sphi 0, %s100
    %s104 = sphi 0, %s103
    %s120 = sphi 0, %s104
    %s126 = sphi 0, %s128
    %s129 = sphi 0, %s126
    %s130 = sphi 0, %s129
    %s146 = sphi 0, %s130
    %s152 = sphi 0, %s154
    %s155 = sphi 0, %s152
    %s156 = sphi 0, %s155
    %s172 = sphi 0, %s156
    %s178 = sphi 0, %s180
    %s181 = sphi 0, %s178
    %s182 = sphi 0, %s181
    %s198 = sphi 0, %s182
    %s204 = sphi 0, %s206
    %s207 = sphi 0, %s204
    %s208 = sphi 0, %s207
    %s224 = sphi 0, %s208
    %s228 = sphi 0, %s228
    %s230 = sphi 0, %s228
    %s231 = sphi 0, %s230
    %s245 = sphi 0, %s231
    %s249 = sphi 0, %s249
    %s251 = sphi 0, %s249
    %s252 = sphi 0, %s251
    %s266 = sphi 0, %s252
    %s272 = sphi 0, %s274
    %s275 = sphi 0, %s272
    %s276 = sphi 0, %s275
    %s292 = sphi 0, %s276
    %s298 = sphi 0, %s300
    %s301 = sphi 0, %s298
    %s302 = sphi 0, %s301
    %s318 = sphi 0, %s302
  $region4: #{han_forward.5} parent=0 // loop_header_branch
    %27 = sbr.rel (%p25) target = $region8
  $region5: #{han_forward.5} parent=0 // loop_body
    %s29 = ssub.s32 %s24, 1
    %s30 = ssub.s32 %s24, 2
    %s31 = sadd.s32 %s24, 1
    %s32 = smul.u32 %s24, 128
    %s33 = sld [smem:[#allocation3 + %s32]]
    %s34 = smul.u32 %s31, 128
    %s35 = sld [smem:[#allocation3 + %s34]]
    %s36 = ssub.s32 %s33, %s35
    %p37 = scmp.eq.s32.totalorder %s36, 0
    %s39 = sadd.s32 %s38, 1
    %s40 = scalar_select %p37, %s38, %s39
    %p43 = pneg %p37
    %p44 = scmp.eq.s32.totalorder %s24, 5
    %p45 = por %p43, %p44
    %p46 = scmp.ne.s32.totalorder %s38, %s41
    %p47 = scmp.eq.s32.totalorder %s24, 0
    %p48 = por %p46, %p47
    %p49 = scmp.ne.s32.totalorder %s38, %s41
    %p50 = scmp.eq.s32.totalorder %s29, 5
    %p51 = por %p49, %p50
    %p52 = scmp.ne.s32.totalorder %s41, %s42
    %p53 = scmp.eq.s32.totalorder %s29, 0
    %p54 = por %p52, %p53
    %p55 = scmp.ne.s32.totalorder %s41, %s42
    %p56 = scmp.eq.s32.totalorder %s30, 5
    %p57 = por %p55, %p56
    %p59 = scmp.ne.s32.totalorder %s42, %s58
    %p60 = scmp.eq.s32.totalorder %s30, 0
    %p61 = por %p59, %p60
    %s62 = smul.u32 %s24, 128
    %s63 = sld [smem:[#allocation3 + %s62]]
    %s64 = smul.u32 %s31, 128
    %s65 = sld [smem:[#allocation3 + %s64]]
    %s66 = ssub.s32 %s63, %s65
    %p67 = scmp.eq.s32.totalorder %s66, 0
    %s69 = sadd.s32 %s68, 1
    %s70 = scalar_select %p67, %s68, %s69
    %p73 = pneg %p67
    %p74 = scmp.eq.s32.totalorder %s24, 5
    %p75 = por %p73, %p74
    %p76 = scmp.ne.s32.totalorder %s68, %s71
    %p77 = scmp.eq.s32.totalorder %s24, 0
    %p78 = por %p76, %p77
    %p79 = scmp.ne.s32.totalorder %s68, %s71
    %p80 = scmp.eq.s32.totalorder %s29, 5
    %p81 = por %p79, %p80
    %p82 = scmp.ne.s32.totalorder %s71, %s72
    %p83 = scmp.eq.s32.totalorder %s29, 0
    %p84 = por %p82, %p83
    %p85 = scmp.ne.s32.totalorder %s71, %s72
    %p86 = scmp.eq.s32.totalorder %s30, 5
    %p87 = por %p85, %p86
    %p89 = scmp.ne.s32.totalorder %s72, %s88
    %p90 = scmp.eq.s32.totalorder %s30, 0
    %p91 = por %p89, %p90
    %s92 = smul.u32 %s24, 128
    %s93 = sadd.s32 %s92, 1
    %s94 = sld [smem:[#allocation3 + %s93]]
    %s95 = smul.u32 %s31, 128
    %s96 = sadd.s32 %s95, 1
    %s97 = sld [smem:[#allocation3 + %s96]]
    %s98 = ssub.s32 %s94, %s97
    %p99 = scmp.eq.s32.totalorder %s98, 0
    %s101 = sadd.s32 %s100, 1
    %s102 = scalar_select %p99, %s100, %s101
    %p105 = pneg %p99
    %p106 = scmp.eq.s32.totalorder %s24, 5
    %p107 = por %p105, %p106
    %p108 = scmp.ne.s32.totalorder %s100, %s103
    %p109 = scmp.eq.s32.totalorder %s24, 0
    %p110 = por %p108, %p109
    %p111 = scmp.ne.s32.totalorder %s100, %s103
    %p112 = scmp.eq.s32.totalorder %s29, 5
    %p113 = por %p111, %p112
    %p114 = scmp.ne.s32.totalorder %s103, %s104
    %p115 = scmp.eq.s32.totalorder %s29, 0
    %p116 = por %p114, %p115
    %p117 = scmp.ne.s32.totalorder %s103, %s104
    %p118 = scmp.eq.s32.totalorder %s30, 5
    %p119 = por %p117, %p118
    %p121 = scmp.ne.s32.totalorder %s104, %s120
    %p122 = scmp.eq.s32.totalorder %s30, 0
    %p123 = por %p121, %p122
    %s124 = ssub.s32 %s24, %s31
    %p125 = scmp.eq.s32.totalorder %s124, 0
    %s127 = sadd.s32 %s126, 1
    %s128 = scalar_select %p125, %s126, %s127
    %p131 = pneg %p125
    %p132 = scmp.eq.s32.totalorder %s24, 5
    %p133 = por %p131, %p132
    %p134 = scmp.ne.s32.totalorder %s126, %s129
    %p135 = scmp.eq.s32.totalorder %s24, 0
    %p136 = por %p134, %p135
    %p137 = scmp.ne.s32.totalorder %s126, %s129
    %p138 = scmp.eq.s32.totalorder %s29, 5
    %p139 = por %p137, %p138
    %p140 = scmp.ne.s32.totalorder %s129, %s130
    %p141 = scmp.eq.s32.totalorder %s29, 0
    %p142 = por %p140, %p141
    %p143 = scmp.ne.s32.totalorder %s129, %s130
    %p144 = scmp.eq.s32.totalorder %s30, 5
    %p145 = por %p143, %p144
    %p147 = scmp.ne.s32.totalorder %s130, %s146
    %p148 = scmp.eq.s32.totalorder %s30, 0
    %p149 = por %p147, %p148
    %s150 = ssub.s32 %s24, %s31
    %p151 = scmp.eq.s32.totalorder %s150, 0
    %s153 = sadd.s32 %s152, 1
    %s154 = scalar_select %p151, %s152, %s153
    %p157 = pneg %p151
    %p158 = scmp.eq.s32.totalorder %s24, 5
    %p159 = por %p157, %p158
    %p160 = scmp.ne.s32.totalorder %s152, %s155
    %p161 = scmp.eq.s32.totalorder %s24, 0
    %p162 = por %p160, %p161
    %p163 = scmp.ne.s32.totalorder %s152, %s155
    %p164 = scmp.eq.s32.totalorder %s29, 5
    %p165 = por %p163, %p164
    %p166 = scmp.ne.s32.totalorder %s155, %s156
    %p167 = scmp.eq.s32.totalorder %s29, 0
    %p168 = por %p166, %p167
    %p169 = scmp.ne.s32.totalorder %s155, %s156
    %p170 = scmp.eq.s32.totalorder %s30, 5
    %p171 = por %p169, %p170
    %p173 = scmp.ne.s32.totalorder %s156, %s172
    %p174 = scmp.eq.s32.totalorder %s30, 0
    %p175 = por %p173, %p174
    %s176 = ssub.s32 %s24, %s31
    %p177 = scmp.eq.s32.totalorder %s176, 0
    %s179 = sadd.s32 %s178, 1
    %s180 = scalar_select %p177, %s178, %s179
    %p183 = pneg %p177
    %p184 = scmp.eq.s32.totalorder %s24, 5
    %p185 = por %p183, %p184
    %p186 = scmp.ne.s32.totalorder %s178, %s181
    %p187 = scmp.eq.s32.totalorder %s24, 0
    %p188 = por %p186, %p187
    %p189 = scmp.ne.s32.totalorder %s178, %s181
    %p190 = scmp.eq.s32.totalorder %s29, 5
    %p191 = por %p189, %p190
    %p192 = scmp.ne.s32.totalorder %s181, %s182
    %p193 = scmp.eq.s32.totalorder %s29, 0
    %p194 = por %p192, %p193
    %p195 = scmp.ne.s32.totalorder %s181, %s182
    %p196 = scmp.eq.s32.totalorder %s30, 5
    %p197 = por %p195, %p196
    %p199 = scmp.ne.s32.totalorder %s182, %s198
    %p200 = scmp.eq.s32.totalorder %s30, 0
    %p201 = por %p199, %p200
    %s202 = ssub.s32 %s24, %s31
    %p203 = scmp.eq.s32.totalorder %s202, 0
    %s205 = sadd.s32 %s204, 1
    %s206 = scalar_select %p203, %s204, %s205
    %p209 = pneg %p203
    %p210 = scmp.eq.s32.totalorder %s24, 5
    %p211 = por %p209, %p210
    %p212 = scmp.ne.s32.totalorder %s204, %s207
    %p213 = scmp.eq.s32.totalorder %s24, 0
    %p214 = por %p212, %p213
    %p215 = scmp.ne.s32.totalorder %s204, %s207
    %p216 = scmp.eq.s32.totalorder %s29, 5
    %p217 = por %p215, %p216
    %p218 = scmp.ne.s32.totalorder %s207, %s208
    %p219 = scmp.eq.s32.totalorder %s29, 0
    %p220 = por %p218, %p219
    %p221 = scmp.ne.s32.totalorder %s207, %s208
    %p222 = scmp.eq.s32.totalorder %s30, 5
    %p223 = por %p221, %p222
    %p225 = scmp.ne.s32.totalorder %s208, %s224
    %p226 = scmp.eq.s32.totalorder %s30, 0
    %p227 = por %p225, %p226
    %s229 = sadd.s32 %s228, 1
    %p232 = scmp.eq.s32.totalorder %s24, 5
    %p233 = scmp.ne.s32.totalorder %s228, %s230
    %p234 = scmp.eq.s32.totalorder %s24, 0
    %p235 = por %p233, %p234
    %p236 = scmp.ne.s32.totalorder %s228, %s230
    %p237 = scmp.eq.s32.totalorder %s29, 5
    %p238 = por %p236, %p237
    %p239 = scmp.ne.s32.totalorder %s230, %s231
    %p240 = scmp.eq.s32.totalorder %s29, 0
    %p241 = por %p239, %p240
    %p242 = scmp.ne.s32.totalorder %s230, %s231
    %p243 = scmp.eq.s32.totalorder %s30, 5
    %p244 = por %p242, %p243
    %p246 = scmp.ne.s32.totalorder %s231, %s245
    %p247 = scmp.eq.s32.totalorder %s30, 0
    %p248 = por %p246, %p247
    %s250 = sadd.s32 %s249, 1
    %p253 = scmp.eq.s32.totalorder %s24, 5
    %p254 = scmp.ne.s32.totalorder %s249, %s251
    %p255 = scmp.eq.s32.totalorder %s24, 0
    %p256 = por %p254, %p255
    %p257 = scmp.ne.s32.totalorder %s249, %s251
    %p258 = scmp.eq.s32.totalorder %s29, 5
    %p259 = por %p257, %p258
    %p260 = scmp.ne.s32.totalorder %s251, %s252
    %p261 = scmp.eq.s32.totalorder %s29, 0
    %p262 = por %p260, %p261
    %p263 = scmp.ne.s32.totalorder %s251, %s252
    %p264 = scmp.eq.s32.totalorder %s30, 5
    %p265 = por %p263, %p264
    %p267 = scmp.ne.s32.totalorder %s252, %s266
    %p268 = scmp.eq.s32.totalorder %s30, 0
    %p269 = por %p267, %p268
    %s270 = ssub.s32 %s24, %s31
    %p271 = scmp.eq.s32.totalorder %s270, 0
    %s273 = sadd.s32 %s272, 1
    %s274 = scalar_select %p271, %s272, %s273
    %p277 = pneg %p271
    %p278 = scmp.eq.s32.totalorder %s24, 5
    %p279 = por %p277, %p278
    %p280 = scmp.ne.s32.totalorder %s272, %s275
    %p281 = scmp.eq.s32.totalorder %s24, 0
    %p282 = por %p280, %p281
    %p283 = scmp.ne.s32.totalorder %s272, %s275
    %p284 = scmp.eq.s32.totalorder %s29, 5
    %p285 = por %p283, %p284
    %p286 = scmp.ne.s32.totalorder %s275, %s276
    %p287 = scmp.eq.s32.totalorder %s29, 0
    %p288 = por %p286, %p287
    %p289 = scmp.ne.s32.totalorder %s275, %s276
    %p290 = scmp.eq.s32.totalorder %s30, 5
    %p291 = por %p289, %p290
    %p293 = scmp.ne.s32.totalorder %s276, %s292
    %p294 = scmp.eq.s32.totalorder %s30, 0
    %p295 = por %p293, %p294
    %s296 = ssub.s32 %s24, %s31
    %p297 = scmp.eq.s32.totalorder %s296, 0
    %s299 = sadd.s32 %s298, 1
    %s300 = scalar_select %p297, %s298, %s299
    %p303 = pneg %p297
    %p304 = scmp.eq.s32.totalorder %s24, 5
    %p305 = por %p303, %p304
    %p306 = scmp.ne.s32.totalorder %s298, %s301
    %p307 = scmp.eq.s32.totalorder %s24, 0
    %p308 = por %p306, %p307
    %p309 = scmp.ne.s32.totalorder %s298, %s301
    %p310 = scmp.eq.s32.totalorder %s29, 5
    %p311 = por %p309, %p310
    %p312 = scmp.ne.s32.totalorder %s301, %s302
    %p313 = scmp.eq.s32.totalorder %s29, 0
    %p314 = por %p312, %p313
    %p315 = scmp.ne.s32.totalorder %s301, %s302
    %p316 = scmp.eq.s32.totalorder %s30, 5
    %p317 = por %p315, %p316
    %p319 = scmp.ne.s32.totalorder %s302, %s318
    %p320 = scmp.eq.s32.totalorder %s30, 0
    %p321 = por %p319, %p320
    %p322 = scmp.le.s32.totalorder 1, %s24
    %p323 = scmp.lt.s32.totalorder %s24, 7
    %p324 = pnand %p322, %p323
    %p325 = pneg %p324
    // Predicated region
    $region9: #{han_forward.5} parent=5 // pred_check
      _
    $region10: #{han_forward.5} parent=5 // pred_check_branch
      %327 = sbr.rel (%p324) target = $region12
    $region11: #{han_forward.5} parent=5 // pred_region
      %s328 = ssub.s32 %s24, 1
      // Predicated region
      $region13: #{han_forward.5} parent=11 // pred_check
        %p329 = pneg %p241
      $region14: #{han_forward.5} parent=11 // pred_check_branch
        %331 = sbr.rel (%p329) target = $region16
      $region15: #{han_forward.5} parent=11 // pred_region
        _
      $region16: #{han_forward.5} parent=11 // pred_fallthru
        _
      // Predicated region
      $region17: #{han_forward.5} parent=11 // pred_check
        %p332 = pneg %p262
      $region18: #{han_forward.5} parent=11 // pred_check_branch
        %334 = sbr.rel (%p332) target = $region20
      $region19: #{han_forward.5} parent=11 // pred_region
        _
      $region20: #{han_forward.5} parent=11 // pred_fallthru
        _
    $region12: #{han_forward.5} parent=5 // pred_fallthru
      _
    %p335 = scmp.lt.s32.totalorder %s24, 6
    // Predicated region
    $region21: #{han_forward.5} parent=5 // pred_check
      %p336 = pneg %p335
    $region22: #{han_forward.5} parent=5 // pred_check_branch
      %338 = sbr.rel (%p336) target = $region24
    $region23: #{han_forward.5} parent=5 // pred_region
      // Predicated region
      $region25: #{han_forward.5} parent=23 // pred_check
        %p339 = pneg %p48
      $region26: #{han_forward.5} parent=23 // pred_check_branch
        %341 = sbr.rel (%p339) target = $region28
      $region27: #{han_forward.5} parent=23 // pred_region
        %s342 = smul.u32 %s24, 128
        %s343 = sld [smem:[#allocation3 + %s342]]
        %p344 = scmp.lt.s32.totalorder %s343, 3
        %s345 = scalar_select %p344, %s343, 3
        %s346 = smul.addr %s345, 2
        %s347 = smul.addr %s346, 4
        %s348 = scalar_lea.vmem %s1, %s347
        %s349 = smul.u32 %s24, 128
        %s350 = sld [smem:[#allocation3 + %s349]]
      $region28: #{han_forward.5} parent=23 // pred_fallthru
        _
      // Predicated region
      $region29: #{han_forward.5} parent=23 // pred_check
        %p351 = pneg %p78
      $region30: #{han_forward.5} parent=23 // pred_check_branch
        %353 = sbr.rel (%p351) target = $region32
      $region31: #{han_forward.5} parent=23 // pred_region
        %s354 = smul.u32 %s24, 128
        %s355 = sld [smem:[#allocation3 + %s354]]
        %p356 = scmp.lt.s32.totalorder %s355, 3
        %s357 = scalar_select %p356, %s355, 3
        %s358 = smul.addr %s357, 16
        %s359 = smul.addr %s358, 4
        %s360 = scalar_lea.vmem %s2, %s359
        %s361 = smul.u32 %s24, 128
        %s362 = sld [smem:[#allocation3 + %s361]]
      $region32: #{han_forward.5} parent=23 // pred_fallthru
        _
      // Predicated region
      $region33: #{han_forward.5} parent=23 // pred_check
        %p363 = pneg %p110
      $region34: #{han_forward.5} parent=23 // pred_check_branch
        %365 = sbr.rel (%p363) target = $region36
      $region35: #{han_forward.5} parent=23 // pred_region
        %s366 = smul.u32 %s24, 128
        %s367 = sadd.s32 %s366, 1
        %s368 = sld [smem:[#allocation3 + %s367]]
        %p369 = scmp.lt.s32.totalorder %s368, 3
        %s370 = scalar_select %p369, %s368, 3
        %s371 = smul.addr %s370, 2
        %s372 = smul.addr %s371, 4
        %s373 = scalar_lea.vmem %s3, %s372
        %s374 = smul.u32 %s24, 128
        %s375 = sadd.s32 %s374, 1
        %s376 = sld [smem:[#allocation3 + %s375]]
      $region36: #{han_forward.5} parent=23 // pred_fallthru
        _
      // Predicated region
      $region37: #{han_forward.5} parent=23 // pred_check
        %p377 = pneg %p136
      $region38: #{han_forward.5} parent=23 // pred_check_branch
        %379 = sbr.rel (%p377) target = $region40
      $region39: #{han_forward.5} parent=23 // pred_region
        %p380 = scmp.lt.s32.totalorder %s24, 5
        %s381 = scalar_select %p380, %s24, 5
        %s382 = scalar_lea.vmem %s4, %s381
      $region40: #{han_forward.5} parent=23 // pred_fallthru
        _
      // Predicated region
      $region41: #{han_forward.5} parent=23 // pred_check
        %p383 = pneg %p162
      $region42: #{han_forward.5} parent=23 // pred_check_branch
        %385 = sbr.rel (%p383) target = $region44
      $region43: #{han_forward.5} parent=23 // pred_region
        %p386 = scmp.lt.s32.totalorder %s24, 5
        %s387 = scalar_select %p386, %s24, 5
        %s388 = smul.addr %s387, 16
        %s389 = smul.addr %s388, 4
        %s390 = scalar_lea.vmem %s5, %s389
      $region44: #{han_forward.5} parent=23 // pred_fallthru
        _
      // Predicated region
      $region45: #{han_forward.5} parent=23 // pred_check
        %p391 = pneg %p188
      $region46: #{han_forward.5} parent=23 // pred_check_branch
        %393 = sbr.rel (%p391) target = $region48
      $region47: #{han_forward.5} parent=23 // pred_region
        %p394 = scmp.lt.s32.totalorder %s24, 5
        %s395 = scalar_select %p394, %s24, 5
        %s396 = smul.addr %s395, 2
        %s397 = smul.addr %s396, 4
        %s398 = scalar_lea.vmem %s6, %s397
      $region48: #{han_forward.5} parent=23 // pred_fallthru
        _
      // Predicated region
      $region49: #{han_forward.5} parent=23 // pred_check
        %p399 = pneg %p214
      $region50: #{han_forward.5} parent=23 // pred_check_branch
        %401 = sbr.rel (%p399) target = $region52
      $region51: #{han_forward.5} parent=23 // pred_region
        %p402 = scmp.lt.s32.totalorder %s24, 5
        %s403 = scalar_select %p402, %s24, 5
        %s404 = smul.addr %s403, 2
        %s405 = smul.addr %s404, 8
        %s406 = scalar_lea.vmem %s7, %s405
      $region52: #{han_forward.5} parent=23 // pred_fallthru
        _
    $region24: #{han_forward.5} parent=5 // pred_fallthru
      _
    %p407 = scmp.le.s32.totalorder 1, %s24
    %p408 = scmp.lt.s32.totalorder %s24, 7
    %p409 = pnand %p407, %p408
    %p410 = pneg %p409
    // Predicated region
    $region53: #{han_forward.5} parent=5 // pred_check
      _
    $region54: #{han_forward.5} parent=5 // pred_check_branch
      %412 = sbr.rel (%p409) target = $region56
    $region55: #{han_forward.5} parent=5 // pred_region
      %s413 = ssub.s32 %s24, 1
      %s414 = smul.u32 %s29, 128
      %s415 = sld [smem:[#allocation3 + %s414]]
      %p416 = scmp.lt.s32.totalorder %s415, 3
      %s417 = scalar_select %p416, %s415, 3
      %s418 = smul.addr %s417, 2
      %s419 = smul.addr %s418, 4
      %s420 = scalar_lea.vmem %s1, %s419
      %p421 = pneg %p54
      %p422 = pneg %p51
      %s423 = smul.u32 %s29, 128
      %s424 = sld [smem:[#allocation3 + %s423]]
      %p425 = scmp.lt.s32.totalorder %s424, 3
      %s426 = scalar_select %p425, %s424, 3
      %s427 = smul.addr %s426, 16
      %s428 = smul.addr %s427, 4
      %s429 = scalar_lea.vmem %s2, %s428
      %p430 = pneg %p84
      %p431 = pneg %p81
      %s432 = smul.u32 %s29, 128
      %s433 = sadd.s32 %s432, 1
      %s434 = sld [smem:[#allocation3 + %s433]]
      %p435 = scmp.lt.s32.totalorder %s434, 3
      %s436 = scalar_select %p435, %s434, 3
      %s437 = smul.addr %s436, 2
      %s438 = smul.addr %s437, 4
      %s439 = scalar_lea.vmem %s3, %s438
      %p440 = pneg %p116
      %p441 = pneg %p113
      %p442 = scmp.lt.s32.totalorder %s29, 5
      %s443 = scalar_select %p442, %s29, 5
      %s444 = scalar_lea.vmem %s4, %s443
      %p445 = pneg %p142
      %p446 = pneg %p139
      %p447 = scmp.lt.s32.totalorder %s29, 5
      %s448 = scalar_select %p447, %s29, 5
      %s449 = smul.addr %s448, 16
      %s450 = smul.addr %s449, 4
      %s451 = scalar_lea.vmem %s5, %s450
      %p452 = pneg %p168
      %p453 = pneg %p165
      %p454 = scmp.lt.s32.totalorder %s29, 5
      %s455 = scalar_select %p454, %s29, 5
      %s456 = smul.addr %s455, 2
      %s457 = smul.addr %s456, 4
      %s458 = scalar_lea.vmem %s6, %s457
      %p459 = pneg %p194
      %p460 = pneg %p191
      %p461 = scmp.lt.s32.totalorder %s29, 5
      %s462 = scalar_select %p461, %s29, 5
      %s463 = smul.addr %s462, 2
      %s464 = smul.addr %s463, 8
      %s465 = scalar_lea.vmem %s7, %s464
      %p466 = pneg %p220
      %p467 = pneg %p217
      %p468 = pneg %p241
      %p469 = pneg %p238
      %p470 = pneg %p262
      %p471 = pneg %p259
      %p472 = pneg %p288
      %p473 = pneg %p285
      %p474 = scmp.lt.s32.totalorder %s29, 5
      %s475 = scalar_select %p474, %s29, 5
      %s476 = smul.addr %s475, 2
      %s477 = smul.addr %s476, 8
      %s478 = scalar_lea.vmem %s10, %s477
      %p479 = pneg %p314
      %p480 = pneg %p311
      %p481 = scmp.lt.s32.totalorder %s29, 5
      %s482 = scalar_select %p481, %s29, 5
      %s483 = scalar_lea.vmem %s11, %s482
      %s484 = smul.u32 %s29, 128
      %s485 = sld [smem:[#allocation3 + %s484]]
      %p486 = scmp.lt.s32.totalorder %s485, 3
      %s487 = scalar_select %p486, %s485, 3
      %s488 = smul.addr %s487, 2
      %s489 = smul.addr %s488, 4
      %s490 = scalar_lea.vmem %s1, %s489
      %s491 = smul.u32 %s29, 128
      %s492 = sld [smem:[#allocation3 + %s491]]
      %s493 = smul.u32 %s29, 128
      %s494 = sld [smem:[#allocation3 + %s493]]
      %p495 = scmp.lt.s32.totalorder %s494, 3
      %s496 = scalar_select %p495, %s494, 3
      %s497 = smul.addr %s496, 16
      %s498 = smul.addr %s497, 4
      %s499 = scalar_lea.vmem %s2, %s498
      %s500 = smul.u32 %s29, 128
      %s501 = sld [smem:[#allocation3 + %s500]]
      %s502 = smul.u32 %s29, 128
      %s503 = sadd.s32 %s502, 1
      %s504 = sld [smem:[#allocation3 + %s503]]
      %p505 = scmp.lt.s32.totalorder %s504, 3
      %s506 = scalar_select %p505, %s504, 3
      %s507 = smul.addr %s506, 2
      %s508 = smul.addr %s507, 4
      %s509 = scalar_lea.vmem %s3, %s508
      %s510 = smul.u32 %s29, 128
      %s511 = sadd.s32 %s510, 1
      %s512 = sld [smem:[#allocation3 + %s511]]
      %p513 = scmp.lt.s32.totalorder %s29, 5
      %s514 = scalar_select %p513, %s29, 5
      %s515 = scalar_lea.vmem %s4, %s514
      %p516 = scmp.lt.s32.totalorder %s29, 5
      %s517 = scalar_select %p516, %s29, 5
      %s518 = smul.addr %s517, 16
      %s519 = smul.addr %s518, 4
      %s520 = scalar_lea.vmem %s5, %s519
      %p521 = scmp.lt.s32.totalorder %s29, 5
      %s522 = scalar_select %p521, %s29, 5
      %s523 = smul.addr %s522, 2
      %s524 = smul.addr %s523, 4
      %s525 = scalar_lea.vmem %s6, %s524
      %p526 = scmp.lt.s32.totalorder %s29, 5
      %s527 = scalar_select %p526, %s29, 5
      %s528 = smul.addr %s527, 2
      %s529 = smul.addr %s528, 8
      %s530 = scalar_lea.vmem %s7, %s529
      %p531 = scmp.lt.s32.totalorder %s29, 5
      %s532 = scalar_select %p531, %s29, 5
      %s533 = smul.addr %s532, 2
      %s534 = smul.addr %s533, 8
      %s535 = scalar_lea.vmem %s10, %s534
      %p536 = scmp.lt.s32.totalorder %s29, 5
      %s537 = scalar_select %p536, %s29, 5
      %s538 = scalar_lea.vmem %s11, %s537
      %v540 = vld [vmem:[%s490] sm:$0xf]
      %v541 = vld [vmem:[%s490 + $0x4] sm:$0xf]
      %v542 = vld [vmem:[%s515] sm:$0x1]
      %v543 = vld [vmem:[%s499] sm:$0xf]
      %v544 = vld [vmem:[%s499 + $0x4] sm:$0xf]
      %v545 = vld [vmem:[%s499 + $0x8] sm:$0xf]
      %v546 = vld [vmem:[%s499 + $0xc] sm:$0xf]
      %v547 = vld [vmem:[%s499 + $0x10] sm:$0xf]
      %v548 = vld [vmem:[%s499 + $0x14] sm:$0xf]
      %v549 = vld [vmem:[%s499 + $0x18] sm:$0xf]
      %v550 = vld [vmem:[%s499 + $0x1c] sm:$0xf]
      %v551 = vld [vmem:[%s499 + $0x20] sm:$0xf]
      %v552 = vld [vmem:[%s499 + $0x24] sm:$0xf]
      %v553 = vld [vmem:[%s499 + $0x28] sm:$0xf]
      %v554 = vld [vmem:[%s499 + $0x2c] sm:$0xf]
      %v555 = vld [vmem:[%s499 + $0x30] sm:$0xf]
      %v556 = vld [vmem:[%s499 + $0x34] sm:$0xf]
      %v557 = vld [vmem:[%s499 + $0x38] sm:$0xf]
      %v558 = vld [vmem:[%s499 + $0x3c] sm:$0xf]
      %v575 = vunpack.c.l.b16 %v543
      %v576 = vunpack.c.l.b16 %v544
      %v577 = vunpack.c.l.b16 %v545
      %v578 = vunpack.c.l.b16 %v546
      %v579 = vunpack.c.l.b16 %v547
      %v580 = vunpack.c.l.b16 %v548
      %v581 = vunpack.c.l.b16 %v549
      %v582 = vunpack.c.l.b16 %v550
      %v583 = vunpack.c.l.b16 %v551
      %v584 = vunpack.c.l.b16 %v552
      %v585 = vunpack.c.l.b16 %v553
      %v586 = vunpack.c.l.b16 %v554
      %v587 = vunpack.c.l.b16 %v555
      %v588 = vunpack.c.l.b16 %v556
      %v589 = vunpack.c.l.b16 %v557
      %v590 = vunpack.c.l.b16 %v558
      %v591 = vpack.c.b16 %v576, %v575
      %v592 = vpack.c.b16 %v578, %v577
      %v593 = vpack.c.b16 %v580, %v579
      %v594 = vpack.c.b16 %v582, %v581
      %v595 = vpack.c.b16 %v584, %v583
      %v596 = vpack.c.b16 %v586, %v585
      %v597 = vpack.c.b16 %v588, %v587
      %v598 = vpack.c.b16 %v590, %v589
      %607 = vmatprep.subr.bf16.mxu0 0
      %608 = vmatpush1.bf16.msra.mxu0 %v591
      %609 = vmatprep.subr.bf16.mxu0 0
      %610 = vmatpush1.bf16.msra.mxu0 %v592
      %611 = vmatprep.subr.bf16.mxu0 0
      %612 = vmatpush1.bf16.msra.mxu0 %v593
      %613 = vmatprep.subr.bf16.mxu0 0
      %614 = vmatpush1.bf16.msra.mxu0 %v594
      %615 = vmatprep.subr.bf16.mxu0 0
      %616 = vmatpush1.bf16.msra.mxu0 %v595
      %617 = vmatprep.subr.bf16.mxu0 0
      %618 = vmatpush1.bf16.msra.mxu0 %v596
      %619 = vmatprep.subr.bf16.mxu0 0
      %620 = vmatpush1.bf16.msra.mxu0 %v597
      %621 = vmatprep.subr.bf16.mxu0 0
      %622 = vmatpush1.bf16.msra.mxu0 %v598
      %623 = vmatprep.subr.bf16.mxu0 0
      %624 = vmatpush1.bf16.msra.mxu0 0
      %625 = vmatprep.subr.bf16.mxu0 0
      %626 = vmatpush1.bf16.msra.mxu0 0
      %627 = vmatprep.subr.bf16.mxu0 0
      %628 = vmatpush1.bf16.msra.mxu0 0
      %629 = vmatprep.subr.bf16.mxu0 0
      %630 = vmatpush1.bf16.msra.mxu0 0
      %631 = vmatprep.subr.bf16.mxu0 0
      %632 = vmatpush1.bf16.msra.mxu0 0
      %633 = vmatprep.subr.bf16.mxu0 0
      %634 = vmatpush1.bf16.msra.mxu0 0
      %635 = vmatprep.subr.bf16.mxu0 0
      %636 = vmatpush1.bf16.msra.mxu0 0
      %637 = vmatprep.subr.bf16.mxu0 0
      %638 = vmatpush1.bf16.msra.mxu0 0
      %639 = vmatprep.mubr.bf16.mxu0 0
      %640 = vmatmul.mubr.bf16.gmra.mrb[0].mxu0 %v542
      %v641 = vpop.f32.mrb[0].mxu0
      %v642 = vadd.f32 0.0, %v641
      %v643 = vpop.f32.mrb[0].mxu0
      %v644 = vpop.f32.mrb[0].mxu0
      %v645 = vpop.f32.mrb[0].mxu0
      %646 = vdwg.mxu0
      %v647 = vld [vmem:[%s509] sm:$0xf]
      %v648 = vld [vmem:[%s509 + $0x4] sm:$0xf]
      %v649 = vld [vmem:[%s520] sm:$0xf]
      %v650 = vld [vmem:[%s520 + $0x4] sm:$0xf]
      %v651 = vld [vmem:[%s520 + $0x8] sm:$0xf]
      %v652 = vld [vmem:[%s520 + $0xc] sm:$0xf]
      %v653 = vld [vmem:[%s520 + $0x10] sm:$0xf]
      %v654 = vld [vmem:[%s520 + $0x14] sm:$0xf]
      %v655 = vld [vmem:[%s520 + $0x18] sm:$0xf]
      %v656 = vld [vmem:[%s520 + $0x1c] sm:$0xf]
      %v657 = vld [vmem:[%s520 + $0x20] sm:$0xf]
      %v658 = vld [vmem:[%s520 + $0x24] sm:$0xf]
      %v659 = vld [vmem:[%s520 + $0x28] sm:$0xf]
      %v660 = vld [vmem:[%s520 + $0x2c] sm:$0xf]
      %v661 = vld [vmem:[%s520 + $0x30] sm:$0xf]
      %v662 = vld [vmem:[%s520 + $0x34] sm:$0xf]
      %v663 = vld [vmem:[%s520 + $0x38] sm:$0xf]
      %v664 = vld [vmem:[%s520 + $0x3c] sm:$0xf]
      %v667 = vunpack.c.l.b16 %v647
      %v668 = vunpack.c.l.b16 %v648
      %v669 = vpack.c.b16 %v668, %v667
      %v687 = vunpack.c.l.b16 %v649
      %v688 = vunpack.c.l.b16 %v650
      %v689 = vunpack.c.l.b16 %v651
      %v690 = vunpack.c.l.b16 %v652
      %v691 = vunpack.c.l.b16 %v653
      %v692 = vunpack.c.l.b16 %v654
      %v693 = vunpack.c.l.b16 %v655
      %v694 = vunpack.c.l.b16 %v656
      %v695 = vunpack.c.l.b16 %v657
      %v696 = vunpack.c.l.b16 %v658
      %v697 = vunpack.c.l.b16 %v659
      %v698 = vunpack.c.l.b16 %v660
      %v699 = vunpack.c.l.b16 %v661
      %v700 = vunpack.c.l.b16 %v662
      %v701 = vunpack.c.l.b16 %v663
      %v702 = vunpack.c.l.b16 %v664
      %v703 = vpack.c.b16 %v688, %v687
      %v704 = vpack.c.b16 %v690, %v689
      %v705 = vpack.c.b16 %v692, %v691
      %v706 = vpack.c.b16 %v694, %v693
      %v707 = vpack.c.b16 %v696, %v695
      %v708 = vpack.c.b16 %v698, %v697
      %v709 = vpack.c.b16 %v700, %v699
      %v710 = vpack.c.b16 %v702, %v701
      %719 = vmatprep.subr.bf16.mxu0 0
      %720 = vmatpush1.bf16.msra.mxu0 %v703
      %721 = vmatprep.subr.bf16.mxu0 0
      %722 = vmatpush1.bf16.msra.mxu0 %v704
      %723 = vmatprep.subr.bf16.mxu0 0
      %724 = vmatpush1.bf16.msra.mxu0 %v705
      %725 = vmatprep.subr.bf16.mxu0 0
      %726 = vmatpush1.bf16.msra.mxu0 %v706
      %727 = vmatprep.subr.bf16.mxu0 0
      %728 = vmatpush1.bf16.msra.mxu0 %v707
      %729 = vmatprep.subr.bf16.mxu0 0
      %730 = vmatpush1.bf16.msra.mxu0 %v708
      %731 = vmatprep.subr.bf16.mxu0 0
      %732 = vmatpush1.bf16.msra.mxu0 %v709
      %733 = vmatprep.subr.bf16.mxu0 0
      %734 = vmatpush1.bf16.msra.mxu0 %v710
      %735 = vmatprep.subr.bf16.mxu0 0
      %736 = vmatpush1.bf16.msra.mxu0 0
      %737 = vmatprep.subr.bf16.mxu0 0
      %738 = vmatpush1.bf16.msra.mxu0 0
      %739 = vmatprep.subr.bf16.mxu0 0
      %740 = vmatpush1.bf16.msra.mxu0 0
      %741 = vmatprep.subr.bf16.mxu0 0
      %742 = vmatpush1.bf16.msra.mxu0 0
      %743 = vmatprep.subr.bf16.mxu0 0
      %744 = vmatpush1.bf16.msra.mxu0 0
      %745 = vmatprep.subr.bf16.mxu0 0
      %746 = vmatpush1.bf16.msra.mxu0 0
      %747 = vmatprep.subr.bf16.mxu0 0
      %748 = vmatpush1.bf16.msra.mxu0 0
      %749 = vmatprep.subr.bf16.mxu0 0
      %750 = vmatpush1.bf16.msra.mxu0 0
      %751 = vmatprep.mubr.bf16.mxu0 0
      %752 = vmatmul.mubr.bf16.gmra.mrb[0].mxu0 %v669
      %v753 = vpop.f32.mrb[0].mxu0
      %v754 = vadd.f32 0.0, %v753
      %v755 = vpop.f32.mrb[0].mxu0
      %v756 = vpop.f32.mrb[0].mxu0
      %v757 = vadd.f32 0.0, %v756
      %v758 = vpop.f32.mrb[0].mxu0
      %759 = vdwg.mxu0
      %v760 = vld [vmem:[%s525] sm:$0xf]
      %v761 = vld [vmem:[%s525 + $0x4] sm:$0xf]
      %v762 = vunpack.c.l.bf16 %v760
      %v763 = vunpack.c.l.bf16 %v761
      %764 = vst [vmem:[%s535] sm:$0xff] 0.0
      %765 = vst [vmem:[%s535 + $0x8] sm:$0xff] 0.0
      %767 = vset.pattern.permute.xlu0 0
      %768 = vperm.xlu0 %767, %v754
      %v769 = vpop.permute.xlu0 %768
      %772 = vset.pattern.permute.xlu0 0
      %773 = vperm.xlu0 %772, %v757
      %v774 = vpop.permute.xlu0 %773
      %v776 = vlaneseq
      %v777 = vshrl.u32 %v776, 7
      %v778 = vsub.s32 0, %v777
      %v779 = vrot.slane %v642, %v778
      %v780 = vadd.f32 %v769, %v779
      %v781 = vadd.f32 %v774, %v779
      %vm782 = vcmp.ge.f32.partialorder %v780, 0.0
      %vm783 = vcmp.ge.f32.partialorder %v781, 0.0
      %v784 = vmul.f32 %v780, 0.2
      %v785 = vmul.f32 %v781, 0.2
      %v786 = vsel %vm782, %v780, %v784
      %v787 = vsel %vm783, %v781, %v785
      %v788 = vadd.f32 %v786, %v762
      %v789 = vadd.f32 %v787, %v763
      %vm790 = vcmask 130048
      %v791 = vsel %vm790, %v788, -inf
      %792 = vmax.xlane.f32.xlu0 %v791
      %v793 = vpop.xlane.xlu0 %792
      %v794 = vsel %vm790, %v789, -inf
      %795 = vmax.xlane.f32.xlu0 %v794
      %v796 = vpop.xlane.xlu0 %795
      %v797 = vsub.f32 %v788, %v793
      %v798 = vsub.f32 %v789, %v796
      %v799 = vmul.f32 %v797, 1.442695
      %v800 = vpow.pop %v799
      %v801 = vmul.f32 %v798, 1.442695
      %v802 = vpow.pop %v801
      %v803 = vsel %vm790, %v800, 0.0
      %804 = vadd.xlane.f32.xlu0 %v803
      %v805 = vpop.xlane.xlu0 %804
      %v806 = vsel %vm790, %v802, 0.0
      %807 = vadd.xlane.f32.xlu0 %v806
      %v808 = vpop.xlane.xlu0 %807
      %vm809 = vcmp.gt.f32.partialorder %v793, -1e+20
      %vm810 = vcmp.gt.f32.partialorder %v796, -1e+20
      %v811 = vrcp.pop %v805
      %v812 = vrcp.pop %v808
      %v813 = vsel %vm809, %v811, 0.0
      %v814 = vsel %vm810, %v812, 0.0
      %v815 = vmul.f32 %v800, %v813
      %v816 = vmul.f32 %v802, %v814
      %v817 = vpack.c.bf16 %v816, %v815
      %v820 = vunpack.c.l.b16 %v540
      %v821 = vunpack.c.l.b16 %v541
      %v822 = vpack.c.b16 %v821, %v820
      %v825 = vsel %vm790, %v817, 0
      %827 = vmatprep.subr.bf16.mxu0 0
      %828 = vmatpush1.bf16.msra.mxu0 %v822
      %829 = vmatprep.subr.bf16.mxu0 0
      %830 = vmatpush1.bf16.msra.mxu0 0
      %831 = vmatprep.subr.bf16.mxu0 0
      %832 = vmatpush1.bf16.msra.mxu0 0
      %833 = vmatprep.subr.bf16.mxu0 0
      %834 = vmatpush1.bf16.msra.mxu0 0
      %835 = vmatprep.subr.bf16.mxu0 0
      %836 = vmatpush1.bf16.msra.mxu0 0
      %837 = vmatprep.subr.bf16.mxu0 0
      %838 = vmatpush1.bf16.msra.mxu0 0
      %839 = vmatprep.subr.bf16.mxu0 0
      %840 = vmatpush1.bf16.msra.mxu0 0
      %841 = vmatprep.subr.bf16.mxu0 0
      %842 = vmatpush1.bf16.msra.mxu0 0
      %843 = vmatprep.subr.bf16.mxu0 0
      %844 = vmatpush1.bf16.msra.mxu0 0
      %845 = vmatprep.subr.bf16.mxu0 0
      %846 = vmatpush1.bf16.msra.mxu0 0
      %847 = vmatprep.subr.bf16.mxu0 0
      %848 = vmatpush1.bf16.msra.mxu0 0
      %849 = vmatprep.subr.bf16.mxu0 0
      %850 = vmatpush1.bf16.msra.mxu0 0
      %851 = vmatprep.subr.bf16.mxu0 0
      %852 = vmatpush1.bf16.msra.mxu0 0
      %853 = vmatprep.subr.bf16.mxu0 0
      %854 = vmatpush1.bf16.msra.mxu0 0
      %855 = vmatprep.subr.bf16.mxu0 0
      %856 = vmatpush1.bf16.msra.mxu0 0
      %857 = vmatprep.subr.bf16.mxu0 0
      %858 = vmatpush1.bf16.msra.mxu0 0
      %859 = vmatprep.mubr.bf16.mxu0 0
      %860 = vmatmul.mubr.bf16.gmra.mrb[0].mxu0 %v825
      %v861 = vpop.f32.mrb[0].mxu0
      %v862 = vadd.f32 0.0, %v861
      %v863 = vpop.f32.mrb[0].mxu0
      %v864 = vpop.f32.mrb[0].mxu0
      %v865 = vadd.f32 0.0, %v864
      %v866 = vpop.f32.mrb[0].mxu0
      %867 = vdwg.mxu0
      %v868 = vmax.f32 %v862, 0.0
      %v869 = vmax.f32 %v865, 0.0
      %870 = vst.msk [vmem:[%s535] sm:$0xff] %vm790, %v868
      %871 = vst.msk [vmem:[%s535 + $0x8] sm:$0xff] %vm790, %v869
      %872 = vset.pattern.permute.xlu0 1
      %873 = vperm.xlu0 %872, %v754
      %v874 = vpop.permute.xlu0 %873
      %876 = vset.pattern.permute.xlu0 1
      %877 = vperm.xlu0 %876, %v757
      %v878 = vpop.permute.xlu0 %877
      %v880 = vlaneseq
      %v881 = vshrl.u32 %v880, 7
      %v882 = vsub.s32 1, %v881
      %v883 = vrot.slane %v642, %v882
      %v884 = vadd.f32 %v874, %v883
      %v885 = vadd.f32 %v878, %v883
      %vm886 = vcmp.ge.f32.partialorder %v884, 0.0
      %vm887 = vcmp.ge.f32.partialorder %v885, 0.0
      %v888 = vmul.f32 %v884, 0.2
      %v889 = vmul.f32 %v885, 0.2
      %v890 = vsel %vm886, %v884, %v888
      %v891 = vsel %vm887, %v885, %v889
      %v892 = vadd.f32 %v890, %v762
      %v893 = vadd.f32 %v891, %v763
      %v894 = vsel %vm790, %v892, -inf
      %895 = vmax.xlane.f32.xlu0 %v894
      %v896 = vpop.xlane.xlu0 %895
      %v897 = vsel %vm790, %v893, -inf
      %898 = vmax.xlane.f32.xlu0 %v897
      %v899 = vpop.xlane.xlu0 %898
      %v900 = vsub.f32 %v892, %v896
      %v901 = vsub.f32 %v893, %v899
      %v902 = vmul.f32 %v900, 1.442695
      %v903 = vpow.pop %v902
      %v904 = vmul.f32 %v901, 1.442695
      %v905 = vpow.pop %v904
      %v906 = vsel %vm790, %v903, 0.0
      %907 = vadd.xlane.f32.xlu0 %v906
      %v908 = vpop.xlane.xlu0 %907
      %v909 = vsel %vm790, %v905, 0.0
      %910 = vadd.xlane.f32.xlu0 %v909
      %v911 = vpop.xlane.xlu0 %910
      %vm912 = vcmp.gt.f32.partialorder %v896, -1e+20
      %vm913 = vcmp.gt.f32.partialorder %v899, -1e+20
      %v914 = vrcp.pop %v908
      %v915 = vrcp.pop %v911
      %v916 = vsel %vm912, %v914, 0.0
      %v917 = vsel %vm913, %v915, 0.0
      %v918 = vmul.f32 %v903, %v916
      %v919 = vmul.f32 %v905, %v917
      %v920 = vpack.c.bf16 %v919, %v918
      %921 = vrot.lane.b32.xlu0 %v822, 112
      %v922 = vpop.permute.xlu0 %921
      %v925 = vsel %vm790, %v920, 0
      %927 = vmatprep.subr.bf16.mxu0 0
      %928 = vmatpush1.bf16.msra.mxu0 %v922
      %929 = vmatprep.subr.bf16.mxu0 0
      %930 = vmatpush1.bf16.msra.mxu0 0
      %931 = vmatprep.subr.bf16.mxu0 0
      %932 = vmatpush1.bf16.msra.mxu0 0
      %933 = vmatprep.subr.bf16.mxu0 0
      %934 = vmatpush1.bf16.msra.mxu0 0
      %935 = vmatprep.subr.bf16.mxu0 0
      %936 = vmatpush1.bf16.msra.mxu0 0
      %937 = vmatprep.subr.bf16.mxu0 0
      %938 = vmatpush1.bf16.msra.mxu0 0
      %939 = vmatprep.subr.bf16.mxu0 0
      %940 = vmatpush1.bf16.msra.mxu0 0
      %941 = vmatprep.subr.bf16.mxu0 0
      %942 = vmatpush1.bf16.msra.mxu0 0
      %943 = vmatprep.subr.bf16.mxu0 0
      %944 = vmatpush1.bf16.msra.mxu0 0
      %945 = vmatprep.subr.bf16.mxu0 0
      %946 = vmatpush1.bf16.msra.mxu0 0
      %947 = vmatprep.subr.bf16.mxu0 0
      %948 = vmatpush1.bf16.msra.mxu0 0
      %949 = vmatprep.subr.bf16.mxu0 0
      %950 = vmatpush1.bf16.msra.mxu0 0
      %951 = vmatprep.subr.bf16.mxu0 0
      %952 = vmatpush1.bf16.msra.mxu0 0
      %953 = vmatprep.subr.bf16.mxu0 0
      %954 = vmatpush1.bf16.msra.mxu0 0
      %955 = vmatprep.subr.bf16.mxu0 0
      %956 = vmatpush1.bf16.msra.mxu0 0
      %957 = vmatprep.subr.bf16.mxu0 0
      %958 = vmatpush1.bf16.msra.mxu0 0
      %959 = vmatprep.mubr.bf16.mxu0 0
      %960 = vmatmul.mubr.bf16.gmra.mrb[0].mxu0 %v925
      %v961 = vpop.f32.mrb[0].mxu0
      %v962 = vadd.f32 0.0, %v961
      %v963 = vpop.f32.mrb[0].mxu0
      %v964 = vpop.f32.mrb[0].mxu0
      %v965 = vadd.f32 0.0, %v964
      %v966 = vpop.f32.mrb[0].mxu0
      %967 = vdwg.mxu0
      %v968 = vmax.f32 %v962, 0.0
      %v969 = vmax.f32 %v965, 0.0
      %972 = vrot.lane.b32.xlu0 %v968, 16
      %v973 = vpop.permute.xlu0 %972
      %974 = vrot.lane.b32.xlu0 %v969, 16
      %v975 = vpop.permute.xlu0 %974
      %vm978 = vcmask 261248
      %979 = vst.msk [vmem:[%s535] sm:$0xff] %vm978, %v973
      %980 = vst.msk [vmem:[%s535 + $0x8] sm:$0xff] %vm978, %v975
      %v981 = vld [vmem:[%s535] sm:$0xff]
      %v982 = vld [vmem:[%s535 + $0x8] sm:$0xff]
      %v983 = vpack.c.bf16 %v982, %v981
      %v984 = vld [vmem:[%s8] sm:$0xf]
      %v985 = vld [vmem:[%s8 + $0x4] sm:$0xf]
      %v986 = vld [vmem:[%s8 + $0x8] sm:$0xf]
      %v987 = vld [vmem:[%s8 + $0xc] sm:$0xf]
      %v988 = vld [vmem:[%s8 + $0x10] sm:$0xf]
      %v989 = vld [vmem:[%s8 + $0x14] sm:$0xf]
      %v990 = vld [vmem:[%s8 + $0x18] sm:$0xf]
      %v991 = vld [vmem:[%s8 + $0x1c] sm:$0xf]
      %v992 = vld [vmem:[%s8 + $0x20] sm:$0xf]
      %v993 = vld [vmem:[%s8 + $0x24] sm:$0xf]
      %v994 = vld [vmem:[%s8 + $0x28] sm:$0xf]
      %v995 = vld [vmem:[%s8 + $0x2c] sm:$0xf]
      %v996 = vld [vmem:[%s8 + $0x30] sm:$0xf]
      %v997 = vld [vmem:[%s8 + $0x34] sm:$0xf]
      %v998 = vld [vmem:[%s8 + $0x38] sm:$0xf]
      %v999 = vld [vmem:[%s8 + $0x3c] sm:$0xf]
      %v1000 = vld [vmem:[%s9] sm:$0x1]
      %v1002 = vlaneseq
      %v1003 = vshrl.u32 %v1002, 7
      %v1004 = vsub.s32 0, %v1003
      %v1005 = vrot.slane %v1000, %v1004
      %v1023 = vunpack.c.l.b16 %v984
      %v1024 = vunpack.c.l.b16 %v985
      %v1025 = vunpack.c.l.b16 %v986
      %v1026 = vunpack.c.l.b16 %v987
      %v1027 = vunpack.c.l.b16 %v988
      %v1028 = vunpack.c.l.b16 %v989
      %v1029 = vunpack.c.l.b16 %v990
      %v1030 = vunpack.c.l.b16 %v991
      %v1031 = vunpack.c.l.b16 %v992
      %v1032 = vunpack.c.l.b16 %v993
      %v1033 = vunpack.c.l.b16 %v994
      %v1034 = vunpack.c.l.b16 %v995
      %v1035 = vunpack.c.l.b16 %v996
      %v1036 = vunpack.c.l.b16 %v997
      %v1037 = vunpack.c.l.b16 %v998
      %v1038 = vunpack.c.l.b16 %v999
      %v1039 = vpack.c.b16 %v1024, %v1023
      %v1040 = vpack.c.b16 %v1026, %v1025
      %v1041 = vpack.c.b16 %v1028, %v1027
      %v1042 = vpack.c.b16 %v1030, %v1029
      %v1043 = vpack.c.b16 %v1032, %v1031
      %v1044 = vpack.c.b16 %v1034, %v1033
      %v1045 = vpack.c.b16 %v1036, %v1035
      %v1046 = vpack.c.b16 %v1038, %v1037
      %1055 = vmatprep.subr.bf16.mxu0 0
      %1056 = vmatpush1.bf16.msra.mxu0 %v1039
      %1057 = vmatprep.subr.bf16.mxu0 0
      %1058 = vmatpush1.bf16.msra.mxu0 %v1040
      %1059 = vmatprep.subr.bf16.mxu0 0
      %1060 = vmatpush1.bf16.msra.mxu0 %v1041
      %1061 = vmatprep.subr.bf16.mxu0 0
      %1062 = vmatpush1.bf16.msra.mxu0 %v1042
      %1063 = vmatprep.subr.bf16.mxu0 0
      %1064 = vmatpush1.bf16.msra.mxu0 %v1043
      %1065 = vmatprep.subr.bf16.mxu0 0
      %1066 = vmatpush1.bf16.msra.mxu0 %v1044
      %1067 = vmatprep.subr.bf16.mxu0 0
      %1068 = vmatpush1.bf16.msra.mxu0 %v1045
      %1069 = vmatprep.subr.bf16.mxu0 0
      %1070 = vmatpush1.bf16.msra.mxu0 %v1046
      %1071 = vmatprep.subr.bf16.mxu0 0
      %1072 = vmatpush1.bf16.msra.mxu0 0
      %1073 = vmatprep.subr.bf16.mxu0 0
      %1074 = vmatpush1.bf16.msra.mxu0 0
      %1075 = vmatprep.subr.bf16.mxu0 0
      %1076 = vmatpush1.bf16.msra.mxu0 0
      %1077 = vmatprep.subr.bf16.mxu0 0
      %1078 = vmatpush1.bf16.msra.mxu0 0
      %1079 = vmatprep.subr.bf16.mxu0 0
      %1080 = vmatpush1.bf16.msra.mxu0 0
      %1081 = vmatprep.subr.bf16.mxu0 0
      %1082 = vmatpush1.bf16.msra.mxu0 0
      %1083 = vmatprep.subr.bf16.mxu0 0
      %1084 = vmatpush1.bf16.msra.mxu0 0
      %1085 = vmatprep.subr.bf16.mxu0 0
      %1086 = vmatpush1.bf16.msra.mxu0 0
      %1087 = vmatprep.mubr.bf16.mxu0 0
      %1088 = vmatmul.mubr.bf16.gmra.mrb[0].mxu0 %v983
      %v1089 = vpop.f32.mrb[0].mxu0
      %v1090 = vadd.f32 %v1005, %v1089
      %v1091 = vpop.f32.mrb[0].mxu0
      %v1092 = vpop.f32.mrb[0].mxu0
      %v1093 = vadd.f32 %v1005, %v1092
      %v1094 = vpop.f32.mrb[0].mxu0
      %1095 = vdwg.mxu0
      %v1096 = vtanh.pop %v1090
      %v1097 = vtanh.pop %v1093
      %v1098 = vld [vmem:[%s530] sm:$0xff]
      %v1099 = vld [vmem:[%s530 + $0x8] sm:$0xff]
      %1101 = vset.pattern.permute.xlu0 0
      %1102 = vperm.xlu0 %1101, %v1098
      %v1103 = vpop.permute.xlu0 %1102
      %1106 = vset.pattern.permute.xlu0 0
      %1107 = vperm.xlu0 %1106, %v1099
      %v1108 = vpop.permute.xlu0 %1107
      %v1110 = vmul.f32 %v1103, %v1096
      %v1111 = vmul.f32 %v1108, %v1097
      %v1112 = vadd.f32 %v1110, %v1111
      %v1113 = vrot.slane %v1112, 4
      %v1114 = vadd.f32 %v1112, %v1113
      %v1115 = vrot.slane %v1114, 2
      %v1116 = vadd.f32 %v1114, %v1115
      %v1117 = vrot.slane %v1116, 1
      %v1118 = vadd.f32 %v1116, %v1117
      %1119 = vst [vmem:[%s538] sm:$0x1] %v1118
      %p1120 = scmp.lt.s32.totalorder %s29, 5
      %s1121 = scalar_select %p1120, %s29, 5
      %s1122 = smul.addr %s1121, 2
      %s1123 = smul.addr %s1122, 8
      %s1124 = scalar_lea.vmem %s10, %s1123
      %p1125 = scmp.lt.s32.totalorder %s29, 5
      %s1126 = scalar_select %p1125, %s29, 5
      %s1127 = scalar_lea.vmem %s11, %s1126
      // Predicated region
      $region57: #{han_forward.5} parent=55 // pred_check
        %p1128 = pneg %p285
      $region58: #{han_forward.5} parent=55 // pred_check_branch
        %1130 = sbr.rel (%p1128) target = $region60
      $region59: #{han_forward.5} parent=55 // pred_region
        _
      $region60: #{han_forward.5} parent=55 // pred_fallthru
        _
      // Predicated region
      $region61: #{han_forward.5} parent=55 // pred_check
        %p1131 = pneg %p311
      $region62: #{han_forward.5} parent=55 // pred_check_branch
        %1133 = sbr.rel (%p1131) target = $region64
      $region63: #{han_forward.5} parent=55 // pred_region
        _
      $region64: #{han_forward.5} parent=55 // pred_fallthru
        _
    $region56: #{han_forward.5} parent=5 // pred_fallthru
      _
    %p1134 = scmp.le.s32.totalorder 2, %s24
    // Predicated region
    $region65: #{han_forward.5} parent=5 // pred_check
      %p1135 = pneg %p1134
    $region66: #{han_forward.5} parent=5 // pred_check_branch
      %1137 = sbr.rel (%p1135) target = $region68
    $region67: #{han_forward.5} parent=5 // pred_region
      %s1138 = ssub.s32 %s24, 2
      // Predicated region
      $region69: #{han_forward.5} parent=67 // pred_check
        %p1139 = pneg %p291
      $region70: #{han_forward.5} parent=67 // pred_check_branch
        %1141 = sbr.rel (%p1139) target = $region72
      $region71: #{han_forward.5} parent=67 // pred_region
        %p1142 = scmp.lt.s32.totalorder %s30, 5
        %s1143 = scalar_select %p1142, %s30, 5
        %s1144 = smul.addr %s1143, 2
        %s1145 = smul.addr %s1144, 8
        %s1146 = scalar_lea.vmem %s10, %s1145
      $region72: #{han_forward.5} parent=67 // pred_fallthru
        _
      // Predicated region
      $region73: #{han_forward.5} parent=67 // pred_check
        %p1147 = pneg %p317
      $region74: #{han_forward.5} parent=67 // pred_check_branch
        %1149 = sbr.rel (%p1147) target = $region76
      $region75: #{han_forward.5} parent=67 // pred_region
        %p1150 = scmp.lt.s32.totalorder %s30, 5
        %s1151 = scalar_select %p1150, %s30, 5
        %s1152 = scalar_lea.vmem %s11, %s1151
      $region76: #{han_forward.5} parent=67 // pred_fallthru
        _
    $region68: #{han_forward.5} parent=5 // pred_fallthru
      _
  $region6: #{han_forward.5} parent=0 // loop_footer
    %s28 = sadd.s32 1, %s24
  $region7: #{han_forward.5} parent=0 // loop_footer_branch
    %23 = sbr.rel target = $region3
  $region8: #{han_forward.5} parent=0 // loop_exit
    _

// kernel: han_forward.7
$region0: #{han_forward.7}
  #allocation0 [shape = 'u32[]', space=smem, size = 0x4, offset = 0x4, fixed_abs, tag = 'smem constant byte address 0x4 - core index']
  #allocation1 [shape = 'u32[144,128]{1,0:T(1,128)}', space=vmem, size = 0x12000, scoped, tag = 'internal scratch']
  #allocation2 [shape = 's32[1]{0}', space=sflag, size = 0x4, scoped, tag = 'scoped memory for han_forward.7']
  #allocation3 [shape = 'u8[4096]{0}', space=smem, size = 0x1000, scoped, tag = 'prefetched SMEM operand 0']
  %s0 = inlined_call_operand.vmem [shape: s32[6,2], index: 0, kind: input, shape index: {}]
  %s1 = inlined_call_operand.vmem [shape: bf16[4,16,128], index: 1, kind: input, shape index: {}, may-alias: {1,3}]
  %s2 = inlined_call_operand.vmem [shape: bf16[4,128,16], index: 2, kind: input, shape index: {}]
  %s3 = inlined_call_operand.vmem [shape: bf16[4,16,128], index: 3, kind: input, shape index: {}, may-alias: {1,3}]
  %s4 = inlined_call_operand.vmem [shape: bf16[6,2,128], index: 4, kind: input, shape index: {}]
  %s5 = inlined_call_operand.vmem [shape: bf16[6,128,2], index: 5, kind: input, shape index: {}]
  %s6 = inlined_call_operand.vmem [shape: bf16[6,16,16], index: 6, kind: input, shape index: {}]
  %s7 = inlined_call_operand.vmem [shape: f32[6,16,1], index: 7, kind: input, shape index: {}]
  %s8 = inlined_call_operand.vmem [shape: bf16[128,128], index: 8, kind: input, shape index: {}]
  %s9 = inlined_call_operand.vmem [shape: f32[1,128], index: 9, kind: input, shape index: {}]
  %s10 = inlined_call_operand.vmem [shape: f32[6,16,128], index: 10, kind: output, shape index: {0}]
  %s11 = inlined_call_operand.vmem [shape: f32[6,1,128], index: 11, kind: output, shape index: {1}]
  %12 = xla_tuple %s10, %s11
  %s13 = sld [smem:[#allocation0]]
  $region77: #{han_forward.7} parent=0
    _
  %s15 = ssub.s32 1, %s13
  %s16 = scalar_select 0, %s15, %s13
  %s17 = sshll.u32 %s0, 4
  %s18 = int_to_ptr.vmem [resolvable:$true] %s17
  %20 = dma.vmem_to_smem %s18, 128, [#allocation3], [#allocation2]
  %21 = dma.done [#allocation2], 128
  %22 = sfence
  loop: start=0, step=1, limit=8
  $region2: #{han_forward.7} parent=0 // loop_pre_header
    _
  $region3: #{han_forward.7} parent=0 // loop_header
    %s24 = sphi 0, %s28
    %p25 = scmp.ge.s32.totalorder %s24, 8
    %s38 = sphi 0, %s40
    %s41 = sphi 0, %s38
    %s42 = sphi 0, %s41
    %s58 = sphi 0, %s42
    %s68 = sphi 0, %s70
    %s71 = sphi 0, %s68
    %s72 = sphi 0, %s71
    %s88 = sphi 0, %s72
    %s100 = sphi 0, %s102
    %s103 = sphi 0, %s100
    %s104 = sphi 0, %s103
    %s120 = sphi 0, %s104
    %s126 = sphi 0, %s128
    %s129 = sphi 0, %s126
    %s130 = sphi 0, %s129
    %s146 = sphi 0, %s130
    %s152 = sphi 0, %s154
    %s155 = sphi 0, %s152
    %s156 = sphi 0, %s155
    %s172 = sphi 0, %s156
    %s178 = sphi 0, %s180
    %s181 = sphi 0, %s178
    %s182 = sphi 0, %s181
    %s198 = sphi 0, %s182
    %s204 = sphi 0, %s206
    %s207 = sphi 0, %s204
    %s208 = sphi 0, %s207
    %s224 = sphi 0, %s208
    %s228 = sphi 0, %s228
    %s230 = sphi 0, %s228
    %s231 = sphi 0, %s230
    %s245 = sphi 0, %s231
    %s249 = sphi 0, %s249
    %s251 = sphi 0, %s249
    %s252 = sphi 0, %s251
    %s266 = sphi 0, %s252
    %s272 = sphi 0, %s274
    %s275 = sphi 0, %s272
    %s276 = sphi 0, %s275
    %s292 = sphi 0, %s276
    %s298 = sphi 0, %s300
    %s301 = sphi 0, %s298
    %s302 = sphi 0, %s301
    %s318 = sphi 0, %s302
  $region4: #{han_forward.7} parent=0 // loop_header_branch
    %27 = sbr.rel (%p25) target = $region8
  $region5: #{han_forward.7} parent=0 // loop_body
    %s29 = ssub.s32 %s24, 1
    %s30 = ssub.s32 %s24, 2
    %s31 = sadd.s32 %s24, 1
    %s32 = smul.u32 %s24, 128
    %s33 = sld [smem:[#allocation3 + %s32]]
    %s34 = smul.u32 %s31, 128
    %s35 = sld [smem:[#allocation3 + %s34]]
    %s36 = ssub.s32 %s33, %s35
    %p37 = scmp.eq.s32.totalorder %s36, 0
    %s39 = sadd.s32 %s38, 1
    %s40 = scalar_select %p37, %s38, %s39
    %p43 = pneg %p37
    %p44 = scmp.eq.s32.totalorder %s24, 5
    %p45 = por %p43, %p44
    %p46 = scmp.ne.s32.totalorder %s38, %s41
    %p47 = scmp.eq.s32.totalorder %s24, 0
    %p48 = por %p46, %p47
    %p49 = scmp.ne.s32.totalorder %s38, %s41
    %p50 = scmp.eq.s32.totalorder %s29, 5
    %p51 = por %p49, %p50
    %p52 = scmp.ne.s32.totalorder %s41, %s42
    %p53 = scmp.eq.s32.totalorder %s29, 0
    %p54 = por %p52, %p53
    %p55 = scmp.ne.s32.totalorder %s41, %s42
    %p56 = scmp.eq.s32.totalorder %s30, 5
    %p57 = por %p55, %p56
    %p59 = scmp.ne.s32.totalorder %s42, %s58
    %p60 = scmp.eq.s32.totalorder %s30, 0
    %p61 = por %p59, %p60
    %s62 = smul.u32 %s24, 128
    %s63 = sld [smem:[#allocation3 + %s62]]
    %s64 = smul.u32 %s31, 128
    %s65 = sld [smem:[#allocation3 + %s64]]
    %s66 = ssub.s32 %s63, %s65
    %p67 = scmp.eq.s32.totalorder %s66, 0
    %s69 = sadd.s32 %s68, 1
    %s70 = scalar_select %p67, %s68, %s69
    %p73 = pneg %p67
    %p74 = scmp.eq.s32.totalorder %s24, 5
    %p75 = por %p73, %p74
    %p76 = scmp.ne.s32.totalorder %s68, %s71
    %p77 = scmp.eq.s32.totalorder %s24, 0
    %p78 = por %p76, %p77
    %p79 = scmp.ne.s32.totalorder %s68, %s71
    %p80 = scmp.eq.s32.totalorder %s29, 5
    %p81 = por %p79, %p80
    %p82 = scmp.ne.s32.totalorder %s71, %s72
    %p83 = scmp.eq.s32.totalorder %s29, 0
    %p84 = por %p82, %p83
    %p85 = scmp.ne.s32.totalorder %s71, %s72
    %p86 = scmp.eq.s32.totalorder %s30, 5
    %p87 = por %p85, %p86
    %p89 = scmp.ne.s32.totalorder %s72, %s88
    %p90 = scmp.eq.s32.totalorder %s30, 0
    %p91 = por %p89, %p90
    %s92 = smul.u32 %s24, 128
    %s93 = sadd.s32 %s92, 1
    %s94 = sld [smem:[#allocation3 + %s93]]
    %s95 = smul.u32 %s31, 128
    %s96 = sadd.s32 %s95, 1
    %s97 = sld [smem:[#allocation3 + %s96]]
    %s98 = ssub.s32 %s94, %s97
    %p99 = scmp.eq.s32.totalorder %s98, 0
    %s101 = sadd.s32 %s100, 1
    %s102 = scalar_select %p99, %s100, %s101
    %p105 = pneg %p99
    %p106 = scmp.eq.s32.totalorder %s24, 5
    %p107 = por %p105, %p106
    %p108 = scmp.ne.s32.totalorder %s100, %s103
    %p109 = scmp.eq.s32.totalorder %s24, 0
    %p110 = por %p108, %p109
    %p111 = scmp.ne.s32.totalorder %s100, %s103
    %p112 = scmp.eq.s32.totalorder %s29, 5
    %p113 = por %p111, %p112
    %p114 = scmp.ne.s32.totalorder %s103, %s104
    %p115 = scmp.eq.s32.totalorder %s29, 0
    %p116 = por %p114, %p115
    %p117 = scmp.ne.s32.totalorder %s103, %s104
    %p118 = scmp.eq.s32.totalorder %s30, 5
    %p119 = por %p117, %p118
    %p121 = scmp.ne.s32.totalorder %s104, %s120
    %p122 = scmp.eq.s32.totalorder %s30, 0
    %p123 = por %p121, %p122
    %s124 = ssub.s32 %s24, %s31
    %p125 = scmp.eq.s32.totalorder %s124, 0
    %s127 = sadd.s32 %s126, 1
    %s128 = scalar_select %p125, %s126, %s127
    %p131 = pneg %p125
    %p132 = scmp.eq.s32.totalorder %s24, 5
    %p133 = por %p131, %p132
    %p134 = scmp.ne.s32.totalorder %s126, %s129
    %p135 = scmp.eq.s32.totalorder %s24, 0
    %p136 = por %p134, %p135
    %p137 = scmp.ne.s32.totalorder %s126, %s129
    %p138 = scmp.eq.s32.totalorder %s29, 5
    %p139 = por %p137, %p138
    %p140 = scmp.ne.s32.totalorder %s129, %s130
    %p141 = scmp.eq.s32.totalorder %s29, 0
    %p142 = por %p140, %p141
    %p143 = scmp.ne.s32.totalorder %s129, %s130
    %p144 = scmp.eq.s32.totalorder %s30, 5
    %p145 = por %p143, %p144
    %p147 = scmp.ne.s32.totalorder %s130, %s146
    %p148 = scmp.eq.s32.totalorder %s30, 0
    %p149 = por %p147, %p148
    %s150 = ssub.s32 %s24, %s31
    %p151 = scmp.eq.s32.totalorder %s150, 0
    %s153 = sadd.s32 %s152, 1
    %s154 = scalar_select %p151, %s152, %s153
    %p157 = pneg %p151
    %p158 = scmp.eq.s32.totalorder %s24, 5
    %p159 = por %p157, %p158
    %p160 = scmp.ne.s32.totalorder %s152, %s155
    %p161 = scmp.eq.s32.totalorder %s24, 0
    %p162 = por %p160, %p161
    %p163 = scmp.ne.s32.totalorder %s152, %s155
    %p164 = scmp.eq.s32.totalorder %s29, 5
    %p165 = por %p163, %p164
    %p166 = scmp.ne.s32.totalorder %s155, %s156
    %p167 = scmp.eq.s32.totalorder %s29, 0
    %p168 = por %p166, %p167
    %p169 = scmp.ne.s32.totalorder %s155, %s156
    %p170 = scmp.eq.s32.totalorder %s30, 5
    %p171 = por %p169, %p170
    %p173 = scmp.ne.s32.totalorder %s156, %s172
    %p174 = scmp.eq.s32.totalorder %s30, 0
    %p175 = por %p173, %p174
    %s176 = ssub.s32 %s24, %s31
    %p177 = scmp.eq.s32.totalorder %s176, 0
    %s179 = sadd.s32 %s178, 1
    %s180 = scalar_select %p177, %s178, %s179
    %p183 = pneg %p177
    %p184 = scmp.eq.s32.totalorder %s24, 5
    %p185 = por %p183, %p184
    %p186 = scmp.ne.s32.totalorder %s178, %s181
    %p187 = scmp.eq.s32.totalorder %s24, 0
    %p188 = por %p186, %p187
    %p189 = scmp.ne.s32.totalorder %s178, %s181
    %p190 = scmp.eq.s32.totalorder %s29, 5
    %p191 = por %p189, %p190
    %p192 = scmp.ne.s32.totalorder %s181, %s182
    %p193 = scmp.eq.s32.totalorder %s29, 0
    %p194 = por %p192, %p193
    %p195 = scmp.ne.s32.totalorder %s181, %s182
    %p196 = scmp.eq.s32.totalorder %s30, 5
    %p197 = por %p195, %p196
    %p199 = scmp.ne.s32.totalorder %s182, %s198
    %p200 = scmp.eq.s32.totalorder %s30, 0
    %p201 = por %p199, %p200
    %s202 = ssub.s32 %s24, %s31
    %p203 = scmp.eq.s32.totalorder %s202, 0
    %s205 = sadd.s32 %s204, 1
    %s206 = scalar_select %p203, %s204, %s205
    %p209 = pneg %p203
    %p210 = scmp.eq.s32.totalorder %s24, 5
    %p211 = por %p209, %p210
    %p212 = scmp.ne.s32.totalorder %s204, %s207
    %p213 = scmp.eq.s32.totalorder %s24, 0
    %p214 = por %p212, %p213
    %p215 = scmp.ne.s32.totalorder %s204, %s207
    %p216 = scmp.eq.s32.totalorder %s29, 5
    %p217 = por %p215, %p216
    %p218 = scmp.ne.s32.totalorder %s207, %s208
    %p219 = scmp.eq.s32.totalorder %s29, 0
    %p220 = por %p218, %p219
    %p221 = scmp.ne.s32.totalorder %s207, %s208
    %p222 = scmp.eq.s32.totalorder %s30, 5
    %p223 = por %p221, %p222
    %p225 = scmp.ne.s32.totalorder %s208, %s224
    %p226 = scmp.eq.s32.totalorder %s30, 0
    %p227 = por %p225, %p226
    %s229 = sadd.s32 %s228, 1
    %p232 = scmp.eq.s32.totalorder %s24, 5
    %p233 = scmp.ne.s32.totalorder %s228, %s230
    %p234 = scmp.eq.s32.totalorder %s24, 0
    %p235 = por %p233, %p234
    %p236 = scmp.ne.s32.totalorder %s228, %s230
    %p237 = scmp.eq.s32.totalorder %s29, 5
    %p238 = por %p236, %p237
    %p239 = scmp.ne.s32.totalorder %s230, %s231
    %p240 = scmp.eq.s32.totalorder %s29, 0
    %p241 = por %p239, %p240
    %p242 = scmp.ne.s32.totalorder %s230, %s231
    %p243 = scmp.eq.s32.totalorder %s30, 5
    %p244 = por %p242, %p243
    %p246 = scmp.ne.s32.totalorder %s231, %s245
    %p247 = scmp.eq.s32.totalorder %s30, 0
    %p248 = por %p246, %p247
    %s250 = sadd.s32 %s249, 1
    %p253 = scmp.eq.s32.totalorder %s24, 5
    %p254 = scmp.ne.s32.totalorder %s249, %s251
    %p255 = scmp.eq.s32.totalorder %s24, 0
    %p256 = por %p254, %p255
    %p257 = scmp.ne.s32.totalorder %s249, %s251
    %p258 = scmp.eq.s32.totalorder %s29, 5
    %p259 = por %p257, %p258
    %p260 = scmp.ne.s32.totalorder %s251, %s252
    %p261 = scmp.eq.s32.totalorder %s29, 0
    %p262 = por %p260, %p261
    %p263 = scmp.ne.s32.totalorder %s251, %s252
    %p264 = scmp.eq.s32.totalorder %s30, 5
    %p265 = por %p263, %p264
    %p267 = scmp.ne.s32.totalorder %s252, %s266
    %p268 = scmp.eq.s32.totalorder %s30, 0
    %p269 = por %p267, %p268
    %s270 = ssub.s32 %s24, %s31
    %p271 = scmp.eq.s32.totalorder %s270, 0
    %s273 = sadd.s32 %s272, 1
    %s274 = scalar_select %p271, %s272, %s273
    %p277 = pneg %p271
    %p278 = scmp.eq.s32.totalorder %s24, 5
    %p279 = por %p277, %p278
    %p280 = scmp.ne.s32.totalorder %s272, %s275
    %p281 = scmp.eq.s32.totalorder %s24, 0
    %p282 = por %p280, %p281
    %p283 = scmp.ne.s32.totalorder %s272, %s275
    %p284 = scmp.eq.s32.totalorder %s29, 5
    %p285 = por %p283, %p284
    %p286 = scmp.ne.s32.totalorder %s275, %s276
    %p287 = scmp.eq.s32.totalorder %s29, 0
    %p288 = por %p286, %p287
    %p289 = scmp.ne.s32.totalorder %s275, %s276
    %p290 = scmp.eq.s32.totalorder %s30, 5
    %p291 = por %p289, %p290
    %p293 = scmp.ne.s32.totalorder %s276, %s292
    %p294 = scmp.eq.s32.totalorder %s30, 0
    %p295 = por %p293, %p294
    %s296 = ssub.s32 %s24, %s31
    %p297 = scmp.eq.s32.totalorder %s296, 0
    %s299 = sadd.s32 %s298, 1
    %s300 = scalar_select %p297, %s298, %s299
    %p303 = pneg %p297
    %p304 = scmp.eq.s32.totalorder %s24, 5
    %p305 = por %p303, %p304
    %p306 = scmp.ne.s32.totalorder %s298, %s301
    %p307 = scmp.eq.s32.totalorder %s24, 0
    %p308 = por %p306, %p307
    %p309 = scmp.ne.s32.totalorder %s298, %s301
    %p310 = scmp.eq.s32.totalorder %s29, 5
    %p311 = por %p309, %p310
    %p312 = scmp.ne.s32.totalorder %s301, %s302
    %p313 = scmp.eq.s32.totalorder %s29, 0
    %p314 = por %p312, %p313
    %p315 = scmp.ne.s32.totalorder %s301, %s302
    %p316 = scmp.eq.s32.totalorder %s30, 5
    %p317 = por %p315, %p316
    %p319 = scmp.ne.s32.totalorder %s302, %s318
    %p320 = scmp.eq.s32.totalorder %s30, 0
    %p321 = por %p319, %p320
    %p322 = scmp.le.s32.totalorder 1, %s24
    %p323 = scmp.lt.s32.totalorder %s24, 7
    %p324 = pnand %p322, %p323
    %p325 = pneg %p324
    // Predicated region
    $region9: #{han_forward.7} parent=5 // pred_check
      _
    $region10: #{han_forward.7} parent=5 // pred_check_branch
      %327 = sbr.rel (%p324) target = $region12
    $region11: #{han_forward.7} parent=5 // pred_region
      %s328 = ssub.s32 %s24, 1
      // Predicated region
      $region13: #{han_forward.7} parent=11 // pred_check
        %p329 = pneg %p241
      $region14: #{han_forward.7} parent=11 // pred_check_branch
        %331 = sbr.rel (%p329) target = $region16
      $region15: #{han_forward.7} parent=11 // pred_region
        _
      $region16: #{han_forward.7} parent=11 // pred_fallthru
        _
      // Predicated region
      $region17: #{han_forward.7} parent=11 // pred_check
        %p332 = pneg %p262
      $region18: #{han_forward.7} parent=11 // pred_check_branch
        %334 = sbr.rel (%p332) target = $region20
      $region19: #{han_forward.7} parent=11 // pred_region
        _
      $region20: #{han_forward.7} parent=11 // pred_fallthru
        _
    $region12: #{han_forward.7} parent=5 // pred_fallthru
      _
    %p335 = scmp.lt.s32.totalorder %s24, 6
    // Predicated region
    $region21: #{han_forward.7} parent=5 // pred_check
      %p336 = pneg %p335
    $region22: #{han_forward.7} parent=5 // pred_check_branch
      %338 = sbr.rel (%p336) target = $region24
    $region23: #{han_forward.7} parent=5 // pred_region
      // Predicated region
      $region25: #{han_forward.7} parent=23 // pred_check
        %p339 = pneg %p48
      $region26: #{han_forward.7} parent=23 // pred_check_branch
        %341 = sbr.rel (%p339) target = $region28
      $region27: #{han_forward.7} parent=23 // pred_region
        %s342 = smul.u32 %s24, 128
        %s343 = sld [smem:[#allocation3 + %s342]]
        %p344 = scmp.lt.s32.totalorder %s343, 3
        %s345 = scalar_select %p344, %s343, 3
        %s346 = smul.addr %s345, 2
        %s347 = smul.addr %s346, 4
        %s348 = scalar_lea.vmem %s1, %s347
        %s349 = smul.u32 %s24, 128
        %s350 = sld [smem:[#allocation3 + %s349]]
      $region28: #{han_forward.7} parent=23 // pred_fallthru
        _
      // Predicated region
      $region29: #{han_forward.7} parent=23 // pred_check
        %p351 = pneg %p78
      $region30: #{han_forward.7} parent=23 // pred_check_branch
        %353 = sbr.rel (%p351) target = $region32
      $region31: #{han_forward.7} parent=23 // pred_region
        %s354 = smul.u32 %s24, 128
        %s355 = sld [smem:[#allocation3 + %s354]]
        %p356 = scmp.lt.s32.totalorder %s355, 3
        %s357 = scalar_select %p356, %s355, 3
        %s358 = smul.addr %s357, 16
        %s359 = smul.addr %s358, 4
        %s360 = scalar_lea.vmem %s2, %s359
        %s361 = smul.u32 %s24, 128
        %s362 = sld [smem:[#allocation3 + %s361]]
      $region32: #{han_forward.7} parent=23 // pred_fallthru
        _
      // Predicated region
      $region33: #{han_forward.7} parent=23 // pred_check
        %p363 = pneg %p110
      $region34: #{han_forward.7} parent=23 // pred_check_branch
        %365 = sbr.rel (%p363) target = $region36
      $region35: #{han_forward.7} parent=23 // pred_region
        %s366 = smul.u32 %s24, 128
        %s367 = sadd.s32 %s366, 1
        %s368 = sld [smem:[#allocation3 + %s367]]
        %p369 = scmp.lt.s32.totalorder %s368, 3
        %s370 = scalar_select %p369, %s368, 3
        %s371 = smul.addr %s370, 2
        %s372 = smul.addr %s371, 4
        %s373 = scalar_lea.vmem %s3, %s372
        %s374 = smul.u32 %s24, 128
        %s375 = sadd.s32 %s374, 1
        %s376 = sld [smem:[#allocation3 + %s375]]
      $region36: #{han_forward.7} parent=23 // pred_fallthru
        _
      // Predicated region
      $region37: #{han_forward.7} parent=23 // pred_check
        %p377 = pneg %p136
      $region38: #{han_forward.7} parent=23 // pred_check_branch
        %379 = sbr.rel (%p377) target = $region40
      $region39: #{han_forward.7} parent=23 // pred_region
        %p380 = scmp.lt.s32.totalorder %s24, 5
        %s381 = scalar_select %p380, %s24, 5
        %s382 = scalar_lea.vmem %s4, %s381
      $region40: #{han_forward.7} parent=23 // pred_fallthru
        _
      // Predicated region
      $region41: #{han_forward.7} parent=23 // pred_check
        %p383 = pneg %p162
      $region42: #{han_forward.7} parent=23 // pred_check_branch
        %385 = sbr.rel (%p383) target = $region44
      $region43: #{han_forward.7} parent=23 // pred_region
        %p386 = scmp.lt.s32.totalorder %s24, 5
        %s387 = scalar_select %p386, %s24, 5
        %s388 = smul.addr %s387, 16
        %s389 = smul.addr %s388, 4
        %s390 = scalar_lea.vmem %s5, %s389
      $region44: #{han_forward.7} parent=23 // pred_fallthru
        _
      // Predicated region
      $region45: #{han_forward.7} parent=23 // pred_check
        %p391 = pneg %p188
      $region46: #{han_forward.7} parent=23 // pred_check_branch
        %393 = sbr.rel (%p391) target = $region48
      $region47: #{han_forward.7} parent=23 // pred_region
        %p394 = scmp.lt.s32.totalorder %s24, 5
        %s395 = scalar_select %p394, %s24, 5
        %s396 = smul.addr %s395, 2
        %s397 = smul.addr %s396, 4
        %s398 = scalar_lea.vmem %s6, %s397
      $region48: #{han_forward.7} parent=23 // pred_fallthru
        _
      // Predicated region
      $region49: #{han_forward.7} parent=23 // pred_check
        %p399 = pneg %p214
      $region50: #{han_forward.7} parent=23 // pred_check_branch
        %401 = sbr.rel (%p399) target = $region52
      $region51: #{han_forward.7} parent=23 // pred_region
        %p402 = scmp.lt.s32.totalorder %s24, 5
        %s403 = scalar_select %p402, %s24, 5
        %s404 = smul.addr %s403, 2
        %s405 = smul.addr %s404, 8
        %s406 = scalar_lea.vmem %s7, %s405
      $region52: #{han_forward.7} parent=23 // pred_fallthru
        _
    $region24: #{han_forward.7} parent=5 // pred_fallthru
      _
    %p407 = scmp.le.s32.totalorder 1, %s24
    %p408 = scmp.lt.s32.totalorder %s24, 7
    %p409 = pnand %p407, %p408
    %p410 = pneg %p409
    // Predicated region
    $region53: #{han_forward.7} parent=5 // pred_check
      _
    $region54: #{han_forward.7} parent=5 // pred_check_branch
      %412 = sbr.rel (%p409) target = $region56
    $region55: #{han_forward.7} parent=5 // pred_region
      %s413 = ssub.s32 %s24, 1
      %s414 = smul.u32 %s29, 128
      %s415 = sld [smem:[#allocation3 + %s414]]
      %p416 = scmp.lt.s32.totalorder %s415, 3
      %s417 = scalar_select %p416, %s415, 3
      %s418 = smul.addr %s417, 2
      %s419 = smul.addr %s418, 4
      %s420 = scalar_lea.vmem %s1, %s419
      %p421 = pneg %p54
      %p422 = pneg %p51
      %s423 = smul.u32 %s29, 128
      %s424 = sld [smem:[#allocation3 + %s423]]
      %p425 = scmp.lt.s32.totalorder %s424, 3
      %s426 = scalar_select %p425, %s424, 3
      %s427 = smul.addr %s426, 16
      %s428 = smul.addr %s427, 4
      %s429 = scalar_lea.vmem %s2, %s428
      %p430 = pneg %p84
      %p431 = pneg %p81
      %s432 = smul.u32 %s29, 128
      %s433 = sadd.s32 %s432, 1
      %s434 = sld [smem:[#allocation3 + %s433]]
      %p435 = scmp.lt.s32.totalorder %s434, 3
      %s436 = scalar_select %p435, %s434, 3
      %s437 = smul.addr %s436, 2
      %s438 = smul.addr %s437, 4
      %s439 = scalar_lea.vmem %s3, %s438
      %p440 = pneg %p116
      %p441 = pneg %p113
      %p442 = scmp.lt.s32.totalorder %s29, 5
      %s443 = scalar_select %p442, %s29, 5
      %s444 = scalar_lea.vmem %s4, %s443
      %p445 = pneg %p142
      %p446 = pneg %p139
      %p447 = scmp.lt.s32.totalorder %s29, 5
      %s448 = scalar_select %p447, %s29, 5
      %s449 = smul.addr %s448, 16
      %s450 = smul.addr %s449, 4
      %s451 = scalar_lea.vmem %s5, %s450
      %p452 = pneg %p168
      %p453 = pneg %p165
      %p454 = scmp.lt.s32.totalorder %s29, 5
      %s455 = scalar_select %p454, %s29, 5
      %s456 = smul.addr %s455, 2
      %s457 = smul.addr %s456, 4
      %s458 = scalar_lea.vmem %s6, %s457
      %p459 = pneg %p194
      %p460 = pneg %p191
      %p461 = scmp.lt.s32.totalorder %s29, 5
      %s462 = scalar_select %p461, %s29, 5
      %s463 = smul.addr %s462, 2
      %s464 = smul.addr %s463, 8
      %s465 = scalar_lea.vmem %s7, %s464
      %p466 = pneg %p220
      %p467 = pneg %p217
      %p468 = pneg %p241
      %p469 = pneg %p238
      %p470 = pneg %p262
      %p471 = pneg %p259
      %p472 = pneg %p288
      %p473 = pneg %p285
      %p474 = scmp.lt.s32.totalorder %s29, 5
      %s475 = scalar_select %p474, %s29, 5
      %s476 = smul.addr %s475, 2
      %s477 = smul.addr %s476, 8
      %s478 = scalar_lea.vmem %s10, %s477
      %p479 = pneg %p314
      %p480 = pneg %p311
      %p481 = scmp.lt.s32.totalorder %s29, 5
      %s482 = scalar_select %p481, %s29, 5
      %s483 = scalar_lea.vmem %s11, %s482
      %s484 = smul.u32 %s29, 128
      %s485 = sld [smem:[#allocation3 + %s484]]
      %p486 = scmp.lt.s32.totalorder %s485, 3
      %s487 = scalar_select %p486, %s485, 3
      %s488 = smul.addr %s487, 2
      %s489 = smul.addr %s488, 4
      %s490 = scalar_lea.vmem %s1, %s489
      %s491 = smul.u32 %s29, 128
      %s492 = sld [smem:[#allocation3 + %s491]]
      %s493 = smul.u32 %s29, 128
      %s494 = sld [smem:[#allocation3 + %s493]]
      %p495 = scmp.lt.s32.totalorder %s494, 3
      %s496 = scalar_select %p495, %s494, 3
      %s497 = smul.addr %s496, 16
      %s498 = smul.addr %s497, 4
      %s499 = scalar_lea.vmem %s2, %s498
      %s500 = smul.u32 %s29, 128
      %s501 = sld [smem:[#allocation3 + %s500]]
      %s502 = smul.u32 %s29, 128
      %s503 = sadd.s32 %s502, 1
      %s504 = sld [smem:[#allocation3 + %s503]]
      %p505 = scmp.lt.s32.totalorder %s504, 3
      %s506 = scalar_select %p505, %s504, 3
      %s507 = smul.addr %s506, 2
      %s508 = smul.addr %s507, 4
      %s509 = scalar_lea.vmem %s3, %s508
      %s510 = smul.u32 %s29, 128
      %s511 = sadd.s32 %s510, 1
      %s512 = sld [smem:[#allocation3 + %s511]]
      %p513 = scmp.lt.s32.totalorder %s29, 5
      %s514 = scalar_select %p513, %s29, 5
      %s515 = scalar_lea.vmem %s4, %s514
      %p516 = scmp.lt.s32.totalorder %s29, 5
      %s517 = scalar_select %p516, %s29, 5
      %s518 = smul.addr %s517, 16
      %s519 = smul.addr %s518, 4
      %s520 = scalar_lea.vmem %s5, %s519
      %p521 = scmp.lt.s32.totalorder %s29, 5
      %s522 = scalar_select %p521, %s29, 5
      %s523 = smul.addr %s522, 2
      %s524 = smul.addr %s523, 4
      %s525 = scalar_lea.vmem %s6, %s524
      %p526 = scmp.lt.s32.totalorder %s29, 5
      %s527 = scalar_select %p526, %s29, 5
      %s528 = smul.addr %s527, 2
      %s529 = smul.addr %s528, 8
      %s530 = scalar_lea.vmem %s7, %s529
      %p531 = scmp.lt.s32.totalorder %s29, 5
      %s532 = scalar_select %p531, %s29, 5
      %s533 = smul.addr %s532, 2
      %s534 = smul.addr %s533, 8
      %s535 = scalar_lea.vmem %s10, %s534
      %p536 = scmp.lt.s32.totalorder %s29, 5
      %s537 = scalar_select %p536, %s29, 5
      %s538 = scalar_lea.vmem %s11, %s537
      %v540 = vld [vmem:[%s490] sm:$0xf]
      %v541 = vld [vmem:[%s490 + $0x4] sm:$0xf]
      %v542 = vld [vmem:[%s515] sm:$0x1]
      %v543 = vld [vmem:[%s499] sm:$0xf]
      %v544 = vld [vmem:[%s499 + $0x4] sm:$0xf]
      %v545 = vld [vmem:[%s499 + $0x8] sm:$0xf]
      %v546 = vld [vmem:[%s499 + $0xc] sm:$0xf]
      %v547 = vld [vmem:[%s499 + $0x10] sm:$0xf]
      %v548 = vld [vmem:[%s499 + $0x14] sm:$0xf]
      %v549 = vld [vmem:[%s499 + $0x18] sm:$0xf]
      %v550 = vld [vmem:[%s499 + $0x1c] sm:$0xf]
      %v551 = vld [vmem:[%s499 + $0x20] sm:$0xf]
      %v552 = vld [vmem:[%s499 + $0x24] sm:$0xf]
      %v553 = vld [vmem:[%s499 + $0x28] sm:$0xf]
      %v554 = vld [vmem:[%s499 + $0x2c] sm:$0xf]
      %v555 = vld [vmem:[%s499 + $0x30] sm:$0xf]
      %v556 = vld [vmem:[%s499 + $0x34] sm:$0xf]
      %v557 = vld [vmem:[%s499 + $0x38] sm:$0xf]
      %v558 = vld [vmem:[%s499 + $0x3c] sm:$0xf]
      %v575 = vunpack.c.l.b16 %v543
      %v576 = vunpack.c.l.b16 %v544
      %v577 = vunpack.c.l.b16 %v545
      %v578 = vunpack.c.l.b16 %v546
      %v579 = vunpack.c.l.b16 %v547
      %v580 = vunpack.c.l.b16 %v548
      %v581 = vunpack.c.l.b16 %v549
      %v582 = vunpack.c.l.b16 %v550
      %v583 = vunpack.c.l.b16 %v551
      %v584 = vunpack.c.l.b16 %v552
      %v585 = vunpack.c.l.b16 %v553
      %v586 = vunpack.c.l.b16 %v554
      %v587 = vunpack.c.l.b16 %v555
      %v588 = vunpack.c.l.b16 %v556
      %v589 = vunpack.c.l.b16 %v557
      %v590 = vunpack.c.l.b16 %v558
      %v591 = vpack.c.b16 %v576, %v575
      %v592 = vpack.c.b16 %v578, %v577
      %v593 = vpack.c.b16 %v580, %v579
      %v594 = vpack.c.b16 %v582, %v581
      %v595 = vpack.c.b16 %v584, %v583
      %v596 = vpack.c.b16 %v586, %v585
      %v597 = vpack.c.b16 %v588, %v587
      %v598 = vpack.c.b16 %v590, %v589
      %607 = vmatprep.subr.bf16.mxu0 0
      %608 = vmatpush1.bf16.msra.mxu0 %v591
      %609 = vmatprep.subr.bf16.mxu0 0
      %610 = vmatpush1.bf16.msra.mxu0 %v592
      %611 = vmatprep.subr.bf16.mxu0 0
      %612 = vmatpush1.bf16.msra.mxu0 %v593
      %613 = vmatprep.subr.bf16.mxu0 0
      %614 = vmatpush1.bf16.msra.mxu0 %v594
      %615 = vmatprep.subr.bf16.mxu0 0
      %616 = vmatpush1.bf16.msra.mxu0 %v595
      %617 = vmatprep.subr.bf16.mxu0 0
      %618 = vmatpush1.bf16.msra.mxu0 %v596
      %619 = vmatprep.subr.bf16.mxu0 0
      %620 = vmatpush1.bf16.msra.mxu0 %v597
      %621 = vmatprep.subr.bf16.mxu0 0
      %622 = vmatpush1.bf16.msra.mxu0 %v598
      %623 = vmatprep.subr.bf16.mxu0 0
      %624 = vmatpush1.bf16.msra.mxu0 0
      %625 = vmatprep.subr.bf16.mxu0 0
      %626 = vmatpush1.bf16.msra.mxu0 0
      %627 = vmatprep.subr.bf16.mxu0 0
      %628 = vmatpush1.bf16.msra.mxu0 0
      %629 = vmatprep.subr.bf16.mxu0 0
      %630 = vmatpush1.bf16.msra.mxu0 0
      %631 = vmatprep.subr.bf16.mxu0 0
      %632 = vmatpush1.bf16.msra.mxu0 0
      %633 = vmatprep.subr.bf16.mxu0 0
      %634 = vmatpush1.bf16.msra.mxu0 0
      %635 = vmatprep.subr.bf16.mxu0 0
      %636 = vmatpush1.bf16.msra.mxu0 0
      %637 = vmatprep.subr.bf16.mxu0 0
      %638 = vmatpush1.bf16.msra.mxu0 0
      %639 = vmatprep.mubr.bf16.mxu0 0
      %640 = vmatmul.mubr.bf16.gmra.mrb[0].mxu0 %v542
      %v641 = vpop.f32.mrb[0].mxu0
      %v642 = vadd.f32 0.0, %v641
      %v643 = vpop.f32.mrb[0].mxu0
      %v644 = vpop.f32.mrb[0].mxu0
      %v645 = vpop.f32.mrb[0].mxu0
      %646 = vdwg.mxu0
      %v647 = vld [vmem:[%s509] sm:$0xf]
      %v648 = vld [vmem:[%s509 + $0x4] sm:$0xf]
      %v649 = vld [vmem:[%s520] sm:$0xf]
      %v650 = vld [vmem:[%s520 + $0x4] sm:$0xf]
      %v651 = vld [vmem:[%s520 + $0x8] sm:$0xf]
      %v652 = vld [vmem:[%s520 + $0xc] sm:$0xf]
      %v653 = vld [vmem:[%s520 + $0x10] sm:$0xf]
      %v654 = vld [vmem:[%s520 + $0x14] sm:$0xf]
      %v655 = vld [vmem:[%s520 + $0x18] sm:$0xf]
      %v656 = vld [vmem:[%s520 + $0x1c] sm:$0xf]
      %v657 = vld [vmem:[%s520 + $0x20] sm:$0xf]
      %v658 = vld [vmem:[%s520 + $0x24] sm:$0xf]
      %v659 = vld [vmem:[%s520 + $0x28] sm:$0xf]
      %v660 = vld [vmem:[%s520 + $0x2c] sm:$0xf]
      %v661 = vld [vmem:[%s520 + $0x30] sm:$0xf]
      %v662 = vld [vmem:[%s520 + $0x34] sm:$0xf]
      %v663 = vld [vmem:[%s520 + $0x38] sm:$0xf]
      %v664 = vld [vmem:[%s520 + $0x3c] sm:$0xf]
      %v667 = vunpack.c.l.b16 %v647
      %v668 = vunpack.c.l.b16 %v648
      %v669 = vpack.c.b16 %v668, %v667
      %v687 = vunpack.c.l.b16 %v649
      %v688 = vunpack.c.l.b16 %v650
      %v689 = vunpack.c.l.b16 %v651
      %v690 = vunpack.c.l.b16 %v652
      %v691 = vunpack.c.l.b16 %v653
      %v692 = vunpack.c.l.b16 %v654
      %v693 = vunpack.c.l.b16 %v655
      %v694 = vunpack.c.l.b16 %v656
      %v695 = vunpack.c.l.b16 %v657
      %v696 = vunpack.c.l.b16 %v658
      %v697 = vunpack.c.l.b16 %v659
      %v698 = vunpack.c.l.b16 %v660
      %v699 = vunpack.c.l.b16 %v661
      %v700 = vunpack.c.l.b16 %v662
      %v701 = vunpack.c.l.b16 %v663
      %v702 = vunpack.c.l.b16 %v664
      %v703 = vpack.c.b16 %v688, %v687
      %v704 = vpack.c.b16 %v690, %v689
      %v705 = vpack.c.b16 %v692, %v691
      %v706 = vpack.c.b16 %v694, %v693
      %v707 = vpack.c.b16 %v696, %v695
      %v708 = vpack.c.b16 %v698, %v697
      %v709 = vpack.c.b16 %v700, %v699
      %v710 = vpack.c.b16 %v702, %v701
      %719 = vmatprep.subr.bf16.mxu0 0
      %720 = vmatpush1.bf16.msra.mxu0 %v703
      %721 = vmatprep.subr.bf16.mxu0 0
      %722 = vmatpush1.bf16.msra.mxu0 %v704
      %723 = vmatprep.subr.bf16.mxu0 0
      %724 = vmatpush1.bf16.msra.mxu0 %v705
      %725 = vmatprep.subr.bf16.mxu0 0
      %726 = vmatpush1.bf16.msra.mxu0 %v706
      %727 = vmatprep.subr.bf16.mxu0 0
      %728 = vmatpush1.bf16.msra.mxu0 %v707
      %729 = vmatprep.subr.bf16.mxu0 0
      %730 = vmatpush1.bf16.msra.mxu0 %v708
      %731 = vmatprep.subr.bf16.mxu0 0
      %732 = vmatpush1.bf16.msra.mxu0 %v709
      %733 = vmatprep.subr.bf16.mxu0 0
      %734 = vmatpush1.bf16.msra.mxu0 %v710
      %735 = vmatprep.subr.bf16.mxu0 0
      %736 = vmatpush1.bf16.msra.mxu0 0
      %737 = vmatprep.subr.bf16.mxu0 0
      %738 = vmatpush1.bf16.msra.mxu0 0
      %739 = vmatprep.subr.bf16.mxu0 0
      %740 = vmatpush1.bf16.msra.mxu0 0
      %741 = vmatprep.subr.bf16.mxu0 0
      %742 = vmatpush1.bf16.msra.mxu0 0
      %743 = vmatprep.subr.bf16.mxu0 0
      %744 = vmatpush1.bf16.msra.mxu0 0
      %745 = vmatprep.subr.bf16.mxu0 0
      %746 = vmatpush1.bf16.msra.mxu0 0
      %747 = vmatprep.subr.bf16.mxu0 0
      %748 = vmatpush1.bf16.msra.mxu0 0
      %749 = vmatprep.subr.bf16.mxu0 0
      %750 = vmatpush1.bf16.msra.mxu0 0
      %751 = vmatprep.mubr.bf16.mxu0 0
      %752 = vmatmul.mubr.bf16.gmra.mrb[0].mxu0 %v669
      %v753 = vpop.f32.mrb[0].mxu0
      %v754 = vadd.f32 0.0, %v753
      %v755 = vpop.f32.mrb[0].mxu0
      %v756 = vpop.f32.mrb[0].mxu0
      %v757 = vadd.f32 0.0, %v756
      %v758 = vpop.f32.mrb[0].mxu0
      %759 = vdwg.mxu0
      %v760 = vld [vmem:[%s525] sm:$0xf]
      %v761 = vld [vmem:[%s525 + $0x4] sm:$0xf]
      %v762 = vunpack.c.l.bf16 %v760
      %v763 = vunpack.c.l.bf16 %v761
      %764 = vst [vmem:[%s535] sm:$0xff] 0.0
      %765 = vst [vmem:[%s535 + $0x8] sm:$0xff] 0.0
      %767 = vset.pattern.permute.xlu0 0
      %768 = vperm.xlu0 %767, %v754
      %v769 = vpop.permute.xlu0 %768
      %772 = vset.pattern.permute.xlu0 0
      %773 = vperm.xlu0 %772, %v757
      %v774 = vpop.permute.xlu0 %773
      %v776 = vlaneseq
      %v777 = vshrl.u32 %v776, 7
      %v778 = vsub.s32 0, %v777
      %v779 = vrot.slane %v642, %v778
      %v780 = vadd.f32 %v769, %v779
      %v781 = vadd.f32 %v774, %v779
      %vm782 = vcmp.ge.f32.partialorder %v780, 0.0
      %vm783 = vcmp.ge.f32.partialorder %v781, 0.0
      %v784 = vmul.f32 %v780, 0.2
      %v785 = vmul.f32 %v781, 0.2
      %v786 = vsel %vm782, %v780, %v784
      %v787 = vsel %vm783, %v781, %v785
      %v788 = vadd.f32 %v786, %v762
      %v789 = vadd.f32 %v787, %v763
      %vm790 = vcmask 130048
      %v791 = vsel %vm790, %v788, -inf
      %792 = vmax.xlane.f32.xlu0 %v791
      %v793 = vpop.xlane.xlu0 %792
      %v794 = vsel %vm790, %v789, -inf
      %795 = vmax.xlane.f32.xlu0 %v794
      %v796 = vpop.xlane.xlu0 %795
      %v797 = vsub.f32 %v788, %v793
      %v798 = vsub.f32 %v789, %v796
      %v799 = vmul.f32 %v797, 1.442695
      %v800 = vpow.pop %v799
      %v801 = vmul.f32 %v798, 1.442695
      %v802 = vpow.pop %v801
      %v803 = vsel %vm790, %v800, 0.0
      %804 = vadd.xlane.f32.xlu0 %v803
      %v805 = vpop.xlane.xlu0 %804
      %v806 = vsel %vm790, %v802, 0.0
      %807 = vadd.xlane.f32.xlu0 %v806
      %v808 = vpop.xlane.xlu0 %807
      %vm809 = vcmp.gt.f32.partialorder %v793, -1e+20
      %vm810 = vcmp.gt.f32.partialorder %v796, -1e+20
      %v811 = vrcp.pop %v805
      %v812 = vrcp.pop %v808
      %v813 = vsel %vm809, %v811, 0.0
      %v814 = vsel %vm810, %v812, 0.0
      %v815 = vmul.f32 %v800, %v813
      %v816 = vmul.f32 %v802, %v814
      %v817 = vpack.c.bf16 %v816, %v815
      %v820 = vunpack.c.l.b16 %v540
      %v821 = vunpack.c.l.b16 %v541
      %v822 = vpack.c.b16 %v821, %v820
      %v825 = vsel %vm790, %v817, 0
      %827 = vmatprep.subr.bf16.mxu0 0
      %828 = vmatpush1.bf16.msra.mxu0 %v822
      %829 = vmatprep.subr.bf16.mxu0 0
      %830 = vmatpush1.bf16.msra.mxu0 0
      %831 = vmatprep.subr.bf16.mxu0 0
      %832 = vmatpush1.bf16.msra.mxu0 0
      %833 = vmatprep.subr.bf16.mxu0 0
      %834 = vmatpush1.bf16.msra.mxu0 0
      %835 = vmatprep.subr.bf16.mxu0 0
      %836 = vmatpush1.bf16.msra.mxu0 0
      %837 = vmatprep.subr.bf16.mxu0 0
      %838 = vmatpush1.bf16.msra.mxu0 0
      %839 = vmatprep.subr.bf16.mxu0 0
      %840 = vmatpush1.bf16.msra.mxu0 0
      %841 = vmatprep.subr.bf16.mxu0 0
      %842 = vmatpush1.bf16.msra.mxu0 0
      %843 = vmatprep.subr.bf16.mxu0 0
      %844 = vmatpush1.bf16.msra.mxu0 0
      %845 = vmatprep.subr.bf16.mxu0 0
      %846 = vmatpush1.bf16.msra.mxu0 0
      %847 = vmatprep.subr.bf16.mxu0 0
      %848 = vmatpush1.bf16.msra.mxu0 0
      %849 = vmatprep.subr.bf16.mxu0 0
      %850 = vmatpush1.bf16.msra.mxu0 0
      %851 = vmatprep.subr.bf16.mxu0 0
      %852 = vmatpush1.bf16.msra.mxu0 0
      %853 = vmatprep.subr.bf16.mxu0 0
      %854 = vmatpush1.bf16.msra.mxu0 0
      %855 = vmatprep.subr.bf16.mxu0 0
      %856 = vmatpush1.bf16.msra.mxu0 0
      %857 = vmatprep.subr.bf16.mxu0 0
      %858 = vmatpush1.bf16.msra.mxu0 0
      %859 = vmatprep.mubr.bf16.mxu0 0
      %860 = vmatmul.mubr.bf16.gmra.mrb[0].mxu0 %v825
      %v861 = vpop.f32.mrb[0].mxu0
      %v862 = vadd.f32 0.0, %v861
      %v863 = vpop.f32.mrb[0].mxu0
      %v864 = vpop.f32.mrb[0].mxu0
      %v865 = vadd.f32 0.0, %v864
      %v866 = vpop.f32.mrb[0].mxu0
      %867 = vdwg.mxu0
      %v868 = vmax.f32 %v862, 0.0
      %v869 = vmax.f32 %v865, 0.0
      %vm870 = vcmask 64512
      %871 = vst.msk [vmem:[%s535] sm:$0xff] %vm870, %v868
      %872 = vst.msk [vmem:[%s535 + $0x8] sm:$0xff] %vm870, %v869
      %873 = vset.pattern.permute.xlu0 1
      %874 = vperm.xlu0 %873, %v754
      %v875 = vpop.permute.xlu0 %874
      %877 = vset.pattern.permute.xlu0 1
      %878 = vperm.xlu0 %877, %v757
      %v879 = vpop.permute.xlu0 %878
      %v881 = vlaneseq
      %v882 = vshrl.u32 %v881, 7
      %v883 = vsub.s32 1, %v882
      %v884 = vrot.slane %v642, %v883
      %v885 = vadd.f32 %v875, %v884
      %v886 = vadd.f32 %v879, %v884
      %vm887 = vcmp.ge.f32.partialorder %v885, 0.0
      %vm888 = vcmp.ge.f32.partialorder %v886, 0.0
      %v889 = vmul.f32 %v885, 0.2
      %v890 = vmul.f32 %v886, 0.2
      %v891 = vsel %vm887, %v885, %v889
      %v892 = vsel %vm888, %v886, %v890
      %v893 = vadd.f32 %v891, %v762
      %v894 = vadd.f32 %v892, %v763
      %v895 = vsel %vm790, %v893, -inf
      %896 = vmax.xlane.f32.xlu0 %v895
      %v897 = vpop.xlane.xlu0 %896
      %v898 = vsel %vm790, %v894, -inf
      %899 = vmax.xlane.f32.xlu0 %v898
      %v900 = vpop.xlane.xlu0 %899
      %v901 = vsub.f32 %v893, %v897
      %v902 = vsub.f32 %v894, %v900
      %v903 = vmul.f32 %v901, 1.442695
      %v904 = vpow.pop %v903
      %v905 = vmul.f32 %v902, 1.442695
      %v906 = vpow.pop %v905
      %v907 = vsel %vm790, %v904, 0.0
      %908 = vadd.xlane.f32.xlu0 %v907
      %v909 = vpop.xlane.xlu0 %908
      %v910 = vsel %vm790, %v906, 0.0
      %911 = vadd.xlane.f32.xlu0 %v910
      %v912 = vpop.xlane.xlu0 %911
      %vm913 = vcmp.gt.f32.partialorder %v897, -1e+20
      %vm914 = vcmp.gt.f32.partialorder %v900, -1e+20
      %v915 = vrcp.pop %v909
      %v916 = vrcp.pop %v912
      %v917 = vsel %vm913, %v915, 0.0
      %v918 = vsel %vm914, %v916, 0.0
      %v919 = vmul.f32 %v904, %v917
      %v920 = vmul.f32 %v906, %v918
      %v921 = vpack.c.bf16 %v920, %v919
      %922 = vrot.lane.b32.xlu0 %v822, 120
      %v923 = vpop.permute.xlu0 %922
      %v926 = vsel %vm790, %v921, 0
      %928 = vmatprep.subr.bf16.mxu0 0
      %929 = vmatpush1.bf16.msra.mxu0 %v923
      %930 = vmatprep.subr.bf16.mxu0 0
      %931 = vmatpush1.bf16.msra.mxu0 0
      %932 = vmatprep.subr.bf16.mxu0 0
      %933 = vmatpush1.bf16.msra.mxu0 0
      %934 = vmatprep.subr.bf16.mxu0 0
      %935 = vmatpush1.bf16.msra.mxu0 0
      %936 = vmatprep.subr.bf16.mxu0 0
      %937 = vmatpush1.bf16.msra.mxu0 0
      %938 = vmatprep.subr.bf16.mxu0 0
      %939 = vmatpush1.bf16.msra.mxu0 0
      %940 = vmatprep.subr.bf16.mxu0 0
      %941 = vmatpush1.bf16.msra.mxu0 0
      %942 = vmatprep.subr.bf16.mxu0 0
      %943 = vmatpush1.bf16.msra.mxu0 0
      %944 = vmatprep.subr.bf16.mxu0 0
      %945 = vmatpush1.bf16.msra.mxu0 0
      %946 = vmatprep.subr.bf16.mxu0 0
      %947 = vmatpush1.bf16.msra.mxu0 0
      %948 = vmatprep.subr.bf16.mxu0 0
      %949 = vmatpush1.bf16.msra.mxu0 0
      %950 = vmatprep.subr.bf16.mxu0 0
      %951 = vmatpush1.bf16.msra.mxu0 0
      %952 = vmatprep.subr.bf16.mxu0 0
      %953 = vmatpush1.bf16.msra.mxu0 0
      %954 = vmatprep.subr.bf16.mxu0 0
      %955 = vmatpush1.bf16.msra.mxu0 0
      %956 = vmatprep.subr.bf16.mxu0 0
      %957 = vmatpush1.bf16.msra.mxu0 0
      %958 = vmatprep.subr.bf16.mxu0 0
      %959 = vmatpush1.bf16.msra.mxu0 0
      %960 = vmatprep.mubr.bf16.mxu0 0
      %961 = vmatmul.mubr.bf16.gmra.mrb[0].mxu0 %v926
      %v962 = vpop.f32.mrb[0].mxu0
      %v963 = vadd.f32 0.0, %v962
      %v964 = vpop.f32.mrb[0].mxu0
      %v965 = vpop.f32.mrb[0].mxu0
      %v966 = vadd.f32 0.0, %v965
      %v967 = vpop.f32.mrb[0].mxu0
      %968 = vdwg.mxu0
      %v969 = vmax.f32 %v963, 0.0
      %v970 = vmax.f32 %v966, 0.0
      %973 = vrot.lane.b32.xlu0 %v969, 8
      %v974 = vpop.permute.xlu0 %973
      %975 = vrot.lane.b32.xlu0 %v970, 8
      %v976 = vpop.permute.xlu0 %975
      %vm979 = vcmask 130112
      %980 = vst.msk [vmem:[%s535] sm:$0xff] %vm979, %v974
      %981 = vst.msk [vmem:[%s535 + $0x8] sm:$0xff] %vm979, %v976
      %v982 = vld [vmem:[%s535] sm:$0xff]
      %v983 = vld [vmem:[%s535 + $0x8] sm:$0xff]
      %v984 = vpack.c.bf16 %v983, %v982
      %v985 = vld [vmem:[%s8] sm:$0xf]
      %v986 = vld [vmem:[%s8 + $0x4] sm:$0xf]
      %v987 = vld [vmem:[%s8 + $0x8] sm:$0xf]
      %v988 = vld [vmem:[%s8 + $0xc] sm:$0xf]
      %v989 = vld [vmem:[%s8 + $0x10] sm:$0xf]
      %v990 = vld [vmem:[%s8 + $0x14] sm:$0xf]
      %v991 = vld [vmem:[%s8 + $0x18] sm:$0xf]
      %v992 = vld [vmem:[%s8 + $0x1c] sm:$0xf]
      %v993 = vld [vmem:[%s8 + $0x20] sm:$0xf]
      %v994 = vld [vmem:[%s8 + $0x24] sm:$0xf]
      %v995 = vld [vmem:[%s8 + $0x28] sm:$0xf]
      %v996 = vld [vmem:[%s8 + $0x2c] sm:$0xf]
      %v997 = vld [vmem:[%s8 + $0x30] sm:$0xf]
      %v998 = vld [vmem:[%s8 + $0x34] sm:$0xf]
      %v999 = vld [vmem:[%s8 + $0x38] sm:$0xf]
      %v1000 = vld [vmem:[%s8 + $0x3c] sm:$0xf]
      %v1001 = vld [vmem:[%s9] sm:$0x1]
      %v1003 = vlaneseq
      %v1004 = vshrl.u32 %v1003, 7
      %v1005 = vsub.s32 0, %v1004
      %v1006 = vrot.slane %v1001, %v1005
      %v1024 = vunpack.c.l.b16 %v985
      %v1025 = vunpack.c.l.b16 %v986
      %v1026 = vunpack.c.l.b16 %v987
      %v1027 = vunpack.c.l.b16 %v988
      %v1028 = vunpack.c.l.b16 %v989
      %v1029 = vunpack.c.l.b16 %v990
      %v1030 = vunpack.c.l.b16 %v991
      %v1031 = vunpack.c.l.b16 %v992
      %v1032 = vunpack.c.l.b16 %v993
      %v1033 = vunpack.c.l.b16 %v994
      %v1034 = vunpack.c.l.b16 %v995
      %v1035 = vunpack.c.l.b16 %v996
      %v1036 = vunpack.c.l.b16 %v997
      %v1037 = vunpack.c.l.b16 %v998
      %v1038 = vunpack.c.l.b16 %v999
      %v1039 = vunpack.c.l.b16 %v1000
      %v1040 = vpack.c.b16 %v1025, %v1024
      %v1041 = vpack.c.b16 %v1027, %v1026
      %v1042 = vpack.c.b16 %v1029, %v1028
      %v1043 = vpack.c.b16 %v1031, %v1030
      %v1044 = vpack.c.b16 %v1033, %v1032
      %v1045 = vpack.c.b16 %v1035, %v1034
      %v1046 = vpack.c.b16 %v1037, %v1036
      %v1047 = vpack.c.b16 %v1039, %v1038
      %1056 = vmatprep.subr.bf16.mxu0 0
      %1057 = vmatpush1.bf16.msra.mxu0 %v1040
      %1058 = vmatprep.subr.bf16.mxu0 0
      %1059 = vmatpush1.bf16.msra.mxu0 %v1041
      %1060 = vmatprep.subr.bf16.mxu0 0
      %1061 = vmatpush1.bf16.msra.mxu0 %v1042
      %1062 = vmatprep.subr.bf16.mxu0 0
      %1063 = vmatpush1.bf16.msra.mxu0 %v1043
      %1064 = vmatprep.subr.bf16.mxu0 0
      %1065 = vmatpush1.bf16.msra.mxu0 %v1044
      %1066 = vmatprep.subr.bf16.mxu0 0
      %1067 = vmatpush1.bf16.msra.mxu0 %v1045
      %1068 = vmatprep.subr.bf16.mxu0 0
      %1069 = vmatpush1.bf16.msra.mxu0 %v1046
      %1070 = vmatprep.subr.bf16.mxu0 0
      %1071 = vmatpush1.bf16.msra.mxu0 %v1047
      %1072 = vmatprep.subr.bf16.mxu0 0
      %1073 = vmatpush1.bf16.msra.mxu0 0
      %1074 = vmatprep.subr.bf16.mxu0 0
      %1075 = vmatpush1.bf16.msra.mxu0 0
      %1076 = vmatprep.subr.bf16.mxu0 0
      %1077 = vmatpush1.bf16.msra.mxu0 0
      %1078 = vmatprep.subr.bf16.mxu0 0
      %1079 = vmatpush1.bf16.msra.mxu0 0
      %1080 = vmatprep.subr.bf16.mxu0 0
      %1081 = vmatpush1.bf16.msra.mxu0 0
      %1082 = vmatprep.subr.bf16.mxu0 0
      %1083 = vmatpush1.bf16.msra.mxu0 0
      %1084 = vmatprep.subr.bf16.mxu0 0
      %1085 = vmatpush1.bf16.msra.mxu0 0
      %1086 = vmatprep.subr.bf16.mxu0 0
      %1087 = vmatpush1.bf16.msra.mxu0 0
      %1088 = vmatprep.mubr.bf16.mxu0 0
      %1089 = vmatmul.mubr.bf16.gmra.mrb[0].mxu0 %v984
      %v1090 = vpop.f32.mrb[0].mxu0
      %v1091 = vadd.f32 %v1006, %v1090
      %v1092 = vpop.f32.mrb[0].mxu0
      %v1093 = vpop.f32.mrb[0].mxu0
      %v1094 = vadd.f32 %v1006, %v1093
      %v1095 = vpop.f32.mrb[0].mxu0
      %1096 = vdwg.mxu0
      %v1097 = vtanh.pop %v1091
      %v1098 = vtanh.pop %v1094
      %v1099 = vld [vmem:[%s530] sm:$0xff]
      %v1100 = vld [vmem:[%s530 + $0x8] sm:$0xff]
      %1102 = vset.pattern.permute.xlu0 0
      %1103 = vperm.xlu0 %1102, %v1099
      %v1104 = vpop.permute.xlu0 %1103
      %1107 = vset.pattern.permute.xlu0 0
      %1108 = vperm.xlu0 %1107, %v1100
      %v1109 = vpop.permute.xlu0 %1108
      %v1111 = vmul.f32 %v1104, %v1097
      %v1112 = vmul.f32 %v1109, %v1098
      %v1113 = vadd.f32 %v1111, %v1112
      %v1114 = vrot.slane %v1113, 4
      %v1115 = vadd.f32 %v1113, %v1114
      %v1116 = vrot.slane %v1115, 2
      %v1117 = vadd.f32 %v1115, %v1116
      %v1118 = vrot.slane %v1117, 1
      %v1119 = vadd.f32 %v1117, %v1118
      %1120 = vst [vmem:[%s538] sm:$0x1] %v1119
      %p1121 = scmp.lt.s32.totalorder %s29, 5
      %s1122 = scalar_select %p1121, %s29, 5
      %s1123 = smul.addr %s1122, 2
      %s1124 = smul.addr %s1123, 8
      %s1125 = scalar_lea.vmem %s10, %s1124
      %p1126 = scmp.lt.s32.totalorder %s29, 5
      %s1127 = scalar_select %p1126, %s29, 5
      %s1128 = scalar_lea.vmem %s11, %s1127
      // Predicated region
      $region57: #{han_forward.7} parent=55 // pred_check
        %p1129 = pneg %p285
      $region58: #{han_forward.7} parent=55 // pred_check_branch
        %1131 = sbr.rel (%p1129) target = $region60
      $region59: #{han_forward.7} parent=55 // pred_region
        _
      $region60: #{han_forward.7} parent=55 // pred_fallthru
        _
      // Predicated region
      $region61: #{han_forward.7} parent=55 // pred_check
        %p1132 = pneg %p311
      $region62: #{han_forward.7} parent=55 // pred_check_branch
        %1134 = sbr.rel (%p1132) target = $region64
      $region63: #{han_forward.7} parent=55 // pred_region
        _
      $region64: #{han_forward.7} parent=55 // pred_fallthru
        _
    $region56: #{han_forward.7} parent=5 // pred_fallthru
      _
    %p1135 = scmp.le.s32.totalorder 2, %s24
    // Predicated region
    $region65: #{han_forward.7} parent=5 // pred_check
      %p1136 = pneg %p1135
    $region66: #{han_forward.7} parent=5 // pred_check_branch
      %1138 = sbr.rel (%p1136) target = $region68
    $region67: #{han_forward.7} parent=5 // pred_region
      %s1139 = ssub.s32 %s24, 2
      // Predicated region
      $region69: #{han_forward.7} parent=67 // pred_check
        %p1140 = pneg %p291
      $region70: #{han_forward.7} parent=67 // pred_check_branch
        %1142 = sbr.rel (%p1140) target = $region72
      $region71: #{han_forward.7} parent=67 // pred_region
        %p1143 = scmp.lt.s32.totalorder %s30, 5
        %s1144 = scalar_select %p1143, %s30, 5
        %s1145 = smul.addr %s1144, 2
        %s1146 = smul.addr %s1145, 8
        %s1147 = scalar_lea.vmem %s10, %s1146
      $region72: #{han_forward.7} parent=67 // pred_fallthru
        _
      // Predicated region
      $region73: #{han_forward.7} parent=67 // pred_check
        %p1148 = pneg %p317
      $region74: #{han_forward.7} parent=67 // pred_check_branch
        %1150 = sbr.rel (%p1148) target = $region76
      $region75: #{han_forward.7} parent=67 // pred_region
        %p1151 = scmp.lt.s32.totalorder %s30, 5
        %s1152 = scalar_select %p1151, %s30, 5
        %s1153 = scalar_lea.vmem %s11, %s1152
      $region76: #{han_forward.7} parent=67 // pred_fallthru
        _
    $region68: #{han_forward.7} parent=5 // pred_fallthru
      _
  $region6: #{han_forward.7} parent=0 // loop_footer
    %s28 = sadd.s32 1, %s24
  $region7: #{han_forward.7} parent=0 // loop_footer_branch
    %23 = sbr.rel target = $region3
  $region8: #{han_forward.7} parent=0 // loop_exit
    _

</llo_original>
